<compile_context>
chip_gen: v6e
topology: v6e:2x2x1
jax: 0.10.0
libtpu: 0.0.40
codegen_flags: <defaults>
</compile_context>

<pallas_src>
import math

import jax
import jax.numpy as jnp
import numpy as np
from jax.experimental import pallas as pl
from jax.experimental.pallas import tpu as pltpu

# ---- model hyper-parameters (small, consistent with the module) -------------
VOCAB = 64
D_MODEL = 32
NUM_HEADS = 4
NUM_LAYERS = 2
D_FF = 64
MAX_SEQ = 16
D_K = D_MODEL // NUM_HEADS
LN_EPS = 1e-5
OUT_LANES = 128          # lane-padded LM-head width (VOCAB <= 128)


# ---------------------------- helpers -----------------------------------------
def _layernorm(x, g, b):
    mu = jnp.mean(x, axis=-1, keepdims=True)
    var = jnp.mean((x - mu) ** 2, axis=-1, keepdims=True)
    return (x - mu) * jax.lax.rsqrt(var + LN_EPS) * g + b


# ---------------------------- fused Pallas kernel ------------------------------
def llm_forward_kernel(onehot_ref,   # (BS, VOCAB+MAX_SEQ) f32  token+position one-hots
                       mask_ref,     # (BS, BS) f32             block-diagonal bias
                       embpe_ref,    # (VOCAB+MAX_SEQ, D) f32   [embedding ; pos-enc]
                       wqkv_ref,     # (L, 3, H, D, D_K) f32    per-head Q/K/V weights
                       bqkv_ref,     # (L, 3, H, 1, D_K) f32    per-head Q/K/V biases
                       wo_ref,       # (L, H, D_K, D) f32       per-head output proj rows
                       w1_ref,       # (L, D, D_FF) f32
                       w2_ref,       # (L, D_FF, D) f32
                       lvec_ref,     # (L, 7, 1, D_FF) f32      [b1, bo, b2, g1, be1, g2, be2]
                       wout_ref,     # (D + 8, OUT_LANES) f32   rows 0..D-1 = W_out, row D = b_out
                       out_ref):     # (BS, OUT_LANES) f32
    # Embedding + positional encoding as ONE one-hot matmul (no gather, no
    # in-kernel one-hot construction, no PE concatenate).
    x = jnp.dot(onehot_ref[...], embpe_ref[...],
                preferred_element_type=jnp.float32)                 # (BS, D)

    mask_bias = mask_ref[...]                                       # (BS, BS)
    scale = 1.0 / math.sqrt(D_K)
    contract_last = (((1,), (1,)), ((), ()))   # q @ k^T without explicit .T

    # TODO(synk): at scale (large B*S / more layers) this needs a flash-style
    # KV-tiled attention (segment ids via PrefetchScalarGridSpec) instead of a
    # materialized (BS,BS) mask, a batch-parallel grid axis for v7x's 2 TCs,
    # bf16 matmul operands (v6e/v7x), and streamed layer weights (v7x 64 MiB
    # VMEM).  At this toy size the kernel is overhead-bound, not MXU-bound.
    for li in range(NUM_LAYERS):               # layers unrolled; weights stay in VMEM
        # ---- multi-head attention: per-head weights/biases are leading-axis
        # indexed, so there is no lane extraction on the activation path.
        attn = jnp.zeros((x.shape[0], D_MODEL), jnp.float32)
        for h in range(NUM_HEADS):
            qh = jnp.dot(x, wqkv_ref[li, 0, h],
                         preferred_element_type=jnp.float32) + bqkv_ref[li, 0, h]
            kh = jnp.dot(x, wqkv_ref[li, 1, h],
                         preferred_element_type=jnp.float32) + bqkv_ref[li, 1, h]
            vh = jnp.dot(x, wqkv_ref[li, 2, h],
                         preferred_element_type=jnp.float32) + bqkv_ref[li, 2, h]

            s = jax.lax.dot_general(qh, kh, contract_last,
                                    preferred_element_type=jnp.float32)
            s = s * scale + mask_bias
            s = s - jnp.max(s, axis=-1, keepdims=True)
            p = jnp.exp(s)
            # divide -> EUP reciprocal (separate VLIW slot; keeps the VPU free)
            p = p * pl.reciprocal(jnp.sum(p, axis=-1, keepdims=True), approx=True)

            ctx = jnp.dot(p, vh, preferred_element_type=jnp.float32)      # (BS, D_K)
            attn = attn + jnp.dot(ctx, wo_ref[li, h],
                                  preferred_element_type=jnp.float32)     # (BS, D)

        b1 = lvec_ref[li, 0]                    # (1, D_FF)
        bo = lvec_ref[li, 1][:, :D_MODEL]       # offset-0 lane slices: no relayout
        b2 = lvec_ref[li, 2][:, :D_MODEL]
        g1 = lvec_ref[li, 3][:, :D_MODEL]
        be1 = lvec_ref[li, 4][:, :D_MODEL]
        g2 = lvec_ref[li, 5][:, :D_MODEL]
        be2 = lvec_ref[li, 6][:, :D_MODEL]

        attn = attn + bo                        # dropout = identity (inference)
        h1 = _layernorm(x + attn, g1, be1)

        ff = jnp.dot(h1, w1_ref[li], preferred_element_type=jnp.float32) + b1
        ff = jnp.maximum(ff, 0.0)
        ff = jnp.dot(ff, w2_ref[li], preferred_element_type=jnp.float32) + b2

        x = _layernorm(h1 + ff, g2, be2)

    # ---- LM head, lane-padded to 128 so the final store is an unmasked vst.
    w_out = wout_ref[0:D_MODEL, :]
    b_out = wout_ref[D_MODEL:D_MODEL + 1, :]
    out_ref[...] = jnp.dot(x, w_out, preferred_element_type=jnp.float32) + b_out


# ------------------------- parameter packing (once) ----------------------------
def pack_params(p):
    """Re-layout the 'torch-like' params for the kernel: per-head weight blocks
    (leading-axis indexed in-kernel), packed bias/LN rows, lane-padded LM head."""
    L, H, Dk = NUM_LAYERS, NUM_HEADS, D_K

    wqkv_h = jnp.transpose(p["wqkv"].reshape(L, D_MODEL, 3, H, Dk),
                           (0, 2, 3, 1, 4))                       # (L,3,H,D,D_K)
    bqkv_h = p["bqkv"].reshape(L, 3, H, 1, Dk)                    # (L,3,H,1,D_K)
    wo_h = p["wo"].reshape(L, H, Dk, D_MODEL)                     # (L,H,D_K,D)

    def row(v):                                                   # (L, n) -> (L,1,1,D_FF)
        v = jnp.pad(v, ((0, 0), (0, D_FF - v.shape[-1])))
        return v[:, None, None, :]

    lvec = jnp.concatenate([
        row(p["b1"][:, 0, :]),    # b1
        row(p["bo"][:, 0, :]),    # bo
        row(p["b2"][:, 0, :]),    # b2
        row(p["ln"][:, 0, :]),    # gamma1
        row(p["ln"][:, 1, :]),    # beta1
        row(p["ln"][:, 2, :]),    # gamma2
        row(p["ln"][:, 3, :]),    # beta2
    ], axis=1)                                                    # (L,7,1,D_FF)

    embpe = jnp.concatenate([p["emb"], p["pe"]], axis=0)          # (VOCAB+MAX_SEQ, D)

    wout = jnp.zeros((D_MODEL + 8, OUT_LANES), jnp.float32)
    wout = wout.at[:D_MODEL, :VOCAB].set(p["w_out"])
    wout = wout.at[D_MODEL, :VOCAB].set(p["b_out"][0])

    return {"embpe": embpe, "wqkv_h": wqkv_h, "bqkv_h": bqkv_h, "wo_h": wo_h,
            "w1": p["w1"], "w2": p["w2"], "lvec": lvec, "wout": wout}


# ------------------------------- wrapper ---------------------------------------
def model_forward(tokens, packed):
    B, S = tokens.shape
    BS = B * S

    # Cheap XLA-side prep (removes in-kernel VPU/XLU filler): token+position
    # one-hots (embedding becomes a single matmul) and the block-diagonal
    # attention bias that keeps batch elements independent.
    tok_oh = jax.nn.one_hot(tokens.reshape(BS), VOCAB, dtype=jnp.float32)
    pos_oh = jax.nn.one_hot(jnp.tile(jnp.arange(S, dtype=jnp.int32), B),
                            MAX_SEQ, dtype=jnp.float32)
    onehot = jnp.concatenate([tok_oh, pos_oh], axis=1)            # (BS, VOCAB+MAX_SEQ)

    blk = jnp.arange(BS, dtype=jnp.int32) // S
    mask_bias = jnp.where(blk[:, None] == blk[None, :],
                          0.0, -1e30).astype(jnp.float32)         # (BS, BS)

    inputs = (onehot, mask_bias, packed["embpe"],
              packed["wqkv_h"], packed["bqkv_h"], packed["wo_h"],
              packed["w1"], packed["w2"], packed["lvec"], packed["wout"])

    vmem = pl.BlockSpec(memory_space=pltpu.MemorySpace.VMEM)
    out = pl.pallas_call(
        llm_forward_kernel,
        out_shape=jax.ShapeDtypeStruct((BS, OUT_LANES), jnp.float32),
        in_specs=[vmem] * len(inputs),
        out_specs=vmem,
    )(*inputs)
    return out[:, :VOCAB].reshape(B, S, VOCAB)


# --------------------------- parameter init -------------------------------------
def _linear(key, fan_in, fan_out):
    kw, kb = jax.random.split(key)
    w = jax.random.normal(kw, (fan_in, fan_out), jnp.float32) * 0.02
    b = jax.random.normal(kb, (1, fan_out), jnp.float32) * 0.02
    return w, b


def make_pos_encoding(max_seq, d_model):
    pos = jnp.arange(max_seq, dtype=jnp.float32)[:, None]
    div = jnp.exp(jnp.arange(0, d_model, 2, dtype=jnp.float32) *
                  (-math.log(10000.0) / d_model))
    pe = jnp.zeros((max_seq, d_model), jnp.float32)
    pe = pe.at[:, 0::2].set(jnp.sin(pos * div))
    pe = pe.at[:, 1::2].set(jnp.cos(pos * div))
    return pe                                            # (max_seq, d_model)


def init_params(key):
    keys = jax.random.split(key, 2 + NUM_LAYERS)
    wqkv, bqkv, wo, bo, w1, b1, w2, b2, ln = ([] for _ in range(9))
    for li in range(NUM_LAYERS):
        lk = jax.random.split(keys[1 + li], 6)
        wq, bq_ = _linear(lk[0], D_MODEL, D_MODEL)
        wk, bk_ = _linear(lk[1], D_MODEL, D_MODEL)
        wv, bv_ = _linear(lk[2], D_MODEL, D_MODEL)
        wo_l, bo_l = _linear(lk[3], D_MODEL, D_MODEL)
        w1_l, b1_l = _linear(lk[4], D_MODEL, D_FF)
        w2_l, b2_l = _linear(lk[5], D_FF, D_MODEL)
        wqkv.append(jnp.concatenate([wq, wk, wv], axis=1))       # (D, 3D)
        bqkv.append(jnp.concatenate([bq_, bk_, bv_], axis=1))    # (1, 3D)
        wo.append(wo_l); bo.append(bo_l)
        w1.append(w1_l); b1.append(b1_l)
        w2.append(w2_l); b2.append(b2_l)
        ln.append(jnp.stack([jnp.ones((D_MODEL,), jnp.float32),
                             jnp.zeros((D_MODEL,), jnp.float32),
                             jnp.ones((D_MODEL,), jnp.float32),
                             jnp.zeros((D_MODEL,), jnp.float32)], axis=0))
    w_out, b_out = _linear(keys[1 + NUM_LAYERS], D_MODEL, VOCAB)
    return {
        "emb": jax.random.normal(keys[0], (VOCAB, D_MODEL), jnp.float32) * 0.02,
        "pe": make_pos_encoding(MAX_SEQ, D_MODEL),
        "wqkv": jnp.stack(wqkv), "bqkv": jnp.stack(bqkv),
        "wo": jnp.stack(wo), "bo": jnp.stack(bo),
        "w1": jnp.stack(w1), "b1": jnp.stack(b1),
        "w2": jnp.stack(w2), "b2": jnp.stack(b2),
        "ln": jnp.stack(ln),
        "w_out": w_out, "b_out": b_out,
    }


# ---------------------------- pure-JAX reference --------------------------------
def ref_forward(tokens, params):
    B, S = tokens.shape
    x = params["emb"][tokens] + params["pe"][None, :S, :]
    for li in range(NUM_LAYERS):
        qkv = x @ params["wqkv"][li] + params["bqkv"][li]
        q, k, v = jnp.split(qkv, 3, axis=-1)
        q = q.reshape(B, S, NUM_HEADS, D_K).transpose(0, 2, 1, 3)
        k = k.reshape(B, S, NUM_HEADS, D_K).transpose(0, 2, 1, 3)
        v = v.reshape(B, S, NUM_HEADS, D_K).transpose(0, 2, 1, 3)
        s = jnp.einsum("bhqd,bhkd->bhqk", q, k) / math.sqrt(D_K)
        p = jax.nn.softmax(s, axis=-1)
        ctx = jnp.einsum("bhqk,bhkd->bhqd", p, v)
        ctx = ctx.transpose(0, 2, 1, 3).reshape(B, S, D_MODEL)
        attn = ctx @ params["wo"][li] + params["bo"][li]
        ln = params["ln"][li]
        h1 = _layernorm(x + attn, ln[0], ln[1])
        ff = jnp.maximum(h1 @ params["w1"][li] + params["b1"][li], 0.0)
        ff = ff @ params["w2"][li] + params["b2"][li]
        x = _layernorm(h1 + ff, ln[2], ln[3])
    return x @ params["w_out"] + params["b_out"]


# ------------------------------------ main ---------------------------------------
if __name__ == "__main__":
    key = jax.random.PRNGKey(0)
    pkey, tkey = jax.random.split(key)
    params = init_params(pkey)
    packed = pack_params(params)

    B, S = 2, 8
    tokens = jax.random.randint(tkey, (B, S), 0, VOCAB, dtype=jnp.int32)

    fwd = jax.jit(model_forward)
    logits = jax.block_until_ready(fwd(tokens, packed))

    ref = jax.block_until_ready(ref_forward(tokens, params))
    assert logits.shape == (B, S, VOCAB)
    # Tolerance 1e-3: softmax uses the EUP approx reciprocal (per perf review);
    # observed error is far smaller, this just leaves margin.
    np.testing.assert_allclose(np.asarray(logits), np.asarray(ref),
                               rtol=1e-3, atol=1e-3)
    print("KERNEL_OK")
</pallas_src>

<mosaic_0001>
module attributes {stable_mosaic.version = 11 : i64} {
  func.func @llm_forward_kernel(%arg0: memref<16x80xf32, #tpu.memory_space<vmem>>, %arg1: memref<16x16xf32, #tpu.memory_space<vmem>>, %arg2: memref<80x32xf32, #tpu.memory_space<vmem>>, %arg3: memref<2x3x4x32x8xf32, #tpu.memory_space<vmem>>, %arg4: memref<2x3x4x1x8xf32, #tpu.memory_space<vmem>>, %arg5: memref<2x4x8x32xf32, #tpu.memory_space<vmem>>, %arg6: memref<2x32x64xf32, #tpu.memory_space<vmem>>, %arg7: memref<2x64x32xf32, #tpu.memory_space<vmem>>, %arg8: memref<2x7x1x64xf32, #tpu.memory_space<vmem>>, %arg9: memref<40x128xf32, #tpu.memory_space<vmem>>, %arg10: memref<16x128xf32, #tpu.memory_space<vmem>>) attributes {dimension_semantics = [], scalar_prefetch = 0 : i64, scratch_operands = 0 : i64, tpu.core_type = #tpu.core_type<tc>} {
    %c0 = arith.constant 0 : index
    %c0_0 = arith.constant 0 : index
    %0 = vector.load %arg0[%c0, %c0_0] : memref<16x80xf32, #tpu.memory_space<vmem>>, vector<16x80xf32>
    %c0_1 = arith.constant 0 : index
    %c0_2 = arith.constant 0 : index
    %1 = vector.load %arg2[%c0_1, %c0_2] : memref<80x32xf32, #tpu.memory_space<vmem>>, vector<80x32xf32>
    %cst = arith.constant dense<0.000000e+00> : vector<16x32xf32>
    %2 = tpu.matmul %0, %1, %cst {dimension_numbers = #tpu.dot_dimension_numbers<[1], [0], [0], [1], [0, 0, 1, 1], [], []>} : vector<16x80xf32>, vector<80x32xf32>, vector<16x32xf32> -> vector<16x32xf32>
    %c0_3 = arith.constant 0 : index
    %c0_4 = arith.constant 0 : index
    %3 = vector.load %arg1[%c0_3, %c0_4] : memref<16x16xf32, #tpu.memory_space<vmem>>, vector<16x16xf32>
    %cst_5 = arith.constant 0.000000e+00 : f32
    %4 = vector.broadcast %cst_5 : f32 to vector<16x32xf32>
    %c0_6 = arith.constant 0 : index
    %c0_7 = arith.constant 0 : index
    %c0_8 = arith.constant 0 : index
    %c0_9 = arith.constant 0 : index
    %c0_10 = arith.constant 0 : index
    %5 = vector.load %arg3[%c0_6, %c0_7, %c0_8, %c0_9, %c0_10] : memref<2x3x4x32x8xf32, #tpu.memory_space<vmem>>, vector<1x1x1x32x8xf32>
    %6 = vector.shape_cast %5 : vector<1x1x1x32x8xf32> to vector<32x8xf32>
    %cst_11 = arith.constant dense<0.000000e+00> : vector<16x8xf32>
    %7 = tpu.matmul %2, %6, %cst_11 {dimension_numbers = #tpu.dot_dimension_numbers<[1], [0], [0], [1], [0, 0, 1, 1], [], []>} : vector<16x32xf32>, vector<32x8xf32>, vector<16x8xf32> -> vector<16x8xf32>
    %c0_12 = arith.constant 0 : index
    %c0_13 = arith.constant 0 : index
    %c0_14 = arith.constant 0 : index
    %c0_15 = arith.constant 0 : index
    %c0_16 = arith.constant 0 : index
    %8 = vector.load %arg4[%c0_12, %c0_13, %c0_14, %c0_15, %c0_16] : memref<2x3x4x1x8xf32, #tpu.memory_space<vmem>>, vector<1x1x1x1x8xf32>
    %9 = vector.shape_cast %8 : vector<1x1x1x1x8xf32> to vector<1x8xf32>
    %10 = vector.broadcast %9 : vector<1x8xf32> to vector<16x8xf32>
    %11 = arith.addf %7, %10 : vector<16x8xf32>
    %c0_17 = arith.constant 0 : index
    %c1 = arith.constant 1 : index
    %c0_18 = arith.constant 0 : index
    %c0_19 = arith.constant 0 : index
    %c0_20 = arith.constant 0 : index
    %12 = vector.load %arg3[%c0_17, %c1, %c0_18, %c0_19, %c0_20] : memref<2x3x4x32x8xf32, #tpu.memory_space<vmem>>, vector<1x1x1x32x8xf32>
    %13 = vector.shape_cast %12 : vector<1x1x1x32x8xf32> to vector<32x8xf32>
    %cst_21 = arith.constant dense<0.000000e+00> : vector<16x8xf32>
    %14 = tpu.matmul %2, %13, %cst_21 {dimension_numbers = #tpu.dot_dimension_numbers<[1], [0], [0], [1], [0, 0, 1, 1], [], []>} : vector<16x32xf32>, vector<32x8xf32>, vector<16x8xf32> -> vector<16x8xf32>
    %c0_22 = arith.constant 0 : index
    %c1_23 = arith.constant 1 : index
    %c0_24 = arith.constant 0 : index
    %c0_25 = arith.constant 0 : index
    %c0_26 = arith.constant 0 : index
    %15 = vector.load %arg4[%c0_22, %c1_23, %c0_24, %c0_25, %c0_26] : memref<2x3x4x1x8xf32, #tpu.memory_space<vmem>>, vector<1x1x1x1x8xf32>
    %16 = vector.shape_cast %15 : vector<1x1x1x1x8xf32> to vector<1x8xf32>
    %17 = vector.broadcast %16 : vector<1x8xf32> to vector<16x8xf32>
    %18 = arith.addf %14, %17 : vector<16x8xf32>
    %c0_27 = arith.constant 0 : index
    %c2 = arith.constant 2 : index
    %c0_28 = arith.constant 0 : index
    %c0_29 = arith.constant 0 : index
    %c0_30 = arith.constant 0 : index
    %19 = vector.load %arg3[%c0_27, %c2, %c0_28, %c0_29, %c0_30] : memref<2x3x4x32x8xf32, #tpu.memory_space<vmem>>, vector<1x1x1x32x8xf32>
    %20 = vector.shape_cast %19 : vector<1x1x1x32x8xf32> to vector<32x8xf32>
    %cst_31 = arith.constant dense<0.000000e+00> : vector<16x8xf32>
    %21 = tpu.matmul %2, %20, %cst_31 {dimension_numbers = #tpu.dot_dimension_numbers<[1], [0], [0], [1], [0, 0, 1, 1], [], []>} : vector<16x32xf32>, vector<32x8xf32>, vector<16x8xf32> -> vector<16x8xf32>
    %c0_32 = arith.constant 0 : index
    %c2_33 = arith.constant 2 : index
    %c0_34 = arith.constant 0 : index
    %c0_35 = arith.constant 0 : index
    %c0_36 = arith.constant 0 : index
    %22 = vector.load %arg4[%c0_32, %c2_33, %c0_34, %c0_35, %c0_36] : memref<2x3x4x1x8xf32, #tpu.memory_space<vmem>>, vector<1x1x1x1x8xf32>
    %23 = vector.shape_cast %22 : vector<1x1x1x1x8xf32> to vector<1x8xf32>
    %24 = vector.broadcast %23 : vector<1x8xf32> to vector<16x8xf32>
    %25 = arith.addf %21, %24 : vector<16x8xf32>
    %cst_37 = arith.constant dense<0.000000e+00> : vector<16x16xf32>
    %26 = tpu.matmul %11, %18, %cst_37 {dimension_numbers = #tpu.dot_dimension_numbers<[1], [1], [0], [0], [0, 0, 1, 0], [], []>} : vector<16x8xf32>, vector<16x8xf32>, vector<16x16xf32> -> vector<16x16xf32>
    %cst_38 = arith.constant 0.353553385 : f32
    %27 = vector.broadcast %cst_38 : f32 to vector<16x16xf32>
    %28 = arith.mulf %26, %27 : vector<16x16xf32>
    %29 = arith.addf %28, %3 : vector<16x16xf32>
    %cst_39 = arith.constant dense<0xFF800000> : vector<16xf32>
    %30 = vector.multi_reduction <maximumf>, %29, %cst_39 [1] : vector<16x16xf32> to vector<16xf32>
    %31 = vector.shape_cast %30 : vector<16xf32> to vector<16x1xf32>
    %32 = vector.broadcast %31 : vector<16x1xf32> to vector<16x16xf32>
    %33 = arith.subf %29, %32 : vector<16x16xf32>
    %34 = math.exp %33 : vector<16x16xf32>
    %cst_40 = arith.constant dense<0.000000e+00> : vector<16xf32>
    %35 = vector.multi_reduction <add>, %34, %cst_40 [1] : vector<16x16xf32> to vector<16xf32>
    %36 = vector.shape_cast %35 : vector<16xf32> to vector<16x1xf32>
    %37 = tpu.reciprocal %36 {approx = true} : vector<16x1xf32> -> vector<16x1xf32>
    %38 = vector.broadcast %37 : vector<16x1xf32> to vector<16x16xf32>
    %39 = arith.mulf %34, %38 : vector<16x16xf32>
    %cst_41 = arith.constant dense<0.000000e+00> : vector<16x8xf32>
    %40 = tpu.matmul %39, %25, %cst_41 {dimension_numbers = #tpu.dot_dimension_numbers<[1], [0], [0], [1], [0, 0, 1, 1], [], []>} : vector<16x16xf32>, vector<16x8xf32>, vector<16x8xf32> -> vector<16x8xf32>
    %c0_42 = arith.constant 0 : index
    %c0_43 = arith.constant 0 : index
    %c0_44 = arith.constant 0 : index
    %c0_45 = arith.constant 0 : index
    %41 = vector.load %arg5[%c0_42, %c0_43, %c0_44, %c0_45] : memref<2x4x8x32xf32, #tpu.memory_space<vmem>>, vector<1x1x8x32xf32>
    %42 = vector.shape_cast %41 : vector<1x1x8x32xf32> to vector<8x32xf32>
    %cst_46 = arith.constant dense<0.000000e+00> : vector<16x32xf32>
    %43 = tpu.matmul %40, %42, %cst_46 {dimension_numbers = #tpu.dot_dimension_numbers<[1], [0], [0], [1], [0, 0, 1, 1], [], []>} : vector<16x8xf32>, vector<8x32xf32>, vector<16x32xf32> -> vector<16x32xf32>
    %44 = arith.addf %4, %43 : vector<16x32xf32>
    %c0_47 = arith.constant 0 : index
    %c0_48 = arith.constant 0 : index
    %c1_49 = arith.constant 1 : index
    %c0_50 = arith.constant 0 : index
    %c0_51 = arith.constant 0 : index
    %45 = vector.load %arg3[%c0_47, %c0_48, %c1_49, %c0_50, %c0_51] : memref<2x3x4x32x8xf32, #tpu.memory_space<vmem>>, vector<1x1x1x32x8xf32>
    %46 = vector.shape_cast %45 : vector<1x1x1x32x8xf32> to vector<32x8xf32>
    %cst_52 = arith.constant dense<0.000000e+00> : vector<16x8xf32>
    %47 = tpu.matmul %2, %46, %cst_52 {dimension_numbers = #tpu.dot_dimension_numbers<[1], [0], [0], [1], [0, 0, 1, 1], [], []>} : vector<16x32xf32>, vector<32x8xf32>, vector<16x8xf32> -> vector<16x8xf32>
    %c0_53 = arith.constant 0 : index
    %c0_54 = arith.constant 0 : index
    %c1_55 = arith.constant 1 : index
    %c0_56 = arith.constant 0 : index
    %c0_57 = arith.constant 0 : index
    %48 = vector.load %arg4[%c0_53, %c0_54, %c1_55, %c0_56, %c0_57] : memref<2x3x4x1x8xf32, #tpu.memory_space<vmem>>, vector<1x1x1x1x8xf32>
    %49 = vector.shape_cast %48 : vector<1x1x1x1x8xf32> to vector<1x8xf32>
    %50 = vector.broadcast %49 : vector<1x8xf32> to vector<16x8xf32>
    %51 = arith.addf %47, %50 : vector<16x8xf32>
    %c0_58 = arith.constant 0 : index
    %c1_59 = arith.constant 1 : index
    %c1_60 = arith.constant 1 : index
    %c0_61 = arith.constant 0 : index
    %c0_62 = arith.constant 0 : index
    %52 = vector.load %arg3[%c0_58, %c1_59, %c1_60, %c0_61, %c0_62] : memref<2x3x4x32x8xf32, #tpu.memory_space<vmem>>, vector<1x1x1x32x8xf32>
    %53 = vector.shape_cast %52 : vector<1x1x1x32x8xf32> to vector<32x8xf32>
    %cst_63 = arith.constant dense<0.000000e+00> : vector<16x8xf32>
    %54 = tpu.matmul %2, %53, %cst_63 {dimension_numbers = #tpu.dot_dimension_numbers<[1], [0], [0], [1], [0, 0, 1, 1], [], []>} : vector<16x32xf32>, vector<32x8xf32>, vector<16x8xf32> -> vector<16x8xf32>
    %c0_64 = arith.constant 0 : index
    %c1_65 = arith.constant 1 : index
    %c1_66 = arith.constant 1 : index
    %c0_67 = arith.constant 0 : index
    %c0_68 = arith.constant 0 : index
    %55 = vector.load %arg4[%c0_64, %c1_65, %c1_66, %c0_67, %c0_68] : memref<2x3x4x1x8xf32, #tpu.memory_space<vmem>>, vector<1x1x1x1x8xf32>
    %56 = vector.shape_cast %55 : vector<1x1x1x1x8xf32> to vector<1x8xf32>
    %57 = vector.broadcast %56 : vector<1x8xf32> to vector<16x8xf32>
    %58 = arith.addf %54, %57 : vector<16x8xf32>
    %c0_69 = arith.constant 0 : index
    %c2_70 = arith.constant 2 : index
    %c1_71 = arith.constant 1 : index
    %c0_72 = arith.constant 0 : index
    %c0_73 = arith.constant 0 : index
    %59 = vector.load %arg3[%c0_69, %c2_70, %c1_71, %c0_72, %c0_73] : memref<2x3x4x32x8xf32, #tpu.memory_space<vmem>>, vector<1x1x1x32x8xf32>
    %60 = vector.shape_cast %59 : vector<1x1x1x32x8xf32> to vector<32x8xf32>
    %cst_74 = arith.constant dense<0.000000e+00> : vector<16x8xf32>
    %61 = tpu.matmul %2, %60, %cst_74 {dimension_numbers = #tpu.dot_dimension_numbers<[1], [0], [0], [1], [0, 0, 1, 1], [], []>} : vector<16x32xf32>, vector<32x8xf32>, vector<16x8xf32> -> vector<16x8xf32>
    %c0_75 = arith.constant 0 : index
    %c2_76 = arith.constant 2 : index
    %c1_77 = arith.constant 1 : index
    %c0_78 = arith.constant 0 : index
    %c0_79 = arith.constant 0 : index
    %62 = vector.load %arg4[%c0_75, %c2_76, %c1_77, %c0_78, %c0_79] : memref<2x3x4x1x8xf32, #tpu.memory_space<vmem>>, vector<1x1x1x1x8xf32>
    %63 = vector.shape_cast %62 : vector<1x1x1x1x8xf32> to vector<1x8xf32>
    %64 = vector.broadcast %63 : vector<1x8xf32> to vector<16x8xf32>
    %65 = arith.addf %61, %64 : vector<16x8xf32>
    %cst_80 = arith.constant dense<0.000000e+00> : vector<16x16xf32>
    %66 = tpu.matmul %51, %58, %cst_80 {dimension_numbers = #tpu.dot_dimension_numbers<[1], [1], [0], [0], [0, 0, 1, 0], [], []>} : vector<16x8xf32>, vector<16x8xf32>, vector<16x16xf32> -> vector<16x16xf32>
    %cst_81 = arith.constant 0.353553385 : f32
    %67 = vector.broadcast %cst_81 : f32 to vector<16x16xf32>
    %68 = arith.mulf %66, %67 : vector<16x16xf32>
    %69 = arith.addf %68, %3 : vector<16x16xf32>
    %cst_82 = arith.constant dense<0xFF800000> : vector<16xf32>
    %70 = vector.multi_reduction <maximumf>, %69, %cst_82 [1] : vector<16x16xf32> to vector<16xf32>
    %71 = vector.shape_cast %70 : vector<16xf32> to vector<16x1xf32>
    %72 = vector.broadcast %71 : vector<16x1xf32> to vector<16x16xf32>
    %73 = arith.subf %69, %72 : vector<16x16xf32>
    %74 = math.exp %73 : vector<16x16xf32>
    %cst_83 = arith.constant dense<0.000000e+00> : vector<16xf32>
    %75 = vector.multi_reduction <add>, %74, %cst_83 [1] : vector<16x16xf32> to vector<16xf32>
    %76 = vector.shape_cast %75 : vector<16xf32> to vector<16x1xf32>
    %77 = tpu.reciprocal %76 {approx = true} : vector<16x1xf32> -> vector<16x1xf32>
    %78 = vector.broadcast %77 : vector<16x1xf32> to vector<16x16xf32>
    %79 = arith.mulf %74, %78 : vector<16x16xf32>
    %cst_84 = arith.constant dense<0.000000e+00> : vector<16x8xf32>
    %80 = tpu.matmul %79, %65, %cst_84 {dimension_numbers = #tpu.dot_dimension_numbers<[1], [0], [0], [1], [0, 0, 1, 1], [], []>} : vector<16x16xf32>, vector<16x8xf32>, vector<16x8xf32> -> vector<16x8xf32>
    %c0_85 = arith.constant 0 : index
    %c1_86 = arith.constant 1 : index
    %c0_87 = arith.constant 0 : index
    %c0_88 = arith.constant 0 : index
    %81 = vector.load %arg5[%c0_85, %c1_86, %c0_87, %c0_88] : memref<2x4x8x32xf32, #tpu.memory_space<vmem>>, vector<1x1x8x32xf32>
    %82 = vector.shape_cast %81 : vector<1x1x8x32xf32> to vector<8x32xf32>
    %cst_89 = arith.constant dense<0.000000e+00> : vector<16x32xf32>
    %83 = tpu.matmul %80, %82, %cst_89 {dimension_numbers = #tpu.dot_dimension_numbers<[1], [0], [0], [1], [0, 0, 1, 1], [], []>} : vector<16x8xf32>, vector<8x32xf32>, vector<16x32xf32> -> vector<16x32xf32>
    %84 = arith.addf %44, %83 : vector<16x32xf32>
    %c0_90 = arith.constant 0 : index
    %c0_91 = arith.constant 0 : index
    %c2_92 = arith.constant 2 : index
    %c0_93 = arith.constant 0 : index
    %c0_94 = arith.constant 0 : index
    %85 = vector.load %arg3[%c0_90, %c0_91, %c2_92, %c0_93, %c0_94] : memref<2x3x4x32x8xf32, #tpu.memory_space<vmem>>, vector<1x1x1x32x8xf32>
    %86 = vector.shape_cast %85 : vector<1x1x1x32x8xf32> to vector<32x8xf32>
    %cst_95 = arith.constant dense<0.000000e+00> : vector<16x8xf32>
    %87 = tpu.matmul %2, %86, %cst_95 {dimension_numbers = #tpu.dot_dimension_numbers<[1], [0], [0], [1], [0, 0, 1, 1], [], []>} : vector<16x32xf32>, vector<32x8xf32>, vector<16x8xf32> -> vector<16x8xf32>
    %c0_96 = arith.constant 0 : index
    %c0_97 = arith.constant 0 : index
    %c2_98 = arith.constant 2 : index
    %c0_99 = arith.constant 0 : index
    %c0_100 = arith.constant 0 : index
    %88 = vector.load %arg4[%c0_96, %c0_97, %c2_98, %c0_99, %c0_100] : memref<2x3x4x1x8xf32, #tpu.memory_space<vmem>>, vector<1x1x1x1x8xf32>
    %89 = vector.shape_cast %88 : vector<1x1x1x1x8xf32> to vector<1x8xf32>
    %90 = vector.broadcast %89 : vector<1x8xf32> to vector<16x8xf32>
    %91 = arith.addf %87, %90 : vector<16x8xf32>
    %c0_101 = arith.constant 0 : index
    %c1_102 = arith.constant 1 : index
    %c2_103 = arith.constant 2 : index
    %c0_104 = arith.constant 0 : index
    %c0_105 = arith.constant 0 : index
    %92 = vector.load %arg3[%c0_101, %c1_102, %c2_103, %c0_104, %c0_105] : memref<2x3x4x32x8xf32, #tpu.memory_space<vmem>>, vector<1x1x1x32x8xf32>
    %93 = vector.shape_cast %92 : vector<1x1x1x32x8xf32> to vector<32x8xf32>
    %cst_106 = arith.constant dense<0.000000e+00> : vector<16x8xf32>
    %94 = tpu.matmul %2, %93, %cst_106 {dimension_numbers = #tpu.dot_dimension_numbers<[1], [0], [0], [1], [0, 0, 1, 1], [], []>} : vector<16x32xf32>, vector<32x8xf32>, vector<16x8xf32> -> vector<16x8xf32>
    %c0_107 = arith.constant 0 : index
    %c1_108 = arith.constant 1 : index
    %c2_109 = arith.constant 2 : index
    %c0_110 = arith.constant 0 : index
    %c0_111 = arith.constant 0 : index
    %95 = vector.load %arg4[%c0_107, %c1_108, %c2_109, %c0_110, %c0_111] : memref<2x3x4x1x8xf32, #tpu.memory_space<vmem>>, vector<1x1x1x1x8xf32>
    %96 = vector.shape_cast %95 : vector<1x1x1x1x8xf32> to vector<1x8xf32>
    %97 = vector.broadcast %96 : vector<1x8xf32> to vector<16x8xf32>
    %98 = arith.addf %94, %97 : vector<16x8xf32>
    %c0_112 = arith.constant 0 : index
    %c2_113 = arith.constant 2 : index
    %c2_114 = arith.constant 2 : index
    %c0_115 = arith.constant 0 : index
    %c0_116 = arith.constant 0 : index
    %99 = vector.load %arg3[%c0_112, %c2_113, %c2_114, %c0_115, %c0_116] : memref<2x3x4x32x8xf32, #tpu.memory_space<vmem>>, vector<1x1x1x32x8xf32>
    %100 = vector.shape_cast %99 : vector<1x1x1x32x8xf32> to vector<32x8xf32>
    %cst_117 = arith.constant dense<0.000000e+00> : vector<16x8xf32>
    %101 = tpu.matmul %2, %100, %cst_117 {dimension_numbers = #tpu.dot_dimension_numbers<[1], [0], [0], [1], [0, 0, 1, 1], [], []>} : vector<16x32xf32>, vector<32x8xf32>, vector<16x8xf32> -> vector<16x8xf32>
    %c0_118 = arith.constant 0 : index
    %c2_119 = arith.constant 2 : index
    %c2_120 = arith.constant 2 : index
    %c0_121 = arith.constant 0 : index
    %c0_122 = arith.constant 0 : index
    %102 = vector.load %arg4[%c0_118, %c2_119, %c2_120, %c0_121, %c0_122] : memref<2x3x4x1x8xf32, #tpu.memory_space<vmem>>, vector<1x1x1x1x8xf32>
    %103 = vector.shape_cast %102 : vector<1x1x1x1x8xf32> to vector<1x8xf32>
    %104 = vector.broadcast %103 : vector<1x8xf32> to vector<16x8xf32>
    %105 = arith.addf %101, %104 : vector<16x8xf32>
    %cst_123 = arith.constant dense<0.000000e+00> : vector<16x16xf32>
    %106 = tpu.matmul %91, %98, %cst_123 {dimension_numbers = #tpu.dot_dimension_numbers<[1], [1], [0], [0], [0, 0, 1, 0], [], []>} : vector<16x8xf32>, vector<16x8xf32>, vector<16x16xf32> -> vector<16x16xf32>
    %cst_124 = arith.constant 0.353553385 : f32
    %107 = vector.broadcast %cst_124 : f32 to vector<16x16xf32>
    %108 = arith.mulf %106, %107 : vector<16x16xf32>
    %109 = arith.addf %108, %3 : vector<16x16xf32>
    %cst_125 = arith.constant dense<0xFF800000> : vector<16xf32>
    %110 = vector.multi_reduction <maximumf>, %109, %cst_125 [1] : vector<16x16xf32> to vector<16xf32>
    %111 = vector.shape_cast %110 : vector<16xf32> to vector<16x1xf32>
    %112 = vector.broadcast %111 : vector<16x1xf32> to vector<16x16xf32>
    %113 = arith.subf %109, %112 : vector<16x16xf32>
    %114 = math.exp %113 : vector<16x16xf32>
    %cst_126 = arith.constant dense<0.000000e+00> : vector<16xf32>
    %115 = vector.multi_reduction <add>, %114, %cst_126 [1] : vector<16x16xf32> to vector<16xf32>
    %116 = vector.shape_cast %115 : vector<16xf32> to vector<16x1xf32>
    %117 = tpu.reciprocal %116 {approx = true} : vector<16x1xf32> -> vector<16x1xf32>
    %118 = vector.broadcast %117 : vector<16x1xf32> to vector<16x16xf32>
    %119 = arith.mulf %114, %118 : vector<16x16xf32>
    %cst_127 = arith.constant dense<0.000000e+00> : vector<16x8xf32>
    %120 = tpu.matmul %119, %105, %cst_127 {dimension_numbers = #tpu.dot_dimension_numbers<[1], [0], [0], [1], [0, 0, 1, 1], [], []>} : vector<16x16xf32>, vector<16x8xf32>, vector<16x8xf32> -> vector<16x8xf32>
    %c0_128 = arith.constant 0 : index
    %c2_129 = arith.constant 2 : index
    %c0_130 = arith.constant 0 : index
    %c0_131 = arith.constant 0 : index
    %121 = vector.load %arg5[%c0_128, %c2_129, %c0_130, %c0_131] : memref<2x4x8x32xf32, #tpu.memory_space<vmem>>, vector<1x1x8x32xf32>
    %122 = vector.shape_cast %121 : vector<1x1x8x32xf32> to vector<8x32xf32>
    %cst_132 = arith.constant dense<0.000000e+00> : vector<16x32xf32>
    %123 = tpu.matmul %120, %122, %cst_132 {dimension_numbers = #tpu.dot_dimension_numbers<[1], [0], [0], [1], [0, 0, 1, 1], [], []>} : vector<16x8xf32>, vector<8x32xf32>, vector<16x32xf32> -> vector<16x32xf32>
    %124 = arith.addf %84, %123 : vector<16x32xf32>
    %c0_133 = arith.constant 0 : index
    %c0_134 = arith.constant 0 : index
    %c3 = arith.constant 3 : index
    %c0_135 = arith.constant 0 : index
    %c0_136 = arith.constant 0 : index
    %125 = vector.load %arg3[%c0_133, %c0_134, %c3, %c0_135, %c0_136] : memref<2x3x4x32x8xf32, #tpu.memory_space<vmem>>, vector<1x1x1x32x8xf32>
    %126 = vector.shape_cast %125 : vector<1x1x1x32x8xf32> to vector<32x8xf32>
    %cst_137 = arith.constant dense<0.000000e+00> : vector<16x8xf32>
    %127 = tpu.matmul %2, %126, %cst_137 {dimension_numbers = #tpu.dot_dimension_numbers<[1], [0], [0], [1], [0, 0, 1, 1], [], []>} : vector<16x32xf32>, vector<32x8xf32>, vector<16x8xf32> -> vector<16x8xf32>
    %c0_138 = arith.constant 0 : index
    %c0_139 = arith.constant 0 : index
    %c3_140 = arith.constant 3 : index
    %c0_141 = arith.constant 0 : index
    %c0_142 = arith.constant 0 : index
    %128 = vector.load %arg4[%c0_138, %c0_139, %c3_140, %c0_141, %c0_142] : memref<2x3x4x1x8xf32, #tpu.memory_space<vmem>>, vector<1x1x1x1x8xf32>
    %129 = vector.shape_cast %128 : vector<1x1x1x1x8xf32> to vector<1x8xf32>
    %130 = vector.broadcast %129 : vector<1x8xf32> to vector<16x8xf32>
    %131 = arith.addf %127, %130 : vector<16x8xf32>
    %c0_143 = arith.constant 0 : index
    %c1_144 = arith.constant 1 : index
    %c3_145 = arith.constant 3 : index
    %c0_146 = arith.constant 0 : index
    %c0_147 = arith.constant 0 : index
    %132 = vector.load %arg3[%c0_143, %c1_144, %c3_145, %c0_146, %c0_147] : memref<2x3x4x32x8xf32, #tpu.memory_space<vmem>>, vector<1x1x1x32x8xf32>
    %133 = vector.shape_cast %132 : vector<1x1x1x32x8xf32> to vector<32x8xf32>
    %cst_148 = arith.constant dense<0.000000e+00> : vector<16x8xf32>
    %134 = tpu.matmul %2, %133, %cst_148 {dimension_numbers = #tpu.dot_dimension_numbers<[1], [0], [0], [1], [0, 0, 1, 1], [], []>} : vector<16x32xf32>, vector<32x8xf32>, vector<16x8xf32> -> vector<16x8xf32>
    %c0_149 = arith.constant 0 : index
    %c1_150 = arith.constant 1 : index
    %c3_151 = arith.constant 3 : index
    %c0_152 = arith.constant 0 : index
    %c0_153 = arith.constant 0 : index
    %135 = vector.load %arg4[%c0_149, %c1_150, %c3_151, %c0_152, %c0_153] : memref<2x3x4x1x8xf32, #tpu.memory_space<vmem>>, vector<1x1x1x1x8xf32>
    %136 = vector.shape_cast %135 : vector<1x1x1x1x8xf32> to vector<1x8xf32>
    %137 = vector.broadcast %136 : vector<1x8xf32> to vector<16x8xf32>
    %138 = arith.addf %134, %137 : vector<16x8xf32>
    %c0_154 = arith.constant 0 : index
    %c2_155 = arith.constant 2 : index
    %c3_156 = arith.constant 3 : index
    %c0_157 = arith.constant 0 : index
    %c0_158 = arith.constant 0 : index
    %139 = vector.load %arg3[%c0_154, %c2_155, %c3_156, %c0_157, %c0_158] : memref<2x3x4x32x8xf32, #tpu.memory_space<vmem>>, vector<1x1x1x32x8xf32>
    %140 = vector.shape_cast %139 : vector<1x1x1x32x8xf32> to vector<32x8xf32>
    %cst_159 = arith.constant dense<0.000000e+00> : vector<16x8xf32>
    %141 = tpu.matmul %2, %140, %cst_159 {dimension_numbers = #tpu.dot_dimension_numbers<[1], [0], [0], [1], [0, 0, 1, 1], [], []>} : vector<16x32xf32>, vector<32x8xf32>, vector<16x8xf32> -> vector<16x8xf32>
    %c0_160 = arith.constant 0 : index
    %c2_161 = arith.constant 2 : index
    %c3_162 = arith.constant 3 : index
    %c0_163 = arith.constant 0 : index
    %c0_164 = arith.constant 0 : index
    %142 = vector.load %arg4[%c0_160, %c2_161, %c3_162, %c0_163, %c0_164] : memref<2x3x4x1x8xf32, #tpu.memory_space<vmem>>, vector<1x1x1x1x8xf32>
    %143 = vector.shape_cast %142 : vector<1x1x1x1x8xf32> to vector<1x8xf32>
    %144 = vector.broadcast %143 : vector<1x8xf32> to vector<16x8xf32>
    %145 = arith.addf %141, %144 : vector<16x8xf32>
    %cst_165 = arith.constant dense<0.000000e+00> : vector<16x16xf32>
    %146 = tpu.matmul %131, %138, %cst_165 {dimension_numbers = #tpu.dot_dimension_numbers<[1], [1], [0], [0], [0, 0, 1, 0], [], []>} : vector<16x8xf32>, vector<16x8xf32>, vector<16x16xf32> -> vector<16x16xf32>
    %cst_166 = arith.constant 0.353553385 : f32
    %147 = vector.broadcast %cst_166 : f32 to vector<16x16xf32>
    %148 = arith.mulf %146, %147 : vector<16x16xf32>
    %149 = arith.addf %148, %3 : vector<16x16xf32>
    %cst_167 = arith.constant dense<0xFF800000> : vector<16xf32>
    %150 = vector.multi_reduction <maximumf>, %149, %cst_167 [1] : vector<16x16xf32> to vector<16xf32>
    %151 = vector.shape_cast %150 : vector<16xf32> to vector<16x1xf32>
    %152 = vector.broadcast %151 : vector<16x1xf32> to vector<16x16xf32>
    %153 = arith.subf %149, %152 : vector<16x16xf32>
    %154 = math.exp %153 : vector<16x16xf32>
    %cst_168 = arith.constant dense<0.000000e+00> : vector<16xf32>
    %155 = vector.multi_reduction <add>, %154, %cst_168 [1] : vector<16x16xf32> to vector<16xf32>
    %156 = vector.shape_cast %155 : vector<16xf32> to vector<16x1xf32>
    %157 = tpu.reciprocal %156 {approx = true} : vector<16x1xf32> -> vector<16x1xf32>
    %158 = vector.broadcast %157 : vector<16x1xf32> to vector<16x16xf32>
    %159 = arith.mulf %154, %158 : vector<16x16xf32>
    %cst_169 = arith.constant dense<0.000000e+00> : vector<16x8xf32>
    %160 = tpu.matmul %159, %145, %cst_169 {dimension_numbers = #tpu.dot_dimension_numbers<[1], [0], [0], [1], [0, 0, 1, 1], [], []>} : vector<16x16xf32>, vector<16x8xf32>, vector<16x8xf32> -> vector<16x8xf32>
    %c0_170 = arith.constant 0 : index
    %c3_171 = arith.constant 3 : index
    %c0_172 = arith.constant 0 : index
    %c0_173 = arith.constant 0 : index
    %161 = vector.load %arg5[%c0_170, %c3_171, %c0_172, %c0_173] : memref<2x4x8x32xf32, #tpu.memory_space<vmem>>, vector<1x1x8x32xf32>
    %162 = vector.shape_cast %161 : vector<1x1x8x32xf32> to vector<8x32xf32>
    %cst_174 = arith.constant dense<0.000000e+00> : vector<16x32xf32>
    %163 = tpu.matmul %160, %162, %cst_174 {dimension_numbers = #tpu.dot_dimension_numbers<[1], [0], [0], [1], [0, 0, 1, 1], [], []>} : vector<16x8xf32>, vector<8x32xf32>, vector<16x32xf32> -> vector<16x32xf32>
    %164 = arith.addf %124, %163 : vector<16x32xf32>
    %c0_175 = arith.constant 0 : index
    %c0_176 = arith.constant 0 : index
    %c0_177 = arith.constant 0 : index
    %c0_178 = arith.constant 0 : index
    %165 = vector.load %arg8[%c0_175, %c0_176, %c0_177, %c0_178] : memref<2x7x1x64xf32, #tpu.memory_space<vmem>>, vector<1x1x1x64xf32>
    %166 = vector.shape_cast %165 : vector<1x1x1x64xf32> to vector<1x64xf32>
    %c0_179 = arith.constant 0 : index
    %c1_180 = arith.constant 1 : index
    %c0_181 = arith.constant 0 : index
    %c0_182 = arith.constant 0 : index
    %167 = vector.load %arg8[%c0_179, %c1_180, %c0_181, %c0_182] : memref<2x7x1x64xf32, #tpu.memory_space<vmem>>, vector<1x1x1x64xf32>
    %168 = vector.shape_cast %167 : vector<1x1x1x64xf32> to vector<1x64xf32>
    %169 = vector.extract_strided_slice %168 {offsets = [0, 0], sizes = [1, 32], strides = [1, 1]} : vector<1x64xf32> to vector<1x32xf32>
    %c0_183 = arith.constant 0 : index
    %c2_184 = arith.constant 2 : index
    %c0_185 = arith.constant 0 : index
    %c0_186 = arith.constant 0 : index
    %170 = vector.load %arg8[%c0_183, %c2_184, %c0_185, %c0_186] : memref<2x7x1x64xf32, #tpu.memory_space<vmem>>, vector<1x1x1x64xf32>
    %171 = vector.shape_cast %170 : vector<1x1x1x64xf32> to vector<1x64xf32>
    %172 = vector.extract_strided_slice %171 {offsets = [0, 0], sizes = [1, 32], strides = [1, 1]} : vector<1x64xf32> to vector<1x32xf32>
    %c0_187 = arith.constant 0 : index
    %c3_188 = arith.constant 3 : index
    %c0_189 = arith.constant 0 : index
    %c0_190 = arith.constant 0 : index
    %173 = vector.load %arg8[%c0_187, %c3_188, %c0_189, %c0_190] : memref<2x7x1x64xf32, #tpu.memory_space<vmem>>, vector<1x1x1x64xf32>
    %174 = vector.shape_cast %173 : vector<1x1x1x64xf32> to vector<1x64xf32>
    %175 = vector.extract_strided_slice %174 {offsets = [0, 0], sizes = [1, 32], strides = [1, 1]} : vector<1x64xf32> to vector<1x32xf32>
    %c0_191 = arith.constant 0 : index
    %c4 = arith.constant 4 : index
    %c0_192 = arith.constant 0 : index
    %c0_193 = arith.constant 0 : index
    %176 = vector.load %arg8[%c0_191, %c4, %c0_192, %c0_193] : memref<2x7x1x64xf32, #tpu.memory_space<vmem>>, vector<1x1x1x64xf32>
    %177 = vector.shape_cast %176 : vector<1x1x1x64xf32> to vector<1x64xf32>
    %178 = vector.extract_strided_slice %177 {offsets = [0, 0], sizes = [1, 32], strides = [1, 1]} : vector<1x64xf32> to vector<1x32xf32>
    %c0_194 = arith.constant 0 : index
    %c5 = arith.constant 5 : index
    %c0_195 = arith.constant 0 : index
    %c0_196 = arith.constant 0 : index
    %179 = vector.load %arg8[%c0_194, %c5, %c0_195, %c0_196] : memref<2x7x1x64xf32, #tpu.memory_space<vmem>>, vector<1x1x1x64xf32>
    %180 = vector.shape_cast %179 : vector<1x1x1x64xf32> to vector<1x64xf32>
    %181 = vector.extract_strided_slice %180 {offsets = [0, 0], sizes = [1, 32], strides = [1, 1]} : vector<1x64xf32> to vector<1x32xf32>
    %c0_197 = arith.constant 0 : index
    %c6 = arith.constant 6 : index
    %c0_198 = arith.constant 0 : index
    %c0_199 = arith.constant 0 : index
    %182 = vector.load %arg8[%c0_197, %c6, %c0_198, %c0_199] : memref<2x7x1x64xf32, #tpu.memory_space<vmem>>, vector<1x1x1x64xf32>
    %183 = vector.shape_cast %182 : vector<1x1x1x64xf32> to vector<1x64xf32>
    %184 = vector.extract_strided_slice %183 {offsets = [0, 0], sizes = [1, 32], strides = [1, 1]} : vector<1x64xf32> to vector<1x32xf32>
    %185 = vector.broadcast %169 : vector<1x32xf32> to vector<16x32xf32>
    %186 = arith.addf %164, %185 : vector<16x32xf32>
    %187 = arith.addf %2, %186 : vector<16x32xf32>
    %cst_200 = arith.constant dense<0.000000e+00> : vector<16xf32>
    %188 = vector.multi_reduction <add>, %187, %cst_200 [1] : vector<16x32xf32> to vector<16xf32>
    %189 = vector.shape_cast %188 : vector<16xf32> to vector<16x1xf32>
    %cst_201 = arith.constant 3.200000e+01 : f32
    %190 = vector.broadcast %cst_201 : f32 to vector<16x1xf32>
    %191 = arith.divf %189, %190 : vector<16x1xf32>
    %192 = vector.broadcast %191 : vector<16x1xf32> to vector<16x32xf32>
    %193 = arith.subf %187, %192 : vector<16x32xf32>
    %194 = arith.mulf %193, %193 : vector<16x32xf32>
    %cst_202 = arith.constant dense<0.000000e+00> : vector<16xf32>
    %195 = vector.multi_reduction <add>, %194, %cst_202 [1] : vector<16x32xf32> to vector<16xf32>
    %196 = vector.shape_cast %195 : vector<16xf32> to vector<16x1xf32>
    %cst_203 = arith.constant 3.200000e+01 : f32
    %197 = vector.broadcast %cst_203 : f32 to vector<16x1xf32>
    %198 = arith.divf %196, %197 : vector<16x1xf32>
    %199 = vector.broadcast %191 : vector<16x1xf32> to vector<16x32xf32>
    %200 = arith.subf %187, %199 : vector<16x32xf32>
    %cst_204 = arith.constant 9.99999974E-6 : f32
    %201 = vector.broadcast %cst_204 : f32 to vector<16x1xf32>
    %202 = arith.addf %198, %201 : vector<16x1xf32>
    %203 = math.rsqrt %202 : vector<16x1xf32>
    %204 = vector.broadcast %203 : vector<16x1xf32> to vector<16x32xf32>
    %205 = arith.mulf %200, %204 : vector<16x32xf32>
    %206 = vector.broadcast %175 : vector<1x32xf32> to vector<16x32xf32>
    %207 = arith.mulf %205, %206 : vector<16x32xf32>
    %208 = vector.broadcast %178 : vector<1x32xf32> to vector<16x32xf32>
    %209 = arith.addf %207, %208 : vector<16x32xf32>
    %c0_205 = arith.constant 0 : index
    %c0_206 = arith.constant 0 : index
    %c0_207 = arith.constant 0 : index
    %210 = vector.load %arg6[%c0_205, %c0_206, %c0_207] : memref<2x32x64xf32, #tpu.memory_space<vmem>>, vector<1x32x64xf32>
    %211 = vector.shape_cast %210 : vector<1x32x64xf32> to vector<32x64xf32>
    %cst_208 = arith.constant dense<0.000000e+00> : vector<16x64xf32>
    %212 = tpu.matmul %209, %211, %cst_208 {dimension_numbers = #tpu.dot_dimension_numbers<[1], [0], [0], [1], [0, 0, 1, 1], [], []>} : vector<16x32xf32>, vector<32x64xf32>, vector<16x64xf32> -> vector<16x64xf32>
    %213 = vector.broadcast %166 : vector<1x64xf32> to vector<16x64xf32>
    %214 = arith.addf %212, %213 : vector<16x64xf32>
    %cst_209 = arith.constant 0.000000e+00 : f32
    %215 = vector.broadcast %cst_209 : f32 to vector<16x64xf32>
    %216 = arith.maximumf %214, %215 : vector<16x64xf32>
    %c0_210 = arith.constant 0 : index
    %c0_211 = arith.constant 0 : index
    %c0_212 = arith.constant 0 : index
    %217 = vector.load %arg7[%c0_210, %c0_211, %c0_212] : memref<2x64x32xf32, #tpu.memory_space<vmem>>, vector<1x64x32xf32>
    %218 = vector.shape_cast %217 : vector<1x64x32xf32> to vector<64x32xf32>
    %cst_213 = arith.constant dense<0.000000e+00> : vector<16x32xf32>
    %219 = tpu.matmul %216, %218, %cst_213 {dimension_numbers = #tpu.dot_dimension_numbers<[1], [0], [0], [1], [0, 0, 1, 1], [], []>} : vector<16x64xf32>, vector<64x32xf32>, vector<16x32xf32> -> vector<16x32xf32>
    %220 = vector.broadcast %172 : vector<1x32xf32> to vector<16x32xf32>
    %221 = arith.addf %219, %220 : vector<16x32xf32>
    %222 = arith.addf %209, %221 : vector<16x32xf32>
    %cst_214 = arith.constant dense<0.000000e+00> : vector<16xf32>
    %223 = vector.multi_reduction <add>, %222, %cst_214 [1] : vector<16x32xf32> to vector<16xf32>
    %224 = vector.shape_cast %223 : vector<16xf32> to vector<16x1xf32>
    %cst_215 = arith.constant 3.200000e+01 : f32
    %225 = vector.broadcast %cst_215 : f32 to vector<16x1xf32>
    %226 = arith.divf %224, %225 : vector<16x1xf32>
    %227 = vector.broadcast %226 : vector<16x1xf32> to vector<16x32xf32>
    %228 = arith.subf %222, %227 : vector<16x32xf32>
    %229 = arith.mulf %228, %228 : vector<16x32xf32>
    %cst_216 = arith.constant dense<0.000000e+00> : vector<16xf32>
    %230 = vector.multi_reduction <add>, %229, %cst_216 [1] : vector<16x32xf32> to vector<16xf32>
    %231 = vector.shape_cast %230 : vector<16xf32> to vector<16x1xf32>
    %cst_217 = arith.constant 3.200000e+01 : f32
    %232 = vector.broadcast %cst_217 : f32 to vector<16x1xf32>
    %233 = arith.divf %231, %232 : vector<16x1xf32>
    %234 = vector.broadcast %226 : vector<16x1xf32> to vector<16x32xf32>
    %235 = arith.subf %222, %234 : vector<16x32xf32>
    %cst_218 = arith.constant 9.99999974E-6 : f32
    %236 = vector.broadcast %cst_218 : f32 to vector<16x1xf32>
    %237 = arith.addf %233, %236 : vector<16x1xf32>
    %238 = math.rsqrt %237 : vector<16x1xf32>
    %239 = vector.broadcast %238 : vector<16x1xf32> to vector<16x32xf32>
    %240 = arith.mulf %235, %239 : vector<16x32xf32>
    %241 = vector.broadcast %181 : vector<1x32xf32> to vector<16x32xf32>
    %242 = arith.mulf %240, %241 : vector<16x32xf32>
    %243 = vector.broadcast %184 : vector<1x32xf32> to vector<16x32xf32>
    %244 = arith.addf %242, %243 : vector<16x32xf32>
    %cst_219 = arith.constant 0.000000e+00 : f32
    %245 = vector.broadcast %cst_219 : f32 to vector<16x32xf32>
    %c1_220 = arith.constant 1 : index
    %c0_221 = arith.constant 0 : index
    %c0_222 = arith.constant 0 : index
    %c0_223 = arith.constant 0 : index
    %c0_224 = arith.constant 0 : index
    %246 = vector.load %arg3[%c1_220, %c0_221, %c0_222, %c0_223, %c0_224] : memref<2x3x4x32x8xf32, #tpu.memory_space<vmem>>, vector<1x1x1x32x8xf32>
    %247 = vector.shape_cast %246 : vector<1x1x1x32x8xf32> to vector<32x8xf32>
    %cst_225 = arith.constant dense<0.000000e+00> : vector<16x8xf32>
    %248 = tpu.matmul %244, %247, %cst_225 {dimension_numbers = #tpu.dot_dimension_numbers<[1], [0], [0], [1], [0, 0, 1, 1], [], []>} : vector<16x32xf32>, vector<32x8xf32>, vector<16x8xf32> -> vector<16x8xf32>
    %c1_226 = arith.constant 1 : index
    %c0_227 = arith.constant 0 : index
    %c0_228 = arith.constant 0 : index
    %c0_229 = arith.constant 0 : index
    %c0_230 = arith.constant 0 : index
    %249 = vector.load %arg4[%c1_226, %c0_227, %c0_228, %c0_229, %c0_230] : memref<2x3x4x1x8xf32, #tpu.memory_space<vmem>>, vector<1x1x1x1x8xf32>
    %250 = vector.shape_cast %249 : vector<1x1x1x1x8xf32> to vector<1x8xf32>
    %251 = vector.broadcast %250 : vector<1x8xf32> to vector<16x8xf32>
    %252 = arith.addf %248, %251 : vector<16x8xf32>
    %c1_231 = arith.constant 1 : index
    %c1_232 = arith.constant 1 : index
    %c0_233 = arith.constant 0 : index
    %c0_234 = arith.constant 0 : index
    %c0_235 = arith.constant 0 : index
    %253 = vector.load %arg3[%c1_231, %c1_232, %c0_233, %c0_234, %c0_235] : memref<2x3x4x32x8xf32, #tpu.memory_space<vmem>>, vector<1x1x1x32x8xf32>
    %254 = vector.shape_cast %253 : vector<1x1x1x32x8xf32> to vector<32x8xf32>
    %cst_236 = arith.constant dense<0.000000e+00> : vector<16x8xf32>
    %255 = tpu.matmul %244, %254, %cst_236 {dimension_numbers = #tpu.dot_dimension_numbers<[1], [0], [0], [1], [0, 0, 1, 1], [], []>} : vector<16x32xf32>, vector<32x8xf32>, vector<16x8xf32> -> vector<16x8xf32>
    %c1_237 = arith.constant 1 : index
    %c1_238 = arith.constant 1 : index
    %c0_239 = arith.constant 0 : index
    %c0_240 = arith.constant 0 : index
    %c0_241 = arith.constant 0 : index
    %256 = vector.load %arg4[%c1_237, %c1_238, %c0_239, %c0_240, %c0_241] : memref<2x3x4x1x8xf32, #tpu.memory_space<vmem>>, vector<1x1x1x1x8xf32>
    %257 = vector.shape_cast %256 : vector<1x1x1x1x8xf32> to vector<1x8xf32>
    %258 = vector.broadcast %257 : vector<1x8xf32> to vector<16x8xf32>
    %259 = arith.addf %255, %258 : vector<16x8xf32>
    %c1_242 = arith.constant 1 : index
    %c2_243 = arith.constant 2 : index
    %c0_244 = arith.constant 0 : index
    %c0_245 = arith.constant 0 : index
    %c0_246 = arith.constant 0 : index
    %260 = vector.load %arg3[%c1_242, %c2_243, %c0_244, %c0_245, %c0_246] : memref<2x3x4x32x8xf32, #tpu.memory_space<vmem>>, vector<1x1x1x32x8xf32>
    %261 = vector.shape_cast %260 : vector<1x1x1x32x8xf32> to vector<32x8xf32>
    %cst_247 = arith.constant dense<0.000000e+00> : vector<16x8xf32>
    %262 = tpu.matmul %244, %261, %cst_247 {dimension_numbers = #tpu.dot_dimension_numbers<[1], [0], [0], [1], [0, 0, 1, 1], [], []>} : vector<16x32xf32>, vector<32x8xf32>, vector<16x8xf32> -> vector<16x8xf32>
    %c1_248 = arith.constant 1 : index
    %c2_249 = arith.constant 2 : index
    %c0_250 = arith.constant 0 : index
    %c0_251 = arith.constant 0 : index
    %c0_252 = arith.constant 0 : index
    %263 = vector.load %arg4[%c1_248, %c2_249, %c0_250, %c0_251, %c0_252] : memref<2x3x4x1x8xf32, #tpu.memory_space<vmem>>, vector<1x1x1x1x8xf32>
    %264 = vector.shape_cast %263 : vector<1x1x1x1x8xf32> to vector<1x8xf32>
    %265 = vector.broadcast %264 : vector<1x8xf32> to vector<16x8xf32>
    %266 = arith.addf %262, %265 : vector<16x8xf32>
    %cst_253 = arith.constant dense<0.000000e+00> : vector<16x16xf32>
    %267 = tpu.matmul %252, %259, %cst_253 {dimension_numbers = #tpu.dot_dimension_numbers<[1], [1], [0], [0], [0, 0, 1, 0], [], []>} : vector<16x8xf32>, vector<16x8xf32>, vector<16x16xf32> -> vector<16x16xf32>
    %cst_254 = arith.constant 0.353553385 : f32
    %268 = vector.broadcast %cst_254 : f32 to vector<16x16xf32>
    %269 = arith.mulf %267, %268 : vector<16x16xf32>
    %270 = arith.addf %269, %3 : vector<16x16xf32>
    %cst_255 = arith.constant dense<0xFF800000> : vector<16xf32>
    %271 = vector.multi_reduction <maximumf>, %270, %cst_255 [1] : vector<16x16xf32> to vector<16xf32>
    %272 = vector.shape_cast %271 : vector<16xf32> to vector<16x1xf32>
    %273 = vector.broadcast %272 : vector<16x1xf32> to vector<16x16xf32>
    %274 = arith.subf %270, %273 : vector<16x16xf32>
    %275 = math.exp %274 : vector<16x16xf32>
    %cst_256 = arith.constant dense<0.000000e+00> : vector<16xf32>
    %276 = vector.multi_reduction <add>, %275, %cst_256 [1] : vector<16x16xf32> to vector<16xf32>
    %277 = vector.shape_cast %276 : vector<16xf32> to vector<16x1xf32>
    %278 = tpu.reciprocal %277 {approx = true} : vector<16x1xf32> -> vector<16x1xf32>
    %279 = vector.broadcast %278 : vector<16x1xf32> to vector<16x16xf32>
    %280 = arith.mulf %275, %279 : vector<16x16xf32>
    %cst_257 = arith.constant dense<0.000000e+00> : vector<16x8xf32>
    %281 = tpu.matmul %280, %266, %cst_257 {dimension_numbers = #tpu.dot_dimension_numbers<[1], [0], [0], [1], [0, 0, 1, 1], [], []>} : vector<16x16xf32>, vector<16x8xf32>, vector<16x8xf32> -> vector<16x8xf32>
    %c1_258 = arith.constant 1 : index
    %c0_259 = arith.constant 0 : index
    %c0_260 = arith.constant 0 : index
    %c0_261 = arith.constant 0 : index
    %282 = vector.load %arg5[%c1_258, %c0_259, %c0_260, %c0_261] : memref<2x4x8x32xf32, #tpu.memory_space<vmem>>, vector<1x1x8x32xf32>
    %283 = vector.shape_cast %282 : vector<1x1x8x32xf32> to vector<8x32xf32>
    %cst_262 = arith.constant dense<0.000000e+00> : vector<16x32xf32>
    %284 = tpu.matmul %281, %283, %cst_262 {dimension_numbers = #tpu.dot_dimension_numbers<[1], [0], [0], [1], [0, 0, 1, 1], [], []>} : vector<16x8xf32>, vector<8x32xf32>, vector<16x32xf32> -> vector<16x32xf32>
    %285 = arith.addf %245, %284 : vector<16x32xf32>
    %c1_263 = arith.constant 1 : index
    %c0_264 = arith.constant 0 : index
    %c1_265 = arith.constant 1 : index
    %c0_266 = arith.constant 0 : index
    %c0_267 = arith.constant 0 : index
    %286 = vector.load %arg3[%c1_263, %c0_264, %c1_265, %c0_266, %c0_267] : memref<2x3x4x32x8xf32, #tpu.memory_space<vmem>>, vector<1x1x1x32x8xf32>
    %287 = vector.shape_cast %286 : vector<1x1x1x32x8xf32> to vector<32x8xf32>
    %cst_268 = arith.constant dense<0.000000e+00> : vector<16x8xf32>
    %288 = tpu.matmul %244, %287, %cst_268 {dimension_numbers = #tpu.dot_dimension_numbers<[1], [0], [0], [1], [0, 0, 1, 1], [], []>} : vector<16x32xf32>, vector<32x8xf32>, vector<16x8xf32> -> vector<16x8xf32>
    %c1_269 = arith.constant 1 : index
    %c0_270 = arith.constant 0 : index
    %c1_271 = arith.constant 1 : index
    %c0_272 = arith.constant 0 : index
    %c0_273 = arith.constant 0 : index
    %289 = vector.load %arg4[%c1_269, %c0_270, %c1_271, %c0_272, %c0_273] : memref<2x3x4x1x8xf32, #tpu.memory_space<vmem>>, vector<1x1x1x1x8xf32>
    %290 = vector.shape_cast %289 : vector<1x1x1x1x8xf32> to vector<1x8xf32>
    %291 = vector.broadcast %290 : vector<1x8xf32> to vector<16x8xf32>
    %292 = arith.addf %288, %291 : vector<16x8xf32>
    %c1_274 = arith.constant 1 : index
    %c1_275 = arith.constant 1 : index
    %c1_276 = arith.constant 1 : index
    %c0_277 = arith.constant 0 : index
    %c0_278 = arith.constant 0 : index
    %293 = vector.load %arg3[%c1_274, %c1_275, %c1_276, %c0_277, %c0_278] : memref<2x3x4x32x8xf32, #tpu.memory_space<vmem>>, vector<1x1x1x32x8xf32>
    %294 = vector.shape_cast %293 : vector<1x1x1x32x8xf32> to vector<32x8xf32>
    %cst_279 = arith.constant dense<0.000000e+00> : vector<16x8xf32>
    %295 = tpu.matmul %244, %294, %cst_279 {dimension_numbers = #tpu.dot_dimension_numbers<[1], [0], [0], [1], [0, 0, 1, 1], [], []>} : vector<16x32xf32>, vector<32x8xf32>, vector<16x8xf32> -> vector<16x8xf32>
    %c1_280 = arith.constant 1 : index
    %c1_281 = arith.constant 1 : index
    %c1_282 = arith.constant 1 : index
    %c0_283 = arith.constant 0 : index
    %c0_284 = arith.constant 0 : index
    %296 = vector.load %arg4[%c1_280, %c1_281, %c1_282, %c0_283, %c0_284] : memref<2x3x4x1x8xf32, #tpu.memory_space<vmem>>, vector<1x1x1x1x8xf32>
    %297 = vector.shape_cast %296 : vector<1x1x1x1x8xf32> to vector<1x8xf32>
    %298 = vector.broadcast %297 : vector<1x8xf32> to vector<16x8xf32>
    %299 = arith.addf %295, %298 : vector<16x8xf32>
    %c1_285 = arith.constant 1 : index
    %c2_286 = arith.constant 2 : index
    %c1_287 = arith.constant 1 : index
    %c0_288 = arith.constant 0 : index
    %c0_289 = arith.constant 0 : index
    %300 = vector.load %arg3[%c1_285, %c2_286, %c1_287, %c0_288, %c0_289] : memref<2x3x4x32x8xf32, #tpu.memory_space<vmem>>, vector<1x1x1x32x8xf32>
    %301 = vector.shape_cast %300 : vector<1x1x1x32x8xf32> to vector<32x8xf32>
    %cst_290 = arith.constant dense<0.000000e+00> : vector<16x8xf32>
    %302 = tpu.matmul %244, %301, %cst_290 {dimension_numbers = #tpu.dot_dimension_numbers<[1], [0], [0], [1], [0, 0, 1, 1], [], []>} : vector<16x32xf32>, vector<32x8xf32>, vector<16x8xf32> -> vector<16x8xf32>
    %c1_291 = arith.constant 1 : index
    %c2_292 = arith.constant 2 : index
    %c1_293 = arith.constant 1 : index
    %c0_294 = arith.constant 0 : index
    %c0_295 = arith.constant 0 : index
    %303 = vector.load %arg4[%c1_291, %c2_292, %c1_293, %c0_294, %c0_295] : memref<2x3x4x1x8xf32, #tpu.memory_space<vmem>>, vector<1x1x1x1x8xf32>
    %304 = vector.shape_cast %303 : vector<1x1x1x1x8xf32> to vector<1x8xf32>
    %305 = vector.broadcast %304 : vector<1x8xf32> to vector<16x8xf32>
    %306 = arith.addf %302, %305 : vector<16x8xf32>
    %cst_296 = arith.constant dense<0.000000e+00> : vector<16x16xf32>
    %307 = tpu.matmul %292, %299, %cst_296 {dimension_numbers = #tpu.dot_dimension_numbers<[1], [1], [0], [0], [0, 0, 1, 0], [], []>} : vector<16x8xf32>, vector<16x8xf32>, vector<16x16xf32> -> vector<16x16xf32>
    %cst_297 = arith.constant 0.353553385 : f32
    %308 = vector.broadcast %cst_297 : f32 to vector<16x16xf32>
    %309 = arith.mulf %307, %308 : vector<16x16xf32>
    %310 = arith.addf %309, %3 : vector<16x16xf32>
    %cst_298 = arith.constant dense<0xFF800000> : vector<16xf32>
    %311 = vector.multi_reduction <maximumf>, %310, %cst_298 [1] : vector<16x16xf32> to vector<16xf32>
    %312 = vector.shape_cast %311 : vector<16xf32> to vector<16x1xf32>
    %313 = vector.broadcast %312 : vector<16x1xf32> to vector<16x16xf32>
    %314 = arith.subf %310, %313 : vector<16x16xf32>
    %315 = math.exp %314 : vector<16x16xf32>
    %cst_299 = arith.constant dense<0.000000e+00> : vector<16xf32>
    %316 = vector.multi_reduction <add>, %315, %cst_299 [1] : vector<16x16xf32> to vector<16xf32>
    %317 = vector.shape_cast %316 : vector<16xf32> to vector<16x1xf32>
    %318 = tpu.reciprocal %317 {approx = true} : vector<16x1xf32> -> vector<16x1xf32>
    %319 = vector.broadcast %318 : vector<16x1xf32> to vector<16x16xf32>
    %320 = arith.mulf %315, %319 : vector<16x16xf32>
    %cst_300 = arith.constant dense<0.000000e+00> : vector<16x8xf32>
    %321 = tpu.matmul %320, %306, %cst_300 {dimension_numbers = #tpu.dot_dimension_numbers<[1], [0], [0], [1], [0, 0, 1, 1], [], []>} : vector<16x16xf32>, vector<16x8xf32>, vector<16x8xf32> -> vector<16x8xf32>
    %c1_301 = arith.constant 1 : index
    %c1_302 = arith.constant 1 : index
    %c0_303 = arith.constant 0 : index
    %c0_304 = arith.constant 0 : index
    %322 = vector.load %arg5[%c1_301, %c1_302, %c0_303, %c0_304] : memref<2x4x8x32xf32, #tpu.memory_space<vmem>>, vector<1x1x8x32xf32>
    %323 = vector.shape_cast %322 : vector<1x1x8x32xf32> to vector<8x32xf32>
    %cst_305 = arith.constant dense<0.000000e+00> : vector<16x32xf32>
    %324 = tpu.matmul %321, %323, %cst_305 {dimension_numbers = #tpu.dot_dimension_numbers<[1], [0], [0], [1], [0, 0, 1, 1], [], []>} : vector<16x8xf32>, vector<8x32xf32>, vector<16x32xf32> -> vector<16x32xf32>
    %325 = arith.addf %285, %324 : vector<16x32xf32>
    %c1_306 = arith.constant 1 : index
    %c0_307 = arith.constant 0 : index
    %c2_308 = arith.constant 2 : index
    %c0_309 = arith.constant 0 : index
    %c0_310 = arith.constant 0 : index
    %326 = vector.load %arg3[%c1_306, %c0_307, %c2_308, %c0_309, %c0_310] : memref<2x3x4x32x8xf32, #tpu.memory_space<vmem>>, vector<1x1x1x32x8xf32>
    %327 = vector.shape_cast %326 : vector<1x1x1x32x8xf32> to vector<32x8xf32>
    %cst_311 = arith.constant dense<0.000000e+00> : vector<16x8xf32>
    %328 = tpu.matmul %244, %327, %cst_311 {dimension_numbers = #tpu.dot_dimension_numbers<[1], [0], [0], [1], [0, 0, 1, 1], [], []>} : vector<16x32xf32>, vector<32x8xf32>, vector<16x8xf32> -> vector<16x8xf32>
    %c1_312 = arith.constant 1 : index
    %c0_313 = arith.constant 0 : index
    %c2_314 = arith.constant 2 : index
    %c0_315 = arith.constant 0 : index
    %c0_316 = arith.constant 0 : index
    %329 = vector.load %arg4[%c1_312, %c0_313, %c2_314, %c0_315, %c0_316] : memref<2x3x4x1x8xf32, #tpu.memory_space<vmem>>, vector<1x1x1x1x8xf32>
    %330 = vector.shape_cast %329 : vector<1x1x1x1x8xf32> to vector<1x8xf32>
    %331 = vector.broadcast %330 : vector<1x8xf32> to vector<16x8xf32>
    %332 = arith.addf %328, %331 : vector<16x8xf32>
    %c1_317 = arith.constant 1 : index
    %c1_318 = arith.constant 1 : index
    %c2_319 = arith.constant 2 : index
    %c0_320 = arith.constant 0 : index
    %c0_321 = arith.constant 0 : index
    %333 = vector.load %arg3[%c1_317, %c1_318, %c2_319, %c0_320, %c0_321] : memref<2x3x4x32x8xf32, #tpu.memory_space<vmem>>, vector<1x1x1x32x8xf32>
    %334 = vector.shape_cast %333 : vector<1x1x1x32x8xf32> to vector<32x8xf32>
    %cst_322 = arith.constant dense<0.000000e+00> : vector<16x8xf32>
    %335 = tpu.matmul %244, %334, %cst_322 {dimension_numbers = #tpu.dot_dimension_numbers<[1], [0], [0], [1], [0, 0, 1, 1], [], []>} : vector<16x32xf32>, vector<32x8xf32>, vector<16x8xf32> -> vector<16x8xf32>
    %c1_323 = arith.constant 1 : index
    %c1_324 = arith.constant 1 : index
    %c2_325 = arith.constant 2 : index
    %c0_326 = arith.constant 0 : index
    %c0_327 = arith.constant 0 : index
    %336 = vector.load %arg4[%c1_323, %c1_324, %c2_325, %c0_326, %c0_327] : memref<2x3x4x1x8xf32, #tpu.memory_space<vmem>>, vector<1x1x1x1x8xf32>
    %337 = vector.shape_cast %336 : vector<1x1x1x1x8xf32> to vector<1x8xf32>
    %338 = vector.broadcast %337 : vector<1x8xf32> to vector<16x8xf32>
    %339 = arith.addf %335, %338 : vector<16x8xf32>
    %c1_328 = arith.constant 1 : index
    %c2_329 = arith.constant 2 : index
    %c2_330 = arith.constant 2 : index
    %c0_331 = arith.constant 0 : index
    %c0_332 = arith.constant 0 : index
    %340 = vector.load %arg3[%c1_328, %c2_329, %c2_330, %c0_331, %c0_332] : memref<2x3x4x32x8xf32, #tpu.memory_space<vmem>>, vector<1x1x1x32x8xf32>
    %341 = vector.shape_cast %340 : vector<1x1x1x32x8xf32> to vector<32x8xf32>
    %cst_333 = arith.constant dense<0.000000e+00> : vector<16x8xf32>
    %342 = tpu.matmul %244, %341, %cst_333 {dimension_numbers = #tpu.dot_dimension_numbers<[1], [0], [0], [1], [0, 0, 1, 1], [], []>} : vector<16x32xf32>, vector<32x8xf32>, vector<16x8xf32> -> vector<16x8xf32>
    %c1_334 = arith.constant 1 : index
    %c2_335 = arith.constant 2 : index
    %c2_336 = arith.constant 2 : index
    %c0_337 = arith.constant 0 : index
    %c0_338 = arith.constant 0 : index
    %343 = vector.load %arg4[%c1_334, %c2_335, %c2_336, %c0_337, %c0_338] : memref<2x3x4x1x8xf32, #tpu.memory_space<vmem>>, vector<1x1x1x1x8xf32>
    %344 = vector.shape_cast %343 : vector<1x1x1x1x8xf32> to vector<1x8xf32>
    %345 = vector.broadcast %344 : vector<1x8xf32> to vector<16x8xf32>
    %346 = arith.addf %342, %345 : vector<16x8xf32>
    %cst_339 = arith.constant dense<0.000000e+00> : vector<16x16xf32>
    %347 = tpu.matmul %332, %339, %cst_339 {dimension_numbers = #tpu.dot_dimension_numbers<[1], [1], [0], [0], [0, 0, 1, 0], [], []>} : vector<16x8xf32>, vector<16x8xf32>, vector<16x16xf32> -> vector<16x16xf32>
    %cst_340 = arith.constant 0.353553385 : f32
    %348 = vector.broadcast %cst_340 : f32 to vector<16x16xf32>
    %349 = arith.mulf %347, %348 : vector<16x16xf32>
    %350 = arith.addf %349, %3 : vector<16x16xf32>
    %cst_341 = arith.constant dense<0xFF800000> : vector<16xf32>
    %351 = vector.multi_reduction <maximumf>, %350, %cst_341 [1] : vector<16x16xf32> to vector<16xf32>
    %352 = vector.shape_cast %351 : vector<16xf32> to vector<16x1xf32>
    %353 = vector.broadcast %352 : vector<16x1xf32> to vector<16x16xf32>
    %354 = arith.subf %350, %353 : vector<16x16xf32>
    %355 = math.exp %354 : vector<16x16xf32>
    %cst_342 = arith.constant dense<0.000000e+00> : vector<16xf32>
    %356 = vector.multi_reduction <add>, %355, %cst_342 [1] : vector<16x16xf32> to vector<16xf32>
    %357 = vector.shape_cast %356 : vector<16xf32> to vector<16x1xf32>
    %358 = tpu.reciprocal %357 {approx = true} : vector<16x1xf32> -> vector<16x1xf32>
    %359 = vector.broadcast %358 : vector<16x1xf32> to vector<16x16xf32>
    %360 = arith.mulf %355, %359 : vector<16x16xf32>
    %cst_343 = arith.constant dense<0.000000e+00> : vector<16x8xf32>
    %361 = tpu.matmul %360, %346, %cst_343 {dimension_numbers = #tpu.dot_dimension_numbers<[1], [0], [0], [1], [0, 0, 1, 1], [], []>} : vector<16x16xf32>, vector<16x8xf32>, vector<16x8xf32> -> vector<16x8xf32>
    %c1_344 = arith.constant 1 : index
    %c2_345 = arith.constant 2 : index
    %c0_346 = arith.constant 0 : index
    %c0_347 = arith.constant 0 : index
    %362 = vector.load %arg5[%c1_344, %c2_345, %c0_346, %c0_347] : memref<2x4x8x32xf32, #tpu.memory_space<vmem>>, vector<1x1x8x32xf32>
    %363 = vector.shape_cast %362 : vector<1x1x8x32xf32> to vector<8x32xf32>
    %cst_348 = arith.constant dense<0.000000e+00> : vector<16x32xf32>
    %364 = tpu.matmul %361, %363, %cst_348 {dimension_numbers = #tpu.dot_dimension_numbers<[1], [0], [0], [1], [0, 0, 1, 1], [], []>} : vector<16x8xf32>, vector<8x32xf32>, vector<16x32xf32> -> vector<16x32xf32>
    %365 = arith.addf %325, %364 : vector<16x32xf32>
    %c1_349 = arith.constant 1 : index
    %c0_350 = arith.constant 0 : index
    %c3_351 = arith.constant 3 : index
    %c0_352 = arith.constant 0 : index
    %c0_353 = arith.constant 0 : index
    %366 = vector.load %arg3[%c1_349, %c0_350, %c3_351, %c0_352, %c0_353] : memref<2x3x4x32x8xf32, #tpu.memory_space<vmem>>, vector<1x1x1x32x8xf32>
    %367 = vector.shape_cast %366 : vector<1x1x1x32x8xf32> to vector<32x8xf32>
    %cst_354 = arith.constant dense<0.000000e+00> : vector<16x8xf32>
    %368 = tpu.matmul %244, %367, %cst_354 {dimension_numbers = #tpu.dot_dimension_numbers<[1], [0], [0], [1], [0, 0, 1, 1], [], []>} : vector<16x32xf32>, vector<32x8xf32>, vector<16x8xf32> -> vector<16x8xf32>
    %c1_355 = arith.constant 1 : index
    %c0_356 = arith.constant 0 : index
    %c3_357 = arith.constant 3 : index
    %c0_358 = arith.constant 0 : index
    %c0_359 = arith.constant 0 : index
    %369 = vector.load %arg4[%c1_355, %c0_356, %c3_357, %c0_358, %c0_359] : memref<2x3x4x1x8xf32, #tpu.memory_space<vmem>>, vector<1x1x1x1x8xf32>
    %370 = vector.shape_cast %369 : vector<1x1x1x1x8xf32> to vector<1x8xf32>
    %371 = vector.broadcast %370 : vector<1x8xf32> to vector<16x8xf32>
    %372 = arith.addf %368, %371 : vector<16x8xf32>
    %c1_360 = arith.constant 1 : index
    %c1_361 = arith.constant 1 : index
    %c3_362 = arith.constant 3 : index
    %c0_363 = arith.constant 0 : index
    %c0_364 = arith.constant 0 : index
    %373 = vector.load %arg3[%c1_360, %c1_361, %c3_362, %c0_363, %c0_364] : memref<2x3x4x32x8xf32, #tpu.memory_space<vmem>>, vector<1x1x1x32x8xf32>
    %374 = vector.shape_cast %373 : vector<1x1x1x32x8xf32> to vector<32x8xf32>
    %cst_365 = arith.constant dense<0.000000e+00> : vector<16x8xf32>
    %375 = tpu.matmul %244, %374, %cst_365 {dimension_numbers = #tpu.dot_dimension_numbers<[1], [0], [0], [1], [0, 0, 1, 1], [], []>} : vector<16x32xf32>, vector<32x8xf32>, vector<16x8xf32> -> vector<16x8xf32>
    %c1_366 = arith.constant 1 : index
    %c1_367 = arith.constant 1 : index
    %c3_368 = arith.constant 3 : index
    %c0_369 = arith.constant 0 : index
    %c0_370 = arith.constant 0 : index
    %376 = vector.load %arg4[%c1_366, %c1_367, %c3_368, %c0_369, %c0_370] : memref<2x3x4x1x8xf32, #tpu.memory_space<vmem>>, vector<1x1x1x1x8xf32>
    %377 = vector.shape_cast %376 : vector<1x1x1x1x8xf32> to vector<1x8xf32>
    %378 = vector.broadcast %377 : vector<1x8xf32> to vector<16x8xf32>
    %379 = arith.addf %375, %378 : vector<16x8xf32>
    %c1_371 = arith.constant 1 : index
    %c2_372 = arith.constant 2 : index
    %c3_373 = arith.constant 3 : index
    %c0_374 = arith.constant 0 : index
    %c0_375 = arith.constant 0 : index
    %380 = vector.load %arg3[%c1_371, %c2_372, %c3_373, %c0_374, %c0_375] : memref<2x3x4x32x8xf32, #tpu.memory_space<vmem>>, vector<1x1x1x32x8xf32>
    %381 = vector.shape_cast %380 : vector<1x1x1x32x8xf32> to vector<32x8xf32>
    %cst_376 = arith.constant dense<0.000000e+00> : vector<16x8xf32>
    %382 = tpu.matmul %244, %381, %cst_376 {dimension_numbers = #tpu.dot_dimension_numbers<[1], [0], [0], [1], [0, 0, 1, 1], [], []>} : vector<16x32xf32>, vector<32x8xf32>, vector<16x8xf32> -> vector<16x8xf32>
    %c1_377 = arith.constant 1 : index
    %c2_378 = arith.constant 2 : index
    %c3_379 = arith.constant 3 : index
    %c0_380 = arith.constant 0 : index
    %c0_381 = arith.constant 0 : index
    %383 = vector.load %arg4[%c1_377, %c2_378, %c3_379, %c0_380, %c0_381] : memref<2x3x4x1x8xf32, #tpu.memory_space<vmem>>, vector<1x1x1x1x8xf32>
    %384 = vector.shape_cast %383 : vector<1x1x1x1x8xf32> to vector<1x8xf32>
    %385 = vector.broadcast %384 : vector<1x8xf32> to vector<16x8xf32>
    %386 = arith.addf %382, %385 : vector<16x8xf32>
    %cst_382 = arith.constant dense<0.000000e+00> : vector<16x16xf32>
    %387 = tpu.matmul %372, %379, %cst_382 {dimension_numbers = #tpu.dot_dimension_numbers<[1], [1], [0], [0], [0, 0, 1, 0], [], []>} : vector<16x8xf32>, vector<16x8xf32>, vector<16x16xf32> -> vector<16x16xf32>
    %cst_383 = arith.constant 0.353553385 : f32
    %388 = vector.broadcast %cst_383 : f32 to vector<16x16xf32>
    %389 = arith.mulf %387, %388 : vector<16x16xf32>
    %390 = arith.addf %389, %3 : vector<16x16xf32>
    %cst_384 = arith.constant dense<0xFF800000> : vector<16xf32>
    %391 = vector.multi_reduction <maximumf>, %390, %cst_384 [1] : vector<16x16xf32> to vector<16xf32>
    %392 = vector.shape_cast %391 : vector<16xf32> to vector<16x1xf32>
    %393 = vector.broadcast %392 : vector<16x1xf32> to vector<16x16xf32>
    %394 = arith.subf %390, %393 : vector<16x16xf32>
    %395 = math.exp %394 : vector<16x16xf32>
    %cst_385 = arith.constant dense<0.000000e+00> : vector<16xf32>
    %396 = vector.multi_reduction <add>, %395, %cst_385 [1] : vector<16x16xf32> to vector<16xf32>
    %397 = vector.shape_cast %396 : vector<16xf32> to vector<16x1xf32>
    %398 = tpu.reciprocal %397 {approx = true} : vector<16x1xf32> -> vector<16x1xf32>
    %399 = vector.broadcast %398 : vector<16x1xf32> to vector<16x16xf32>
    %400 = arith.mulf %395, %399 : vector<16x16xf32>
    %cst_386 = arith.constant dense<0.000000e+00> : vector<16x8xf32>
    %401 = tpu.matmul %400, %386, %cst_386 {dimension_numbers = #tpu.dot_dimension_numbers<[1], [0], [0], [1], [0, 0, 1, 1], [], []>} : vector<16x16xf32>, vector<16x8xf32>, vector<16x8xf32> -> vector<16x8xf32>
    %c1_387 = arith.constant 1 : index
    %c3_388 = arith.constant 3 : index
    %c0_389 = arith.constant 0 : index
    %c0_390 = arith.constant 0 : index
    %402 = vector.load %arg5[%c1_387, %c3_388, %c0_389, %c0_390] : memref<2x4x8x32xf32, #tpu.memory_space<vmem>>, vector<1x1x8x32xf32>
    %403 = vector.shape_cast %402 : vector<1x1x8x32xf32> to vector<8x32xf32>
    %cst_391 = arith.constant dense<0.000000e+00> : vector<16x32xf32>
    %404 = tpu.matmul %401, %403, %cst_391 {dimension_numbers = #tpu.dot_dimension_numbers<[1], [0], [0], [1], [0, 0, 1, 1], [], []>} : vector<16x8xf32>, vector<8x32xf32>, vector<16x32xf32> -> vector<16x32xf32>
    %405 = arith.addf %365, %404 : vector<16x32xf32>
    %c1_392 = arith.constant 1 : index
    %c0_393 = arith.constant 0 : index
    %c0_394 = arith.constant 0 : index
    %c0_395 = arith.constant 0 : index
    %406 = vector.load %arg8[%c1_392, %c0_393, %c0_394, %c0_395] : memref<2x7x1x64xf32, #tpu.memory_space<vmem>>, vector<1x1x1x64xf32>
    %407 = vector.shape_cast %406 : vector<1x1x1x64xf32> to vector<1x64xf32>
    %c1_396 = arith.constant 1 : index
    %c1_397 = arith.constant 1 : index
    %c0_398 = arith.constant 0 : index
    %c0_399 = arith.constant 0 : index
    %408 = vector.load %arg8[%c1_396, %c1_397, %c0_398, %c0_399] : memref<2x7x1x64xf32, #tpu.memory_space<vmem>>, vector<1x1x1x64xf32>
    %409 = vector.shape_cast %408 : vector<1x1x1x64xf32> to vector<1x64xf32>
    %410 = vector.extract_strided_slice %409 {offsets = [0, 0], sizes = [1, 32], strides = [1, 1]} : vector<1x64xf32> to vector<1x32xf32>
    %c1_400 = arith.constant 1 : index
    %c2_401 = arith.constant 2 : index
    %c0_402 = arith.constant 0 : index
    %c0_403 = arith.constant 0 : index
    %411 = vector.load %arg8[%c1_400, %c2_401, %c0_402, %c0_403] : memref<2x7x1x64xf32, #tpu.memory_space<vmem>>, vector<1x1x1x64xf32>
    %412 = vector.shape_cast %411 : vector<1x1x1x64xf32> to vector<1x64xf32>
    %413 = vector.extract_strided_slice %412 {offsets = [0, 0], sizes = [1, 32], strides = [1, 1]} : vector<1x64xf32> to vector<1x32xf32>
    %c1_404 = arith.constant 1 : index
    %c3_405 = arith.constant 3 : index
    %c0_406 = arith.constant 0 : index
    %c0_407 = arith.constant 0 : index
    %414 = vector.load %arg8[%c1_404, %c3_405, %c0_406, %c0_407] : memref<2x7x1x64xf32, #tpu.memory_space<vmem>>, vector<1x1x1x64xf32>
    %415 = vector.shape_cast %414 : vector<1x1x1x64xf32> to vector<1x64xf32>
    %416 = vector.extract_strided_slice %415 {offsets = [0, 0], sizes = [1, 32], strides = [1, 1]} : vector<1x64xf32> to vector<1x32xf32>
    %c1_408 = arith.constant 1 : index
    %c4_409 = arith.constant 4 : index
    %c0_410 = arith.constant 0 : index
    %c0_411 = arith.constant 0 : index
    %417 = vector.load %arg8[%c1_408, %c4_409, %c0_410, %c0_411] : memref<2x7x1x64xf32, #tpu.memory_space<vmem>>, vector<1x1x1x64xf32>
    %418 = vector.shape_cast %417 : vector<1x1x1x64xf32> to vector<1x64xf32>
    %419 = vector.extract_strided_slice %418 {offsets = [0, 0], sizes = [1, 32], strides = [1, 1]} : vector<1x64xf32> to vector<1x32xf32>
    %c1_412 = arith.constant 1 : index
    %c5_413 = arith.constant 5 : index
    %c0_414 = arith.constant 0 : index
    %c0_415 = arith.constant 0 : index
    %420 = vector.load %arg8[%c1_412, %c5_413, %c0_414, %c0_415] : memref<2x7x1x64xf32, #tpu.memory_space<vmem>>, vector<1x1x1x64xf32>
    %421 = vector.shape_cast %420 : vector<1x1x1x64xf32> to vector<1x64xf32>
    %422 = vector.extract_strided_slice %421 {offsets = [0, 0], sizes = [1, 32], strides = [1, 1]} : vector<1x64xf32> to vector<1x32xf32>
    %c1_416 = arith.constant 1 : index
    %c6_417 = arith.constant 6 : index
    %c0_418 = arith.constant 0 : index
    %c0_419 = arith.constant 0 : index
    %423 = vector.load %arg8[%c1_416, %c6_417, %c0_418, %c0_419] : memref<2x7x1x64xf32, #tpu.memory_space<vmem>>, vector<1x1x1x64xf32>
    %424 = vector.shape_cast %423 : vector<1x1x1x64xf32> to vector<1x64xf32>
    %425 = vector.extract_strided_slice %424 {offsets = [0, 0], sizes = [1, 32], strides = [1, 1]} : vector<1x64xf32> to vector<1x32xf32>
    %426 = vector.broadcast %410 : vector<1x32xf32> to vector<16x32xf32>
    %427 = arith.addf %405, %426 : vector<16x32xf32>
    %428 = arith.addf %244, %427 : vector<16x32xf32>
    %cst_420 = arith.constant dense<0.000000e+00> : vector<16xf32>
    %429 = vector.multi_reduction <add>, %428, %cst_420 [1] : vector<16x32xf32> to vector<16xf32>
    %430 = vector.shape_cast %429 : vector<16xf32> to vector<16x1xf32>
    %cst_421 = arith.constant 3.200000e+01 : f32
    %431 = vector.broadcast %cst_421 : f32 to vector<16x1xf32>
    %432 = arith.divf %430, %431 : vector<16x1xf32>
    %433 = vector.broadcast %432 : vector<16x1xf32> to vector<16x32xf32>
    %434 = arith.subf %428, %433 : vector<16x32xf32>
    %435 = arith.mulf %434, %434 : vector<16x32xf32>
    %cst_422 = arith.constant dense<0.000000e+00> : vector<16xf32>
    %436 = vector.multi_reduction <add>, %435, %cst_422 [1] : vector<16x32xf32> to vector<16xf32>
    %437 = vector.shape_cast %436 : vector<16xf32> to vector<16x1xf32>
    %cst_423 = arith.constant 3.200000e+01 : f32
    %438 = vector.broadcast %cst_423 : f32 to vector<16x1xf32>
    %439 = arith.divf %437, %438 : vector<16x1xf32>
    %440 = vector.broadcast %432 : vector<16x1xf32> to vector<16x32xf32>
    %441 = arith.subf %428, %440 : vector<16x32xf32>
    %cst_424 = arith.constant 9.99999974E-6 : f32
    %442 = vector.broadcast %cst_424 : f32 to vector<16x1xf32>
    %443 = arith.addf %439, %442 : vector<16x1xf32>
    %444 = math.rsqrt %443 : vector<16x1xf32>
    %445 = vector.broadcast %444 : vector<16x1xf32> to vector<16x32xf32>
    %446 = arith.mulf %441, %445 : vector<16x32xf32>
    %447 = vector.broadcast %416 : vector<1x32xf32> to vector<16x32xf32>
    %448 = arith.mulf %446, %447 : vector<16x32xf32>
    %449 = vector.broadcast %419 : vector<1x32xf32> to vector<16x32xf32>
    %450 = arith.addf %448, %449 : vector<16x32xf32>
    %c1_425 = arith.constant 1 : index
    %c0_426 = arith.constant 0 : index
    %c0_427 = arith.constant 0 : index
    %451 = vector.load %arg6[%c1_425, %c0_426, %c0_427] : memref<2x32x64xf32, #tpu.memory_space<vmem>>, vector<1x32x64xf32>
    %452 = vector.shape_cast %451 : vector<1x32x64xf32> to vector<32x64xf32>
    %cst_428 = arith.constant dense<0.000000e+00> : vector<16x64xf32>
    %453 = tpu.matmul %450, %452, %cst_428 {dimension_numbers = #tpu.dot_dimension_numbers<[1], [0], [0], [1], [0, 0, 1, 1], [], []>} : vector<16x32xf32>, vector<32x64xf32>, vector<16x64xf32> -> vector<16x64xf32>
    %454 = vector.broadcast %407 : vector<1x64xf32> to vector<16x64xf32>
    %455 = arith.addf %453, %454 : vector<16x64xf32>
    %cst_429 = arith.constant 0.000000e+00 : f32
    %456 = vector.broadcast %cst_429 : f32 to vector<16x64xf32>
    %457 = arith.maximumf %455, %456 : vector<16x64xf32>
    %c1_430 = arith.constant 1 : index
    %c0_431 = arith.constant 0 : index
    %c0_432 = arith.constant 0 : index
    %458 = vector.load %arg7[%c1_430, %c0_431, %c0_432] : memref<2x64x32xf32, #tpu.memory_space<vmem>>, vector<1x64x32xf32>
    %459 = vector.shape_cast %458 : vector<1x64x32xf32> to vector<64x32xf32>
    %cst_433 = arith.constant dense<0.000000e+00> : vector<16x32xf32>
    %460 = tpu.matmul %457, %459, %cst_433 {dimension_numbers = #tpu.dot_dimension_numbers<[1], [0], [0], [1], [0, 0, 1, 1], [], []>} : vector<16x64xf32>, vector<64x32xf32>, vector<16x32xf32> -> vector<16x32xf32>
    %461 = vector.broadcast %413 : vector<1x32xf32> to vector<16x32xf32>
    %462 = arith.addf %460, %461 : vector<16x32xf32>
    %463 = arith.addf %450, %462 : vector<16x32xf32>
    %cst_434 = arith.constant dense<0.000000e+00> : vector<16xf32>
    %464 = vector.multi_reduction <add>, %463, %cst_434 [1] : vector<16x32xf32> to vector<16xf32>
    %465 = vector.shape_cast %464 : vector<16xf32> to vector<16x1xf32>
    %cst_435 = arith.constant 3.200000e+01 : f32
    %466 = vector.broadcast %cst_435 : f32 to vector<16x1xf32>
    %467 = arith.divf %465, %466 : vector<16x1xf32>
    %468 = vector.broadcast %467 : vector<16x1xf32> to vector<16x32xf32>
    %469 = arith.subf %463, %468 : vector<16x32xf32>
    %470 = arith.mulf %469, %469 : vector<16x32xf32>
    %cst_436 = arith.constant dense<0.000000e+00> : vector<16xf32>
    %471 = vector.multi_reduction <add>, %470, %cst_436 [1] : vector<16x32xf32> to vector<16xf32>
    %472 = vector.shape_cast %471 : vector<16xf32> to vector<16x1xf32>
    %cst_437 = arith.constant 3.200000e+01 : f32
    %473 = vector.broadcast %cst_437 : f32 to vector<16x1xf32>
    %474 = arith.divf %472, %473 : vector<16x1xf32>
    %475 = vector.broadcast %467 : vector<16x1xf32> to vector<16x32xf32>
    %476 = arith.subf %463, %475 : vector<16x32xf32>
    %cst_438 = arith.constant 9.99999974E-6 : f32
    %477 = vector.broadcast %cst_438 : f32 to vector<16x1xf32>
    %478 = arith.addf %474, %477 : vector<16x1xf32>
    %479 = math.rsqrt %478 : vector<16x1xf32>
    %480 = vector.broadcast %479 : vector<16x1xf32> to vector<16x32xf32>
    %481 = arith.mulf %476, %480 : vector<16x32xf32>
    %482 = vector.broadcast %422 : vector<1x32xf32> to vector<16x32xf32>
    %483 = arith.mulf %481, %482 : vector<16x32xf32>
    %484 = vector.broadcast %425 : vector<1x32xf32> to vector<16x32xf32>
    %485 = arith.addf %483, %484 : vector<16x32xf32>
    %c0_439 = arith.constant 0 : index
    %c0_440 = arith.constant 0 : index
    %486 = vector.load %arg9[%c0_439, %c0_440] : memref<40x128xf32, #tpu.memory_space<vmem>>, vector<32x128xf32>
    %c32 = arith.constant 32 : index
    %c0_441 = arith.constant 0 : index
    %487 = vector.load %arg9[%c32, %c0_441] : memref<40x128xf32, #tpu.memory_space<vmem>>, vector<1x128xf32>
    %cst_442 = arith.constant dense<0.000000e+00> : vector<16x128xf32>
    %488 = tpu.matmul %485, %486, %cst_442 {dimension_numbers = #tpu.dot_dimension_numbers<[1], [0], [0], [1], [0, 0, 1, 1], [], []>} : vector<16x32xf32>, vector<32x128xf32>, vector<16x128xf32> -> vector<16x128xf32>
    %489 = vector.broadcast %487 : vector<1x128xf32> to vector<16x128xf32>
    %490 = arith.addf %488, %489 : vector<16x128xf32>
    %c0_443 = arith.constant 0 : index
    %c0_444 = arith.constant 0 : index
    %491 = vector.load %arg10[%c0_443, %c0_444] : memref<16x128xf32, #tpu.memory_space<vmem>>, vector<16x128xf32>
    tpu.vector_store %arg10[%c0_443, %c0_444], %490 {strides = array<i32>} : memref<16x128xf32, #tpu.memory_space<vmem>>, vector<16x128xf32>,
    return
  }
}

</mosaic_0001>

<llo_original>
// kernel: eq.15
$region0: #{eq.15}
  %s0 = inlined_call_operand.vmem [shape: s32[2,8], index: 0, kind: input, shape index: {}]
  %s1 = inlined_call_operand.vmem [shape: s32[16], index: 1, kind: output, shape index: {}]
  $region1: #{eq.15} parent=0
    #allocation0 [shape = 'u8[4096]{0}', space=vmem, size = 0x1000, scoped, tag = 'scoped mem for output reshape']
    #allocation1 [shape = 'u8[4096]{0}', space=vmem, size = 0x1000, scoped, tag = 'scoped mem for input reshape']
    %s3 = sshll.u32 1, 2
    %s4 = ssub.s32 %s3, 1
    %v5 = vld [vmem:[%s0] sm:%s4]
    %6 = vst [vmem:[#allocation1] sm:%s4] %v5
    %v7 = vld [vmem:[#allocation1] sm:$0x1]
    %vm8 = vcmask 64512
    %9 = vst.msk [vmem:[#allocation0] sm:$0x1] %vm8, %v7
    %s10 = scalar_lea.vmem [#allocation1], 1
    %v11 = vld [vmem:[%s10] sm:$0x1]
    %12 = vrot.lane.b32.xlu0 %v11, 8
    %v13 = vpop.permute.xlu0 %12
    %vm14 = vcmask 130112
    %15 = vst.msk [vmem:[#allocation0] sm:$0x1] %vm14, %v13
    %s17 = sshll.u32 1, 1
    %s18 = ssub.s32 %s17, 1
    %v20 = vld [vmem:[#allocation0] sm:%s18]
    %s21 = sshll.u32 1, 1
    %s22 = ssub.s32 %s21, 1
    %23 = vst [vmem:[%s1] sm:%s22] %v20

// kernel: eq.1
$region0: #{eq.1}
  %s0 = inlined_call_operand.hbm [shape: s32[2,8], index: 0, kind: input, shape index: {}]
  %s1 = inlined_call_operand.vmem [shape: s32[16], index: 1, kind: output, shape index: {}]
  $region1: #{eq.1} parent=0
    #allocation0 [shape = 'u8[1024]{0}', space=vmem, size = 0x400, scoped, tag = 'operand span for operand 0']
    #allocation1 [shape = 's32[1]{0}', space=sflag, size = 0x4, scoped, tag = 'scoped memory for eq.1']
    #allocation2 [shape = 'u8[4096]{0}', space=vmem, size = 0x1000, scoped, tag = 'scoped mem for output reshape']
    #allocation3 [shape = 'u8[4096]{0}', space=vmem, size = 0x1000, scoped, tag = 'scoped mem for input reshape']
    %2 = vsyncpa [#allocation1], 0
    %s4 = ssub.s32 32, 32
    %5 = vsyncadd [#allocation1], %s4
    %s7 = sshll.u32 [#allocation0], 4
    %s8 = int_to_ptr.vmem [resolvable:$true] %s7
    %10 = dma.hbm_to_vmem [thread:$0]  %s0, 32, %s8, [#allocation1]
    %11 = dma.done [#allocation1], 32
    %s13 = sshll.u32 1, 2
    %s14 = ssub.s32 %s13, 1
    %v15 = vld [vmem:[#allocation0] sm:%s14]
    %16 = vst [vmem:[#allocation3] sm:%s14] %v15
    %v17 = vld [vmem:[#allocation3] sm:$0x1]
    %vm18 = vcmask 64512
    %19 = vst.msk [vmem:[#allocation2] sm:$0x1] %vm18, %v17
    %s20 = scalar_lea.vmem [#allocation3], 1
    %v21 = vld [vmem:[%s20] sm:$0x1]
    %22 = vrot.lane.b32.xlu0 %v21, 8
    %v23 = vpop.permute.xlu0 %22
    %vm24 = vcmask 130112
    %25 = vst.msk [vmem:[#allocation2] sm:$0x1] %vm24, %v23
    %s27 = sshll.u32 1, 1
    %s28 = ssub.s32 %s27, 1
    %v30 = vld [vmem:[#allocation2] sm:%s28]
    %s31 = sshll.u32 1, 1
    %s32 = ssub.s32 %s31, 1
    %33 = vst [vmem:[%s1] sm:%s32] %v30
    %34 = vsyncpa [#allocation1], 1

// kernel: model_forward.1
$region0: #{model_forward.1}
  #allocation0 [shape = 'u32[]', space=smem, size = 0x4, offset = 0x4, fixed_abs, tag = 'smem constant byte address 0x4 - core index']
  #allocation1 [shape = 'u32[144,128]{1,0:T(1,128)}', space=vmem, size = 0x12000, scoped, tag = 'internal scratch']
  %s0 = inlined_call_operand.vmem [shape: f32[16,80], index: 0, kind: input, shape index: {}]
  %s1 = inlined_call_operand.vmem [shape: f32[16,16], index: 1, kind: input, shape index: {}]
  %s2 = inlined_call_operand.vmem [shape: f32[80,32], index: 2, kind: input, shape index: {}]
  %s3 = inlined_call_operand.vmem [shape: f32[2,3,4,32,8], index: 3, kind: input, shape index: {}]
  %s4 = inlined_call_operand.vmem [shape: f32[2,3,4,1,8], index: 4, kind: input, shape index: {}]
  %s5 = inlined_call_operand.vmem [shape: f32[2,4,8,32], index: 5, kind: input, shape index: {}]
  %s6 = inlined_call_operand.vmem [shape: f32[2,32,64], index: 6, kind: input, shape index: {}]
  %s7 = inlined_call_operand.vmem [shape: f32[2,64,32], index: 7, kind: input, shape index: {}]
  %s8 = inlined_call_operand.vmem [shape: f32[2,7,1,64], index: 8, kind: input, shape index: {}]
  %s9 = inlined_call_operand.vmem [shape: f32[40,128], index: 9, kind: input, shape index: {}]
  %s10 = inlined_call_operand.vmem [shape: f32[16,128], index: 10, kind: output, shape index: {}]
  %s11 = sld [smem:[#allocation0]]
  $region50: #{model_forward.1} parent=0
    _
  %s13 = ssub.s32 1, %s11
  %s14 = scalar_select 0, %s13, %s11
  // Predicated region
  $region2: #{model_forward.1} parent=0 // pred_check
    _
  $region3: #{model_forward.1} parent=0 // pred_check_branch
    %16 = sbr.rel (0) target = $region5
  $region4: #{model_forward.1} parent=0 // pred_region
    _
  $region5: #{model_forward.1} parent=0 // pred_fallthru
    _
  // Predicated region
  $region6: #{model_forward.1} parent=0 // pred_check
    _
  $region7: #{model_forward.1} parent=0 // pred_check_branch
    %18 = sbr.rel (0) target = $region9
  $region8: #{model_forward.1} parent=0 // pred_region
    _
  $region9: #{model_forward.1} parent=0 // pred_fallthru
    _
  // Predicated region
  $region10: #{model_forward.1} parent=0 // pred_check
    _
  $region11: #{model_forward.1} parent=0 // pred_check_branch
    %20 = sbr.rel (0) target = $region13
  $region12: #{model_forward.1} parent=0 // pred_region
    _
  $region13: #{model_forward.1} parent=0 // pred_fallthru
    _
  // Predicated region
  $region14: #{model_forward.1} parent=0 // pred_check
    _
  $region15: #{model_forward.1} parent=0 // pred_check_branch
    %22 = sbr.rel (0) target = $region17
  $region16: #{model_forward.1} parent=0 // pred_region
    _
  $region17: #{model_forward.1} parent=0 // pred_fallthru
    _
  // Predicated region
  $region18: #{model_forward.1} parent=0 // pred_check
    _
  $region19: #{model_forward.1} parent=0 // pred_check_branch
    %24 = sbr.rel (0) target = $region21
  $region20: #{model_forward.1} parent=0 // pred_region
    _
  $region21: #{model_forward.1} parent=0 // pred_fallthru
    _
  // Predicated region
  $region22: #{model_forward.1} parent=0 // pred_check
    _
  $region23: #{model_forward.1} parent=0 // pred_check_branch
    %26 = sbr.rel (0) target = $region25
  $region24: #{model_forward.1} parent=0 // pred_region
    _
  $region25: #{model_forward.1} parent=0 // pred_fallthru
    _
  // Predicated region
  $region26: #{model_forward.1} parent=0 // pred_check
    _
  $region27: #{model_forward.1} parent=0 // pred_check_branch
    %28 = sbr.rel (0) target = $region29
  $region28: #{model_forward.1} parent=0 // pred_region
    _
  $region29: #{model_forward.1} parent=0 // pred_fallthru
    _
  // Predicated region
  $region30: #{model_forward.1} parent=0 // pred_check
    _
  $region31: #{model_forward.1} parent=0 // pred_check_branch
    %30 = sbr.rel (0) target = $region33
  $region32: #{model_forward.1} parent=0 // pred_region
    _
  $region33: #{model_forward.1} parent=0 // pred_fallthru
    _
  // Predicated region
  $region34: #{model_forward.1} parent=0 // pred_check
    _
  $region35: #{model_forward.1} parent=0 // pred_check_branch
    %32 = sbr.rel (0) target = $region37
  $region36: #{model_forward.1} parent=0 // pred_region
    _
  $region37: #{model_forward.1} parent=0 // pred_fallthru
    _
  // Predicated region
  $region38: #{model_forward.1} parent=0 // pred_check
    _
  $region39: #{model_forward.1} parent=0 // pred_check_branch
    %34 = sbr.rel (0) target = $region41
  $region40: #{model_forward.1} parent=0 // pred_region
    _
  $region41: #{model_forward.1} parent=0 // pred_fallthru
    _
  %v35 = vld [vmem:[%s0] sm:$0xff]
  %v36 = vld [vmem:[%s0 + $0x8] sm:$0xff]
  %v37 = vld [vmem:[%s2] sm:$0xff]
  %v38 = vld [vmem:[%s2 + $0x8] sm:$0xff]
  %v39 = vld [vmem:[%s2 + $0x10] sm:$0xff]
  %v40 = vld [vmem:[%s2 + $0x18] sm:$0xff]
  %v41 = vld [vmem:[%s2 + $0x20] sm:$0xff]
  %v42 = vld [vmem:[%s2 + $0x28] sm:$0xff]
  %v43 = vld [vmem:[%s2 + $0x30] sm:$0xff]
  %v44 = vld [vmem:[%s2 + $0x38] sm:$0xff]
  %v45 = vld [vmem:[%s2 + $0x40] sm:$0xff]
  %v46 = vld [vmem:[%s2 + $0x48] sm:$0xff]
  %vm47 = vcmask 654336
  %v49 = vsel %vm47, %v35, 0
  %v52 = vsel %vm47, %v36, 0
  %54 = vmatprep.subr.mxu0 0.0
  %55 = vmatpush1.msra.mxu0 0.0
  %56 = vmatprep.subr.mxu0 0.0
  %57 = vmatpush1.msra.mxu0 0.0
  %58 = vmatprep.subr.mxu0 0.0
  %59 = vmatpush1.msra.mxu0 0.0
  %60 = vmatprep.subr.mxu0 0.0
  %61 = vmatpush1.msra.mxu0 0.0
  %62 = vmatprep.subr.mxu0 0.0
  %63 = vmatpush1.msra.mxu0 0.0
  %64 = vmatprep.subr.mxu0 0.0
  %65 = vmatpush1.msra.mxu0 0.0
  %66 = vmatprep.subr.mxu0 0.0
  %67 = vmatpush1.msra.mxu0 %v46
  %68 = vmatprep.subr.mxu0 0.0
  %69 = vmatpush1.msra.mxu0 %v45
  %70 = vmatprep.subr.mxu0 0.0
  %71 = vmatpush1.msra.mxu0 %v44
  %72 = vmatprep.subr.mxu0 0.0
  %73 = vmatpush1.msra.mxu0 %v43
  %74 = vmatprep.subr.mxu0 0.0
  %75 = vmatpush1.msra.mxu0 %v42
  %76 = vmatprep.subr.mxu0 0.0
  %77 = vmatpush1.msra.mxu0 %v41
  %78 = vmatprep.subr.mxu0 0.0
  %79 = vmatpush1.msra.mxu0 %v40
  %80 = vmatprep.subr.mxu0 0.0
  %81 = vmatpush1.msra.mxu0 %v39
  %82 = vmatprep.subr.mxu0 0.0
  %83 = vmatpush1.msra.mxu0 %v38
  %84 = vmatprep.subr.mxu0 0.0
  %85 = vmatpush1.msra.mxu0 %v37
  %86 = vmatprep.subr.mxu0 0.0
  %87 = vmatpush2.msra.mxu0 0.0
  %88 = vmatprep.subr.mxu0 0.0
  %89 = vmatpush2.msra.mxu0 0.0
  %90 = vmatprep.subr.mxu0 0.0
  %91 = vmatpush2.msra.mxu0 0.0
  %92 = vmatprep.subr.mxu0 0.0
  %93 = vmatpush2.msra.mxu0 0.0
  %94 = vmatprep.subr.mxu0 0.0
  %95 = vmatpush2.msra.mxu0 0.0
  %96 = vmatprep.subr.mxu0 0.0
  %97 = vmatpush2.msra.mxu0 0.0
  %98 = vmatprep.subr.mxu0 0.0
  %99 = vmatpush2.msra.mxu0 0.0
  %100 = vmatprep.subr.mxu0 0.0
  %101 = vmatpush2.msra.mxu0 0.0
  %102 = vmatprep.subr.mxu0 0.0
  %103 = vmatpush2.msra.mxu0 0.0
  %104 = vmatprep.subr.mxu0 0.0
  %105 = vmatpush2.msra.mxu0 0.0
  %106 = vmatprep.subr.mxu0 0.0
  %107 = vmatpush2.msra.mxu0 0.0
  %108 = vmatprep.subr.mxu0 0.0
  %109 = vmatpush2.msra.mxu0 0.0
  %110 = vmatprep.subr.mxu0 0.0
  %111 = vmatpush2.msra.mxu0 0.0
  %112 = vmatprep.subr.mxu0 0.0
  %113 = vmatpush2.msra.mxu0 0.0
  %114 = vmatprep.subr.mxu0 0.0
  %115 = vmatpush2.msra.mxu0 0.0
  %116 = vmatprep.subr.mxu0 0.0
  %117 = vmatpush2.msra.mxu0 0.0
  %118 = vmatprep.mubr.f32.mxu0 0.0
  %119 = vmatmul.mubr.f32.gmra.mxu0 %v49
  %v120 = vpop.f32.mrf.mxu0
  %v121 = vadd.f32 0.0, %v120
  %v122 = vpop.f32.mrf.mxu0
  %123 = vmatprep.mubr.f32.mxu0 0.0
  %124 = vmatmul.mubr.f32.gmra.mxu0 %v52
  %v125 = vpop.f32.mrf.mxu0
  %v126 = vadd.f32 0.0, %v125
  %v127 = vpop.f32.mrf.mxu0
  %128 = vdwg.mxu0
  %v129 = vld [vmem:[%s1] sm:$0xff]
  %v130 = vld [vmem:[%s1 + $0x8] sm:$0xff]
  %v131 = vld [vmem:[%s3] sm:$0xff]
  %v132 = vld [vmem:[%s3 + $0x8] sm:$0xff]
  %v133 = vld [vmem:[%s3 + $0x10] sm:$0xff]
  %v134 = vld [vmem:[%s3 + $0x18] sm:$0xff]
  %v135 = vld [vmem:[%s4] sm:$0x1]
  %v137 = vlaneseq
  %v138 = vshrl.u32 %v137, 7
  %v139 = vsub.s32 0, %v138
  %v140 = vrot.slane %v135, %v139
  %vm142 = vcmask 261120
  %v144 = vsel %vm142, %v121, 0
  %v147 = vsel %vm142, %v126, 0
  %149 = vmatprep.subr.mxu0 0.0
  %150 = vmatpush1.msra.mxu0 0.0
  %151 = vmatprep.subr.mxu0 0.0
  %152 = vmatpush1.msra.mxu0 0.0
  %153 = vmatprep.subr.mxu0 0.0
  %154 = vmatpush1.msra.mxu0 0.0
  %155 = vmatprep.subr.mxu0 0.0
  %156 = vmatpush1.msra.mxu0 0.0
  %157 = vmatprep.subr.mxu0 0.0
  %158 = vmatpush1.msra.mxu0 0.0
  %159 = vmatprep.subr.mxu0 0.0
  %160 = vmatpush1.msra.mxu0 0.0
  %161 = vmatprep.subr.mxu0 0.0
  %162 = vmatpush1.msra.mxu0 0.0
  %163 = vmatprep.subr.mxu0 0.0
  %164 = vmatpush1.msra.mxu0 0.0
  %165 = vmatprep.subr.mxu0 0.0
  %166 = vmatpush1.msra.mxu0 0.0
  %167 = vmatprep.subr.mxu0 0.0
  %168 = vmatpush1.msra.mxu0 0.0
  %169 = vmatprep.subr.mxu0 0.0
  %170 = vmatpush1.msra.mxu0 0.0
  %171 = vmatprep.subr.mxu0 0.0
  %172 = vmatpush1.msra.mxu0 0.0
  %173 = vmatprep.subr.mxu0 0.0
  %174 = vmatpush1.msra.mxu0 %v134
  %175 = vmatprep.subr.mxu0 0.0
  %176 = vmatpush1.msra.mxu0 %v133
  %177 = vmatprep.subr.mxu0 0.0
  %178 = vmatpush1.msra.mxu0 %v132
  %179 = vmatprep.subr.mxu0 0.0
  %180 = vmatpush1.msra.mxu0 %v131
  %181 = vmatprep.subr.mxu0 0.0
  %182 = vmatpush2.msra.mxu0 0.0
  %183 = vmatprep.subr.mxu0 0.0
  %184 = vmatpush2.msra.mxu0 0.0
  %185 = vmatprep.subr.mxu0 0.0
  %186 = vmatpush2.msra.mxu0 0.0
  %187 = vmatprep.subr.mxu0 0.0
  %188 = vmatpush2.msra.mxu0 0.0
  %189 = vmatprep.subr.mxu0 0.0
  %190 = vmatpush2.msra.mxu0 0.0
  %191 = vmatprep.subr.mxu0 0.0
  %192 = vmatpush2.msra.mxu0 0.0
  %193 = vmatprep.subr.mxu0 0.0
  %194 = vmatpush2.msra.mxu0 0.0
  %195 = vmatprep.subr.mxu0 0.0
  %196 = vmatpush2.msra.mxu0 0.0
  %197 = vmatprep.subr.mxu0 0.0
  %198 = vmatpush2.msra.mxu0 0.0
  %199 = vmatprep.subr.mxu0 0.0
  %200 = vmatpush2.msra.mxu0 0.0
  %201 = vmatprep.subr.mxu0 0.0
  %202 = vmatpush2.msra.mxu0 0.0
  %203 = vmatprep.subr.mxu0 0.0
  %204 = vmatpush2.msra.mxu0 0.0
  %205 = vmatprep.subr.mxu0 0.0
  %206 = vmatpush2.msra.mxu0 0.0
  %207 = vmatprep.subr.mxu0 0.0
  %208 = vmatpush2.msra.mxu0 0.0
  %209 = vmatprep.subr.mxu0 0.0
  %210 = vmatpush2.msra.mxu0 0.0
  %211 = vmatprep.subr.mxu0 0.0
  %212 = vmatpush2.msra.mxu0 0.0
  %213 = vmatprep.mubr.f32.mxu0 0.0
  %214 = vmatmul.mubr.f32.gmra.mxu0 %v144
  %v215 = vpop.f32.mrf.mxu0
  %v216 = vadd.f32 %v140, %v215
  %v217 = vpop.f32.mrf.mxu0
  %218 = vmatprep.mubr.f32.mxu0 0.0
  %219 = vmatmul.mubr.f32.gmra.mxu0 %v147
  %v220 = vpop.f32.mrf.mxu0
  %v221 = vadd.f32 %v140, %v220
  %v222 = vpop.f32.mrf.mxu0
  %223 = vdwg.mxu0
  %s224 = scalar_lea.vmem %s3, 128
  %v225 = vld [vmem:[%s224] sm:$0xff]
  %v226 = vld [vmem:[%s224 + $0x8] sm:$0xff]
  %v227 = vld [vmem:[%s224 + $0x10] sm:$0xff]
  %v228 = vld [vmem:[%s224 + $0x18] sm:$0xff]
  %s229 = scalar_lea.vmem %s4, 4
  %v230 = vld [vmem:[%s229] sm:$0x1]
  %v232 = vlaneseq
  %v233 = vshrl.u32 %v232, 7
  %v234 = vsub.s32 0, %v233
  %v235 = vrot.slane %v230, %v234
  %237 = vmatprep.subr.mxu0 0.0
  %238 = vmatpush1.msra.mxu0 0.0
  %239 = vmatprep.subr.mxu0 0.0
  %240 = vmatpush1.msra.mxu0 0.0
  %241 = vmatprep.subr.mxu0 0.0
  %242 = vmatpush1.msra.mxu0 0.0
  %243 = vmatprep.subr.mxu0 0.0
  %244 = vmatpush1.msra.mxu0 0.0
  %245 = vmatprep.subr.mxu0 0.0
  %246 = vmatpush1.msra.mxu0 0.0
  %247 = vmatprep.subr.mxu0 0.0
  %248 = vmatpush1.msra.mxu0 0.0
  %249 = vmatprep.subr.mxu0 0.0
  %250 = vmatpush1.msra.mxu0 0.0
  %251 = vmatprep.subr.mxu0 0.0
  %252 = vmatpush1.msra.mxu0 0.0
  %253 = vmatprep.subr.mxu0 0.0
  %254 = vmatpush1.msra.mxu0 0.0
  %255 = vmatprep.subr.mxu0 0.0
  %256 = vmatpush1.msra.mxu0 0.0
  %257 = vmatprep.subr.mxu0 0.0
  %258 = vmatpush1.msra.mxu0 0.0
  %259 = vmatprep.subr.mxu0 0.0
  %260 = vmatpush1.msra.mxu0 0.0
  %261 = vmatprep.subr.mxu0 0.0
  %262 = vmatpush1.msra.mxu0 %v228
  %263 = vmatprep.subr.mxu0 0.0
  %264 = vmatpush1.msra.mxu0 %v227
  %265 = vmatprep.subr.mxu0 0.0
  %266 = vmatpush1.msra.mxu0 %v226
  %267 = vmatprep.subr.mxu0 0.0
  %268 = vmatpush1.msra.mxu0 %v225
  %269 = vmatprep.subr.mxu0 0.0
  %270 = vmatpush2.msra.mxu0 0.0
  %271 = vmatprep.subr.mxu0 0.0
  %272 = vmatpush2.msra.mxu0 0.0
  %273 = vmatprep.subr.mxu0 0.0
  %274 = vmatpush2.msra.mxu0 0.0
  %275 = vmatprep.subr.mxu0 0.0
  %276 = vmatpush2.msra.mxu0 0.0
  %277 = vmatprep.subr.mxu0 0.0
  %278 = vmatpush2.msra.mxu0 0.0
  %279 = vmatprep.subr.mxu0 0.0
  %280 = vmatpush2.msra.mxu0 0.0
  %281 = vmatprep.subr.mxu0 0.0
  %282 = vmatpush2.msra.mxu0 0.0
  %283 = vmatprep.subr.mxu0 0.0
  %284 = vmatpush2.msra.mxu0 0.0
  %285 = vmatprep.subr.mxu0 0.0
  %286 = vmatpush2.msra.mxu0 0.0
  %287 = vmatprep.subr.mxu0 0.0
  %288 = vmatpush2.msra.mxu0 0.0
  %289 = vmatprep.subr.mxu0 0.0
  %290 = vmatpush2.msra.mxu0 0.0
  %291 = vmatprep.subr.mxu0 0.0
  %292 = vmatpush2.msra.mxu0 0.0
  %293 = vmatprep.subr.mxu0 0.0
  %294 = vmatpush2.msra.mxu0 0.0
  %295 = vmatprep.subr.mxu0 0.0
  %296 = vmatpush2.msra.mxu0 0.0
  %297 = vmatprep.subr.mxu0 0.0
  %298 = vmatpush2.msra.mxu0 0.0
  %299 = vmatprep.subr.mxu0 0.0
  %300 = vmatpush2.msra.mxu0 0.0
  %301 = vmatprep.mubr.f32.mxu0 0.0
  %302 = vmatmul.mubr.f32.gmra.mxu0 %v144
  %v303 = vpop.f32.mrf.mxu0
  %v304 = vadd.f32 %v235, %v303
  %v305 = vpop.f32.mrf.mxu0
  %306 = vmatprep.mubr.f32.mxu0 0.0
  %307 = vmatmul.mubr.f32.gmra.mxu0 %v147
  %v308 = vpop.f32.mrf.mxu0
  %v309 = vadd.f32 %v235, %v308
  %v310 = vpop.f32.mrf.mxu0
  %311 = vdwg.mxu0
  %s312 = scalar_lea.vmem %s3, 256
  %v313 = vld [vmem:[%s312] sm:$0xff]
  %v314 = vld [vmem:[%s312 + $0x8] sm:$0xff]
  %v315 = vld [vmem:[%s312 + $0x10] sm:$0xff]
  %v316 = vld [vmem:[%s312 + $0x18] sm:$0xff]
  %s317 = scalar_lea.vmem %s4, 8
  %v318 = vld [vmem:[%s317] sm:$0x1]
  %v320 = vlaneseq
  %v321 = vshrl.u32 %v320, 7
  %v322 = vsub.s32 0, %v321
  %v323 = vrot.slane %v318, %v322
  %325 = vmatprep.subr.mxu0 0.0
  %326 = vmatpush1.msra.mxu0 0.0
  %327 = vmatprep.subr.mxu0 0.0
  %328 = vmatpush1.msra.mxu0 0.0
  %329 = vmatprep.subr.mxu0 0.0
  %330 = vmatpush1.msra.mxu0 0.0
  %331 = vmatprep.subr.mxu0 0.0
  %332 = vmatpush1.msra.mxu0 0.0
  %333 = vmatprep.subr.mxu0 0.0
  %334 = vmatpush1.msra.mxu0 0.0
  %335 = vmatprep.subr.mxu0 0.0
  %336 = vmatpush1.msra.mxu0 0.0
  %337 = vmatprep.subr.mxu0 0.0
  %338 = vmatpush1.msra.mxu0 0.0
  %339 = vmatprep.subr.mxu0 0.0
  %340 = vmatpush1.msra.mxu0 0.0
  %341 = vmatprep.subr.mxu0 0.0
  %342 = vmatpush1.msra.mxu0 0.0
  %343 = vmatprep.subr.mxu0 0.0
  %344 = vmatpush1.msra.mxu0 0.0
  %345 = vmatprep.subr.mxu0 0.0
  %346 = vmatpush1.msra.mxu0 0.0
  %347 = vmatprep.subr.mxu0 0.0
  %348 = vmatpush1.msra.mxu0 0.0
  %349 = vmatprep.subr.mxu0 0.0
  %350 = vmatpush1.msra.mxu0 %v316
  %351 = vmatprep.subr.mxu0 0.0
  %352 = vmatpush1.msra.mxu0 %v315
  %353 = vmatprep.subr.mxu0 0.0
  %354 = vmatpush1.msra.mxu0 %v314
  %355 = vmatprep.subr.mxu0 0.0
  %356 = vmatpush1.msra.mxu0 %v313
  %357 = vmatprep.subr.mxu0 0.0
  %358 = vmatpush2.msra.mxu0 0.0
  %359 = vmatprep.subr.mxu0 0.0
  %360 = vmatpush2.msra.mxu0 0.0
  %361 = vmatprep.subr.mxu0 0.0
  %362 = vmatpush2.msra.mxu0 0.0
  %363 = vmatprep.subr.mxu0 0.0
  %364 = vmatpush2.msra.mxu0 0.0
  %365 = vmatprep.subr.mxu0 0.0
  %366 = vmatpush2.msra.mxu0 0.0
  %367 = vmatprep.subr.mxu0 0.0
  %368 = vmatpush2.msra.mxu0 0.0
  %369 = vmatprep.subr.mxu0 0.0
  %370 = vmatpush2.msra.mxu0 0.0
  %371 = vmatprep.subr.mxu0 0.0
  %372 = vmatpush2.msra.mxu0 0.0
  %373 = vmatprep.subr.mxu0 0.0
  %374 = vmatpush2.msra.mxu0 0.0
  %375 = vmatprep.subr.mxu0 0.0
  %376 = vmatpush2.msra.mxu0 0.0
  %377 = vmatprep.subr.mxu0 0.0
  %378 = vmatpush2.msra.mxu0 0.0
  %379 = vmatprep.subr.mxu0 0.0
  %380 = vmatpush2.msra.mxu0 0.0
  %381 = vmatprep.subr.mxu0 0.0
  %382 = vmatpush2.msra.mxu0 0.0
  %383 = vmatprep.subr.mxu0 0.0
  %384 = vmatpush2.msra.mxu0 0.0
  %385 = vmatprep.subr.mxu0 0.0
  %386 = vmatpush2.msra.mxu0 0.0
  %387 = vmatprep.subr.mxu0 0.0
  %388 = vmatpush2.msra.mxu0 0.0
  %389 = vmatprep.mubr.f32.mxu0 0.0
  %390 = vmatmul.mubr.f32.gmra.mxu0 %v144
  %v391 = vpop.f32.mrf.mxu0
  %v392 = vadd.f32 %v323, %v391
  %v393 = vpop.f32.mrf.mxu0
  %394 = vmatprep.mubr.f32.mxu0 0.0
  %395 = vmatmul.mubr.f32.gmra.mxu0 %v147
  %v396 = vpop.f32.mrf.mxu0
  %v397 = vadd.f32 %v323, %v396
  %v398 = vpop.f32.mrf.mxu0
  %399 = vdwg.mxu0
  %vm400 = vcmask 64512
  %v402 = vsel %vm400, %v216, 0
  %v405 = vsel %vm400, %v221, 0
  %v408 = vsel %vm400, %v304, 0
  %v411 = vsel %vm400, %v309, 0
  %413 = vmatprep.subr.mxu0 0.0
  %414 = vmatpush1.xpose.msra.mxu0 0.0
  %415 = vmatprep.subr.mxu0 0.0
  %416 = vmatpush1.xpose.msra.mxu0 0.0
  %417 = vmatprep.subr.mxu0 0.0
  %418 = vmatpush1.xpose.msra.mxu0 0.0
  %419 = vmatprep.subr.mxu0 0.0
  %420 = vmatpush1.xpose.msra.mxu0 0.0
  %421 = vmatprep.subr.mxu0 0.0
  %422 = vmatpush1.xpose.msra.mxu0 0.0
  %423 = vmatprep.subr.mxu0 0.0
  %424 = vmatpush1.xpose.msra.mxu0 0.0
  %425 = vmatprep.subr.mxu0 0.0
  %426 = vmatpush1.xpose.msra.mxu0 0.0
  %427 = vmatprep.subr.mxu0 0.0
  %428 = vmatpush1.xpose.msra.mxu0 0.0
  %429 = vmatprep.subr.mxu0 0.0
  %430 = vmatpush1.xpose.msra.mxu0 0.0
  %431 = vmatprep.subr.mxu0 0.0
  %432 = vmatpush1.xpose.msra.mxu0 0.0
  %433 = vmatprep.subr.mxu0 0.0
  %434 = vmatpush1.xpose.msra.mxu0 0.0
  %435 = vmatprep.subr.mxu0 0.0
  %436 = vmatpush1.xpose.msra.mxu0 0.0
  %437 = vmatprep.subr.mxu0 0.0
  %438 = vmatpush1.xpose.msra.mxu0 0.0
  %439 = vmatprep.subr.mxu0 0.0
  %440 = vmatpush1.xpose.msra.mxu0 0.0
  %441 = vmatprep.subr.mxu0 0.0
  %442 = vmatpush1.xpose.msra.mxu0 %v411
  %443 = vmatprep.subr.mxu0 0.0
  %444 = vmatpush1.xpose.msra.mxu0 %v408
  %445 = vmatprep.subr.mxu0 0.0
  %446 = vmatpush2.xpose.msra.mxu0 0.0
  %447 = vmatprep.subr.mxu0 0.0
  %448 = vmatpush2.xpose.msra.mxu0 0.0
  %449 = vmatprep.subr.mxu0 0.0
  %450 = vmatpush2.xpose.msra.mxu0 0.0
  %451 = vmatprep.subr.mxu0 0.0
  %452 = vmatpush2.xpose.msra.mxu0 0.0
  %453 = vmatprep.subr.mxu0 0.0
  %454 = vmatpush2.xpose.msra.mxu0 0.0
  %455 = vmatprep.subr.mxu0 0.0
  %456 = vmatpush2.xpose.msra.mxu0 0.0
  %457 = vmatprep.subr.mxu0 0.0
  %458 = vmatpush2.xpose.msra.mxu0 0.0
  %459 = vmatprep.subr.mxu0 0.0
  %460 = vmatpush2.xpose.msra.mxu0 0.0
  %461 = vmatprep.subr.mxu0 0.0
  %462 = vmatpush2.xpose.msra.mxu0 0.0
  %463 = vmatprep.subr.mxu0 0.0
  %464 = vmatpush2.xpose.msra.mxu0 0.0
  %465 = vmatprep.subr.mxu0 0.0
  %466 = vmatpush2.xpose.msra.mxu0 0.0
  %467 = vmatprep.subr.mxu0 0.0
  %468 = vmatpush2.xpose.msra.mxu0 0.0
  %469 = vmatprep.subr.mxu0 0.0
  %470 = vmatpush2.xpose.msra.mxu0 0.0
  %471 = vmatprep.subr.mxu0 0.0
  %472 = vmatpush2.xpose.msra.mxu0 0.0
  %473 = vmatprep.subr.mxu0 0.0
  %474 = vmatpush2.xpose.msra.mxu0 0.0
  %475 = vmatprep.subr.mxu0 0.0
  %476 = vmatpush2.xpose.msra.mxu0 0.0
  %477 = vmatprep.mubr.f32.mxu0 0.0
  %478 = vmatmul.mubr.f32.gmra.mxu0 %v402
  %v479 = vpop.f32.mrf.mxu0
  %v480 = vadd.f32 0.0, %v479
  %v481 = vpop.f32.mrf.mxu0
  %482 = vmatprep.mubr.f32.mxu0 0.0
  %483 = vmatmul.mubr.f32.gmra.mxu0 %v405
  %v484 = vpop.f32.mrf.mxu0
  %v485 = vadd.f32 0.0, %v484
  %v486 = vpop.f32.mrf.mxu0
  %487 = vdwg.mxu0
  %v488 = vmul.f32 %v480, 0.35355338
  %v489 = vmul.f32 %v485, 0.35355338
  %v490 = vadd.f32 %v488, %v129
  %v491 = vadd.f32 %v489, %v130
  %vm492 = vcmask 130048
  %v493 = vsel %vm492, %v490, -inf
  %494 = vmax.xlane.f32.xlu0 %v493
  %v495 = vpop.xlane.xlu0 %494
  %v496 = vsel %vm492, %v491, -inf
  %497 = vmax.xlane.f32.xlu0 %v496
  %v498 = vpop.xlane.xlu0 %497
  %v499 = vsub.f32 %v490, %v495
  %v500 = vsub.f32 %v491, %v498
  %v501 = vmul.f32 %v499, 1.442695
  %v502 = vpow.pop %v501
  %v503 = vmul.f32 %v500, 1.442695
  %v504 = vpow.pop %v503
  %v505 = vsel %vm492, %v502, 0.0
  %506 = vadd.xlane.f32.xlu0 %v505
  %v507 = vpop.xlane.xlu0 %506
  %v508 = vsel %vm492, %v504, 0.0
  %509 = vadd.xlane.f32.xlu0 %v508
  %v510 = vpop.xlane.xlu0 %509
  %v511 = vrcp.pop %v507
  %v512 = vrcp.pop %v510
  %v513 = vmul.f32 %v502, %v511
  %v514 = vmul.f32 %v504, %v512
  %v516 = vsel %vm492, %v513, 0
  %v519 = vsel %vm492, %v514, 0
  %521 = vmatprep.subr.mxu0 0.0
  %522 = vmatpush1.msra.mxu0 0.0
  %523 = vmatprep.subr.mxu0 0.0
  %524 = vmatpush1.msra.mxu0 0.0
  %525 = vmatprep.subr.mxu0 0.0
  %526 = vmatpush1.msra.mxu0 0.0
  %527 = vmatprep.subr.mxu0 0.0
  %528 = vmatpush1.msra.mxu0 0.0
  %529 = vmatprep.subr.mxu0 0.0
  %530 = vmatpush1.msra.mxu0 0.0
  %531 = vmatprep.subr.mxu0 0.0
  %532 = vmatpush1.msra.mxu0 0.0
  %533 = vmatprep.subr.mxu0 0.0
  %534 = vmatpush1.msra.mxu0 0.0
  %535 = vmatprep.subr.mxu0 0.0
  %536 = vmatpush1.msra.mxu0 0.0
  %537 = vmatprep.subr.mxu0 0.0
  %538 = vmatpush1.msra.mxu0 0.0
  %539 = vmatprep.subr.mxu0 0.0
  %540 = vmatpush1.msra.mxu0 0.0
  %541 = vmatprep.subr.mxu0 0.0
  %542 = vmatpush1.msra.mxu0 0.0
  %543 = vmatprep.subr.mxu0 0.0
  %544 = vmatpush1.msra.mxu0 0.0
  %545 = vmatprep.subr.mxu0 0.0
  %546 = vmatpush1.msra.mxu0 0.0
  %547 = vmatprep.subr.mxu0 0.0
  %548 = vmatpush1.msra.mxu0 0.0
  %549 = vmatprep.subr.mxu0 0.0
  %550 = vmatpush1.msra.mxu0 %v397
  %551 = vmatprep.subr.mxu0 0.0
  %552 = vmatpush1.msra.mxu0 %v392
  %553 = vmatprep.subr.mxu0 0.0
  %554 = vmatpush2.msra.mxu0 0.0
  %555 = vmatprep.subr.mxu0 0.0
  %556 = vmatpush2.msra.mxu0 0.0
  %557 = vmatprep.subr.mxu0 0.0
  %558 = vmatpush2.msra.mxu0 0.0
  %559 = vmatprep.subr.mxu0 0.0
  %560 = vmatpush2.msra.mxu0 0.0
  %561 = vmatprep.subr.mxu0 0.0
  %562 = vmatpush2.msra.mxu0 0.0
  %563 = vmatprep.subr.mxu0 0.0
  %564 = vmatpush2.msra.mxu0 0.0
  %565 = vmatprep.subr.mxu0 0.0
  %566 = vmatpush2.msra.mxu0 0.0
  %567 = vmatprep.subr.mxu0 0.0
  %568 = vmatpush2.msra.mxu0 0.0
  %569 = vmatprep.subr.mxu0 0.0
  %570 = vmatpush2.msra.mxu0 0.0
  %571 = vmatprep.subr.mxu0 0.0
  %572 = vmatpush2.msra.mxu0 0.0
  %573 = vmatprep.subr.mxu0 0.0
  %574 = vmatpush2.msra.mxu0 0.0
  %575 = vmatprep.subr.mxu0 0.0
  %576 = vmatpush2.msra.mxu0 0.0
  %577 = vmatprep.subr.mxu0 0.0
  %578 = vmatpush2.msra.mxu0 0.0
  %579 = vmatprep.subr.mxu0 0.0
  %580 = vmatpush2.msra.mxu0 0.0
  %581 = vmatprep.subr.mxu0 0.0
  %582 = vmatpush2.msra.mxu0 0.0
  %583 = vmatprep.subr.mxu0 0.0
  %584 = vmatpush2.msra.mxu0 0.0
  %585 = vmatprep.mubr.f32.mxu0 0.0
  %586 = vmatmul.mubr.f32.gmra.mxu0 %v516
  %v587 = vpop.f32.mrf.mxu0
  %v588 = vadd.f32 0.0, %v587
  %v589 = vpop.f32.mrf.mxu0
  %590 = vmatprep.mubr.f32.mxu0 0.0
  %591 = vmatmul.mubr.f32.gmra.mxu0 %v519
  %v592 = vpop.f32.mrf.mxu0
  %v593 = vadd.f32 0.0, %v592
  %v594 = vpop.f32.mrf.mxu0
  %595 = vdwg.mxu0
  %v596 = vld [vmem:[%s5] sm:$0xff]
  %s597 = scalar_lea.vmem %s3, 32
  %v598 = vld [vmem:[%s597] sm:$0xff]
  %v599 = vld [vmem:[%s597 + $0x8] sm:$0xff]
  %v600 = vld [vmem:[%s597 + $0x10] sm:$0xff]
  %v601 = vld [vmem:[%s597 + $0x18] sm:$0xff]
  %s602 = scalar_lea.vmem %s4, 1
  %v603 = vld [vmem:[%s602] sm:$0x1]
  %v605 = vlaneseq
  %v606 = vshrl.u32 %v605, 7
  %v607 = vsub.s32 0, %v606
  %v608 = vrot.slane %v603, %v607
  %610 = vmatprep.subr.mxu0 0.0
  %611 = vmatpush1.msra.mxu0 0.0
  %612 = vmatprep.subr.mxu0 0.0
  %613 = vmatpush1.msra.mxu0 0.0
  %614 = vmatprep.subr.mxu0 0.0
  %615 = vmatpush1.msra.mxu0 0.0
  %616 = vmatprep.subr.mxu0 0.0
  %617 = vmatpush1.msra.mxu0 0.0
  %618 = vmatprep.subr.mxu0 0.0
  %619 = vmatpush1.msra.mxu0 0.0
  %620 = vmatprep.subr.mxu0 0.0
  %621 = vmatpush1.msra.mxu0 0.0
  %622 = vmatprep.subr.mxu0 0.0
  %623 = vmatpush1.msra.mxu0 0.0
  %624 = vmatprep.subr.mxu0 0.0
  %625 = vmatpush1.msra.mxu0 0.0
  %626 = vmatprep.subr.mxu0 0.0
  %627 = vmatpush1.msra.mxu0 0.0
  %628 = vmatprep.subr.mxu0 0.0
  %629 = vmatpush1.msra.mxu0 0.0
  %630 = vmatprep.subr.mxu0 0.0
  %631 = vmatpush1.msra.mxu0 0.0
  %632 = vmatprep.subr.mxu0 0.0
  %633 = vmatpush1.msra.mxu0 0.0
  %634 = vmatprep.subr.mxu0 0.0
  %635 = vmatpush1.msra.mxu0 %v601
  %636 = vmatprep.subr.mxu0 0.0
  %637 = vmatpush1.msra.mxu0 %v600
  %638 = vmatprep.subr.mxu0 0.0
  %639 = vmatpush1.msra.mxu0 %v599
  %640 = vmatprep.subr.mxu0 0.0
  %641 = vmatpush1.msra.mxu0 %v598
  %642 = vmatprep.subr.mxu0 0.0
  %643 = vmatpush2.msra.mxu0 0.0
  %644 = vmatprep.subr.mxu0 0.0
  %645 = vmatpush2.msra.mxu0 0.0
  %646 = vmatprep.subr.mxu0 0.0
  %647 = vmatpush2.msra.mxu0 0.0
  %648 = vmatprep.subr.mxu0 0.0
  %649 = vmatpush2.msra.mxu0 0.0
  %650 = vmatprep.subr.mxu0 0.0
  %651 = vmatpush2.msra.mxu0 0.0
  %652 = vmatprep.subr.mxu0 0.0
  %653 = vmatpush2.msra.mxu0 0.0
  %654 = vmatprep.subr.mxu0 0.0
  %655 = vmatpush2.msra.mxu0 0.0
  %656 = vmatprep.subr.mxu0 0.0
  %657 = vmatpush2.msra.mxu0 0.0
  %658 = vmatprep.subr.mxu0 0.0
  %659 = vmatpush2.msra.mxu0 0.0
  %660 = vmatprep.subr.mxu0 0.0
  %661 = vmatpush2.msra.mxu0 0.0
  %662 = vmatprep.subr.mxu0 0.0
  %663 = vmatpush2.msra.mxu0 0.0
  %664 = vmatprep.subr.mxu0 0.0
  %665 = vmatpush2.msra.mxu0 0.0
  %666 = vmatprep.subr.mxu0 0.0
  %667 = vmatpush2.msra.mxu0 0.0
  %668 = vmatprep.subr.mxu0 0.0
  %669 = vmatpush2.msra.mxu0 0.0
  %670 = vmatprep.subr.mxu0 0.0
  %671 = vmatpush2.msra.mxu0 0.0
  %672 = vmatprep.subr.mxu0 0.0
  %673 = vmatpush2.msra.mxu0 0.0
  %674 = vmatprep.mubr.f32.mxu0 0.0
  %675 = vmatmul.mubr.f32.gmra.mxu0 %v144
  %v676 = vpop.f32.mrf.mxu0
  %v677 = vadd.f32 %v608, %v676
  %v678 = vpop.f32.mrf.mxu0
  %679 = vmatprep.mubr.f32.mxu0 0.0
  %680 = vmatmul.mubr.f32.gmra.mxu0 %v147
  %v681 = vpop.f32.mrf.mxu0
  %v682 = vadd.f32 %v608, %v681
  %v683 = vpop.f32.mrf.mxu0
  %684 = vdwg.mxu0
  %s685 = scalar_lea.vmem %s3, 160
  %v686 = vld [vmem:[%s685] sm:$0xff]
  %v687 = vld [vmem:[%s685 + $0x8] sm:$0xff]
  %v688 = vld [vmem:[%s685 + $0x10] sm:$0xff]
  %v689 = vld [vmem:[%s685 + $0x18] sm:$0xff]
  %s690 = scalar_lea.vmem %s4, 5
  %v691 = vld [vmem:[%s690] sm:$0x1]
  %v693 = vlaneseq
  %v694 = vshrl.u32 %v693, 7
  %v695 = vsub.s32 0, %v694
  %v696 = vrot.slane %v691, %v695
  %698 = vmatprep.subr.mxu0 0.0
  %699 = vmatpush1.msra.mxu0 0.0
  %700 = vmatprep.subr.mxu0 0.0
  %701 = vmatpush1.msra.mxu0 0.0
  %702 = vmatprep.subr.mxu0 0.0
  %703 = vmatpush1.msra.mxu0 0.0
  %704 = vmatprep.subr.mxu0 0.0
  %705 = vmatpush1.msra.mxu0 0.0
  %706 = vmatprep.subr.mxu0 0.0
  %707 = vmatpush1.msra.mxu0 0.0
  %708 = vmatprep.subr.mxu0 0.0
  %709 = vmatpush1.msra.mxu0 0.0
  %710 = vmatprep.subr.mxu0 0.0
  %711 = vmatpush1.msra.mxu0 0.0
  %712 = vmatprep.subr.mxu0 0.0
  %713 = vmatpush1.msra.mxu0 0.0
  %714 = vmatprep.subr.mxu0 0.0
  %715 = vmatpush1.msra.mxu0 0.0
  %716 = vmatprep.subr.mxu0 0.0
  %717 = vmatpush1.msra.mxu0 0.0
  %718 = vmatprep.subr.mxu0 0.0
  %719 = vmatpush1.msra.mxu0 0.0
  %720 = vmatprep.subr.mxu0 0.0
  %721 = vmatpush1.msra.mxu0 0.0
  %722 = vmatprep.subr.mxu0 0.0
  %723 = vmatpush1.msra.mxu0 %v689
  %724 = vmatprep.subr.mxu0 0.0
  %725 = vmatpush1.msra.mxu0 %v688
  %726 = vmatprep.subr.mxu0 0.0
  %727 = vmatpush1.msra.mxu0 %v687
  %728 = vmatprep.subr.mxu0 0.0
  %729 = vmatpush1.msra.mxu0 %v686
  %730 = vmatprep.subr.mxu0 0.0
  %731 = vmatpush2.msra.mxu0 0.0
  %732 = vmatprep.subr.mxu0 0.0
  %733 = vmatpush2.msra.mxu0 0.0
  %734 = vmatprep.subr.mxu0 0.0
  %735 = vmatpush2.msra.mxu0 0.0
  %736 = vmatprep.subr.mxu0 0.0
  %737 = vmatpush2.msra.mxu0 0.0
  %738 = vmatprep.subr.mxu0 0.0
  %739 = vmatpush2.msra.mxu0 0.0
  %740 = vmatprep.subr.mxu0 0.0
  %741 = vmatpush2.msra.mxu0 0.0
  %742 = vmatprep.subr.mxu0 0.0
  %743 = vmatpush2.msra.mxu0 0.0
  %744 = vmatprep.subr.mxu0 0.0
  %745 = vmatpush2.msra.mxu0 0.0
  %746 = vmatprep.subr.mxu0 0.0
  %747 = vmatpush2.msra.mxu0 0.0
  %748 = vmatprep.subr.mxu0 0.0
  %749 = vmatpush2.msra.mxu0 0.0
  %750 = vmatprep.subr.mxu0 0.0
  %751 = vmatpush2.msra.mxu0 0.0
  %752 = vmatprep.subr.mxu0 0.0
  %753 = vmatpush2.msra.mxu0 0.0
  %754 = vmatprep.subr.mxu0 0.0
  %755 = vmatpush2.msra.mxu0 0.0
  %756 = vmatprep.subr.mxu0 0.0
  %757 = vmatpush2.msra.mxu0 0.0
  %758 = vmatprep.subr.mxu0 0.0
  %759 = vmatpush2.msra.mxu0 0.0
  %760 = vmatprep.subr.mxu0 0.0
  %761 = vmatpush2.msra.mxu0 0.0
  %762 = vmatprep.mubr.f32.mxu0 0.0
  %763 = vmatmul.mubr.f32.gmra.mxu0 %v144
  %v764 = vpop.f32.mrf.mxu0
  %v765 = vadd.f32 %v696, %v764
  %v766 = vpop.f32.mrf.mxu0
  %767 = vmatprep.mubr.f32.mxu0 0.0
  %768 = vmatmul.mubr.f32.gmra.mxu0 %v147
  %v769 = vpop.f32.mrf.mxu0
  %v770 = vadd.f32 %v696, %v769
  %v771 = vpop.f32.mrf.mxu0
  %772 = vdwg.mxu0
  %s773 = scalar_lea.vmem %s3, 288
  %v774 = vld [vmem:[%s773] sm:$0xff]
  %v775 = vld [vmem:[%s773 + $0x8] sm:$0xff]
  %v776 = vld [vmem:[%s773 + $0x10] sm:$0xff]
  %v777 = vld [vmem:[%s773 + $0x18] sm:$0xff]
  %s778 = scalar_lea.vmem %s4, 9
  %v779 = vld [vmem:[%s778] sm:$0x1]
  %v781 = vlaneseq
  %v782 = vshrl.u32 %v781, 7
  %v783 = vsub.s32 0, %v782
  %v784 = vrot.slane %v779, %v783
  %786 = vmatprep.subr.mxu0 0.0
  %787 = vmatpush1.msra.mxu0 0.0
  %788 = vmatprep.subr.mxu0 0.0
  %789 = vmatpush1.msra.mxu0 0.0
  %790 = vmatprep.subr.mxu0 0.0
  %791 = vmatpush1.msra.mxu0 0.0
  %792 = vmatprep.subr.mxu0 0.0
  %793 = vmatpush1.msra.mxu0 0.0
  %794 = vmatprep.subr.mxu0 0.0
  %795 = vmatpush1.msra.mxu0 0.0
  %796 = vmatprep.subr.mxu0 0.0
  %797 = vmatpush1.msra.mxu0 0.0
  %798 = vmatprep.subr.mxu0 0.0
  %799 = vmatpush1.msra.mxu0 0.0
  %800 = vmatprep.subr.mxu0 0.0
  %801 = vmatpush1.msra.mxu0 0.0
  %802 = vmatprep.subr.mxu0 0.0
  %803 = vmatpush1.msra.mxu0 0.0
  %804 = vmatprep.subr.mxu0 0.0
  %805 = vmatpush1.msra.mxu0 0.0
  %806 = vmatprep.subr.mxu0 0.0
  %807 = vmatpush1.msra.mxu0 0.0
  %808 = vmatprep.subr.mxu0 0.0
  %809 = vmatpush1.msra.mxu0 0.0
  %810 = vmatprep.subr.mxu0 0.0
  %811 = vmatpush1.msra.mxu0 %v777
  %812 = vmatprep.subr.mxu0 0.0
  %813 = vmatpush1.msra.mxu0 %v776
  %814 = vmatprep.subr.mxu0 0.0
  %815 = vmatpush1.msra.mxu0 %v775
  %816 = vmatprep.subr.mxu0 0.0
  %817 = vmatpush1.msra.mxu0 %v774
  %818 = vmatprep.subr.mxu0 0.0
  %819 = vmatpush2.msra.mxu0 0.0
  %820 = vmatprep.subr.mxu0 0.0
  %821 = vmatpush2.msra.mxu0 0.0
  %822 = vmatprep.subr.mxu0 0.0
  %823 = vmatpush2.msra.mxu0 0.0
  %824 = vmatprep.subr.mxu0 0.0
  %825 = vmatpush2.msra.mxu0 0.0
  %826 = vmatprep.subr.mxu0 0.0
  %827 = vmatpush2.msra.mxu0 0.0
  %828 = vmatprep.subr.mxu0 0.0
  %829 = vmatpush2.msra.mxu0 0.0
  %830 = vmatprep.subr.mxu0 0.0
  %831 = vmatpush2.msra.mxu0 0.0
  %832 = vmatprep.subr.mxu0 0.0
  %833 = vmatpush2.msra.mxu0 0.0
  %834 = vmatprep.subr.mxu0 0.0
  %835 = vmatpush2.msra.mxu0 0.0
  %836 = vmatprep.subr.mxu0 0.0
  %837 = vmatpush2.msra.mxu0 0.0
  %838 = vmatprep.subr.mxu0 0.0
  %839 = vmatpush2.msra.mxu0 0.0
  %840 = vmatprep.subr.mxu0 0.0
  %841 = vmatpush2.msra.mxu0 0.0
  %842 = vmatprep.subr.mxu0 0.0
  %843 = vmatpush2.msra.mxu0 0.0
  %844 = vmatprep.subr.mxu0 0.0
  %845 = vmatpush2.msra.mxu0 0.0
  %846 = vmatprep.subr.mxu0 0.0
  %847 = vmatpush2.msra.mxu0 0.0
  %848 = vmatprep.subr.mxu0 0.0
  %849 = vmatpush2.msra.mxu0 0.0
  %850 = vmatprep.mubr.f32.mxu0 0.0
  %851 = vmatmul.mubr.f32.gmra.mxu0 %v144
  %v852 = vpop.f32.mrf.mxu0
  %v853 = vadd.f32 %v784, %v852
  %v854 = vpop.f32.mrf.mxu0
  %855 = vmatprep.mubr.f32.mxu0 0.0
  %856 = vmatmul.mubr.f32.gmra.mxu0 %v147
  %v857 = vpop.f32.mrf.mxu0
  %v858 = vadd.f32 %v784, %v857
  %v859 = vpop.f32.mrf.mxu0
  %860 = vdwg.mxu0
  %v862 = vsel %vm400, %v677, 0
  %v865 = vsel %vm400, %v682, 0
  %v868 = vsel %vm400, %v765, 0
  %v871 = vsel %vm400, %v770, 0
  %873 = vmatprep.subr.mxu0 0.0
  %874 = vmatpush1.xpose.msra.mxu0 0.0
  %875 = vmatprep.subr.mxu0 0.0
  %876 = vmatpush1.xpose.msra.mxu0 0.0
  %877 = vmatprep.subr.mxu0 0.0
  %878 = vmatpush1.xpose.msra.mxu0 0.0
  %879 = vmatprep.subr.mxu0 0.0
  %880 = vmatpush1.xpose.msra.mxu0 0.0
  %881 = vmatprep.subr.mxu0 0.0
  %882 = vmatpush1.xpose.msra.mxu0 0.0
  %883 = vmatprep.subr.mxu0 0.0
  %884 = vmatpush1.xpose.msra.mxu0 0.0
  %885 = vmatprep.subr.mxu0 0.0
  %886 = vmatpush1.xpose.msra.mxu0 0.0
  %887 = vmatprep.subr.mxu0 0.0
  %888 = vmatpush1.xpose.msra.mxu0 0.0
  %889 = vmatprep.subr.mxu0 0.0
  %890 = vmatpush1.xpose.msra.mxu0 0.0
  %891 = vmatprep.subr.mxu0 0.0
  %892 = vmatpush1.xpose.msra.mxu0 0.0
  %893 = vmatprep.subr.mxu0 0.0
  %894 = vmatpush1.xpose.msra.mxu0 0.0
  %895 = vmatprep.subr.mxu0 0.0
  %896 = vmatpush1.xpose.msra.mxu0 0.0
  %897 = vmatprep.subr.mxu0 0.0
  %898 = vmatpush1.xpose.msra.mxu0 0.0
  %899 = vmatprep.subr.mxu0 0.0
  %900 = vmatpush1.xpose.msra.mxu0 0.0
  %901 = vmatprep.subr.mxu0 0.0
  %902 = vmatpush1.xpose.msra.mxu0 %v871
  %903 = vmatprep.subr.mxu0 0.0
  %904 = vmatpush1.xpose.msra.mxu0 %v868
  %905 = vmatprep.subr.mxu0 0.0
  %906 = vmatpush2.xpose.msra.mxu0 0.0
  %907 = vmatprep.subr.mxu0 0.0
  %908 = vmatpush2.xpose.msra.mxu0 0.0
  %909 = vmatprep.subr.mxu0 0.0
  %910 = vmatpush2.xpose.msra.mxu0 0.0
  %911 = vmatprep.subr.mxu0 0.0
  %912 = vmatpush2.xpose.msra.mxu0 0.0
  %913 = vmatprep.subr.mxu0 0.0
  %914 = vmatpush2.xpose.msra.mxu0 0.0
  %915 = vmatprep.subr.mxu0 0.0
  %916 = vmatpush2.xpose.msra.mxu0 0.0
  %917 = vmatprep.subr.mxu0 0.0
  %918 = vmatpush2.xpose.msra.mxu0 0.0
  %919 = vmatprep.subr.mxu0 0.0
  %920 = vmatpush2.xpose.msra.mxu0 0.0
  %921 = vmatprep.subr.mxu0 0.0
  %922 = vmatpush2.xpose.msra.mxu0 0.0
  %923 = vmatprep.subr.mxu0 0.0
  %924 = vmatpush2.xpose.msra.mxu0 0.0
  %925 = vmatprep.subr.mxu0 0.0
  %926 = vmatpush2.xpose.msra.mxu0 0.0
  %927 = vmatprep.subr.mxu0 0.0
  %928 = vmatpush2.xpose.msra.mxu0 0.0
  %929 = vmatprep.subr.mxu0 0.0
  %930 = vmatpush2.xpose.msra.mxu0 0.0
  %931 = vmatprep.subr.mxu0 0.0
  %932 = vmatpush2.xpose.msra.mxu0 0.0
  %933 = vmatprep.subr.mxu0 0.0
  %934 = vmatpush2.xpose.msra.mxu0 0.0
  %935 = vmatprep.subr.mxu0 0.0
  %936 = vmatpush2.xpose.msra.mxu0 0.0
  %937 = vmatprep.mubr.f32.mxu0 0.0
  %938 = vmatmul.mubr.f32.gmra.mxu0 %v862
  %v939 = vpop.f32.mrf.mxu0
  %v940 = vadd.f32 0.0, %v939
  %v941 = vpop.f32.mrf.mxu0
  %942 = vmatprep.mubr.f32.mxu0 0.0
  %943 = vmatmul.mubr.f32.gmra.mxu0 %v865
  %v944 = vpop.f32.mrf.mxu0
  %v945 = vadd.f32 0.0, %v944
  %v946 = vpop.f32.mrf.mxu0
  %947 = vdwg.mxu0
  %v948 = vmul.f32 %v940, 0.35355338
  %v949 = vmul.f32 %v945, 0.35355338
  %v950 = vadd.f32 %v948, %v129
  %v951 = vadd.f32 %v949, %v130
  %v952 = vsel %vm492, %v950, -inf
  %953 = vmax.xlane.f32.xlu0 %v952
  %v954 = vpop.xlane.xlu0 %953
  %v955 = vsel %vm492, %v951, -inf
  %956 = vmax.xlane.f32.xlu0 %v955
  %v957 = vpop.xlane.xlu0 %956
  %v958 = vsub.f32 %v950, %v954
  %v959 = vsub.f32 %v951, %v957
  %v960 = vmul.f32 %v958, 1.442695
  %v961 = vpow.pop %v960
  %v962 = vmul.f32 %v959, 1.442695
  %v963 = vpow.pop %v962
  %v964 = vsel %vm492, %v961, 0.0
  %965 = vadd.xlane.f32.xlu0 %v964
  %v966 = vpop.xlane.xlu0 %965
  %v967 = vsel %vm492, %v963, 0.0
  %968 = vadd.xlane.f32.xlu0 %v967
  %v969 = vpop.xlane.xlu0 %968
  %v970 = vrcp.pop %v966
  %v971 = vrcp.pop %v969
  %v972 = vmul.f32 %v961, %v970
  %v973 = vmul.f32 %v963, %v971
  %v975 = vsel %vm492, %v972, 0
  %v978 = vsel %vm492, %v973, 0
  %980 = vmatprep.subr.mxu0 0.0
  %981 = vmatpush1.msra.mxu0 0.0
  %982 = vmatprep.subr.mxu0 0.0
  %983 = vmatpush1.msra.mxu0 0.0
  %984 = vmatprep.subr.mxu0 0.0
  %985 = vmatpush1.msra.mxu0 0.0
  %986 = vmatprep.subr.mxu0 0.0
  %987 = vmatpush1.msra.mxu0 0.0
  %988 = vmatprep.subr.mxu0 0.0
  %989 = vmatpush1.msra.mxu0 0.0
  %990 = vmatprep.subr.mxu0 0.0
  %991 = vmatpush1.msra.mxu0 0.0
  %992 = vmatprep.subr.mxu0 0.0
  %993 = vmatpush1.msra.mxu0 0.0
  %994 = vmatprep.subr.mxu0 0.0
  %995 = vmatpush1.msra.mxu0 0.0
  %996 = vmatprep.subr.mxu0 0.0
  %997 = vmatpush1.msra.mxu0 0.0
  %998 = vmatprep.subr.mxu0 0.0
  %999 = vmatpush1.msra.mxu0 0.0
  %1000 = vmatprep.subr.mxu0 0.0
  %1001 = vmatpush1.msra.mxu0 0.0
  %1002 = vmatprep.subr.mxu0 0.0
  %1003 = vmatpush1.msra.mxu0 0.0
  %1004 = vmatprep.subr.mxu0 0.0
  %1005 = vmatpush1.msra.mxu0 0.0
  %1006 = vmatprep.subr.mxu0 0.0
  %1007 = vmatpush1.msra.mxu0 0.0
  %1008 = vmatprep.subr.mxu0 0.0
  %1009 = vmatpush1.msra.mxu0 %v858
  %1010 = vmatprep.subr.mxu0 0.0
  %1011 = vmatpush1.msra.mxu0 %v853
  %1012 = vmatprep.subr.mxu0 0.0
  %1013 = vmatpush2.msra.mxu0 0.0
  %1014 = vmatprep.subr.mxu0 0.0
  %1015 = vmatpush2.msra.mxu0 0.0
  %1016 = vmatprep.subr.mxu0 0.0
  %1017 = vmatpush2.msra.mxu0 0.0
  %1018 = vmatprep.subr.mxu0 0.0
  %1019 = vmatpush2.msra.mxu0 0.0
  %1020 = vmatprep.subr.mxu0 0.0
  %1021 = vmatpush2.msra.mxu0 0.0
  %1022 = vmatprep.subr.mxu0 0.0
  %1023 = vmatpush2.msra.mxu0 0.0
  %1024 = vmatprep.subr.mxu0 0.0
  %1025 = vmatpush2.msra.mxu0 0.0
  %1026 = vmatprep.subr.mxu0 0.0
  %1027 = vmatpush2.msra.mxu0 0.0
  %1028 = vmatprep.subr.mxu0 0.0
  %1029 = vmatpush2.msra.mxu0 0.0
  %1030 = vmatprep.subr.mxu0 0.0
  %1031 = vmatpush2.msra.mxu0 0.0
  %1032 = vmatprep.subr.mxu0 0.0
  %1033 = vmatpush2.msra.mxu0 0.0
  %1034 = vmatprep.subr.mxu0 0.0
  %1035 = vmatpush2.msra.mxu0 0.0
  %1036 = vmatprep.subr.mxu0 0.0
  %1037 = vmatpush2.msra.mxu0 0.0
  %1038 = vmatprep.subr.mxu0 0.0
  %1039 = vmatpush2.msra.mxu0 0.0
  %1040 = vmatprep.subr.mxu0 0.0
  %1041 = vmatpush2.msra.mxu0 0.0
  %1042 = vmatprep.subr.mxu0 0.0
  %1043 = vmatpush2.msra.mxu0 0.0
  %1044 = vmatprep.mubr.f32.mxu0 0.0
  %1045 = vmatmul.mubr.f32.gmra.mxu0 %v975
  %v1046 = vpop.f32.mrf.mxu0
  %v1047 = vadd.f32 0.0, %v1046
  %v1048 = vpop.f32.mrf.mxu0
  %1049 = vmatprep.mubr.f32.mxu0 0.0
  %1050 = vmatmul.mubr.f32.gmra.mxu0 %v978
  %v1051 = vpop.f32.mrf.mxu0
  %v1052 = vadd.f32 0.0, %v1051
  %v1053 = vpop.f32.mrf.mxu0
  %1054 = vdwg.mxu0
  %s1055 = scalar_lea.vmem %s5, 8
  %v1056 = vld [vmem:[%s1055] sm:$0xff]
  %v1058 = vsel %vm400, %v1047, 0
  %v1061 = vsel %vm400, %v1052, 0
  %1063 = vmatprep.subr.mxu0 0.0
  %1064 = vmatpush1.msra.mxu0 0.0
  %1065 = vmatprep.subr.mxu0 0.0
  %1066 = vmatpush1.msra.mxu0 0.0
  %1067 = vmatprep.subr.mxu0 0.0
  %1068 = vmatpush1.msra.mxu0 0.0
  %1069 = vmatprep.subr.mxu0 0.0
  %1070 = vmatpush1.msra.mxu0 0.0
  %1071 = vmatprep.subr.mxu0 0.0
  %1072 = vmatpush1.msra.mxu0 0.0
  %1073 = vmatprep.subr.mxu0 0.0
  %1074 = vmatpush1.msra.mxu0 0.0
  %1075 = vmatprep.subr.mxu0 0.0
  %1076 = vmatpush1.msra.mxu0 0.0
  %1077 = vmatprep.subr.mxu0 0.0
  %1078 = vmatpush1.msra.mxu0 0.0
  %1079 = vmatprep.subr.mxu0 0.0
  %1080 = vmatpush1.msra.mxu0 0.0
  %1081 = vmatprep.subr.mxu0 0.0
  %1082 = vmatpush1.msra.mxu0 0.0
  %1083 = vmatprep.subr.mxu0 0.0
  %1084 = vmatpush1.msra.mxu0 0.0
  %1085 = vmatprep.subr.mxu0 0.0
  %1086 = vmatpush1.msra.mxu0 0.0
  %1087 = vmatprep.subr.mxu0 0.0
  %1088 = vmatpush1.msra.mxu0 0.0
  %1089 = vmatprep.subr.mxu0 0.0
  %1090 = vmatpush1.msra.mxu0 0.0
  %1091 = vmatprep.subr.mxu0 0.0
  %1092 = vmatpush1.msra.mxu0 0.0
  %1093 = vmatprep.subr.mxu0 0.0
  %1094 = vmatpush1.msra.mxu0 %v1056
  %1095 = vmatprep.subr.mxu0 0.0
  %1096 = vmatpush2.msra.mxu0 0.0
  %1097 = vmatprep.subr.mxu0 0.0
  %1098 = vmatpush2.msra.mxu0 0.0
  %1099 = vmatprep.subr.mxu0 0.0
  %1100 = vmatpush2.msra.mxu0 0.0
  %1101 = vmatprep.subr.mxu0 0.0
  %1102 = vmatpush2.msra.mxu0 0.0
  %1103 = vmatprep.subr.mxu0 0.0
  %1104 = vmatpush2.msra.mxu0 0.0
  %1105 = vmatprep.subr.mxu0 0.0
  %1106 = vmatpush2.msra.mxu0 0.0
  %1107 = vmatprep.subr.mxu0 0.0
  %1108 = vmatpush2.msra.mxu0 0.0
  %1109 = vmatprep.subr.mxu0 0.0
  %1110 = vmatpush2.msra.mxu0 0.0
  %1111 = vmatprep.subr.mxu0 0.0
  %1112 = vmatpush2.msra.mxu0 0.0
  %1113 = vmatprep.subr.mxu0 0.0
  %1114 = vmatpush2.msra.mxu0 0.0
  %1115 = vmatprep.subr.mxu0 0.0
  %1116 = vmatpush2.msra.mxu0 0.0
  %1117 = vmatprep.subr.mxu0 0.0
  %1118 = vmatpush2.msra.mxu0 0.0
  %1119 = vmatprep.subr.mxu0 0.0
  %1120 = vmatpush2.msra.mxu0 0.0
  %1121 = vmatprep.subr.mxu0 0.0
  %1122 = vmatpush2.msra.mxu0 0.0
  %1123 = vmatprep.subr.mxu0 0.0
  %1124 = vmatpush2.msra.mxu0 0.0
  %1125 = vmatprep.subr.mxu0 0.0
  %1126 = vmatpush2.msra.mxu0 0.0
  %1127 = vmatprep.mubr.f32.mxu0 0.0
  %1128 = vmatmul.mubr.f32.gmra.mxu0 %v1058
  %v1129 = vpop.f32.mrf.mxu0
  %v1130 = vadd.f32 0.0, %v1129
  %v1131 = vpop.f32.mrf.mxu0
  %1132 = vmatprep.mubr.f32.mxu0 0.0
  %1133 = vmatmul.mubr.f32.gmra.mxu0 %v1061
  %v1134 = vpop.f32.mrf.mxu0
  %v1135 = vadd.f32 0.0, %v1134
  %v1136 = vpop.f32.mrf.mxu0
  %1137 = vdwg.mxu0
  %v1139 = vsel %vm400, %v588, 0
  %v1142 = vsel %vm400, %v593, 0
  %1144 = vmatprep.subr.mxu0 0.0
  %1145 = vmatpush1.msra.mxu0 0.0
  %1146 = vmatprep.subr.mxu0 0.0
  %1147 = vmatpush1.msra.mxu0 0.0
  %1148 = vmatprep.subr.mxu0 0.0
  %1149 = vmatpush1.msra.mxu0 0.0
  %1150 = vmatprep.subr.mxu0 0.0
  %1151 = vmatpush1.msra.mxu0 0.0
  %1152 = vmatprep.subr.mxu0 0.0
  %1153 = vmatpush1.msra.mxu0 0.0
  %1154 = vmatprep.subr.mxu0 0.0
  %1155 = vmatpush1.msra.mxu0 0.0
  %1156 = vmatprep.subr.mxu0 0.0
  %1157 = vmatpush1.msra.mxu0 0.0
  %1158 = vmatprep.subr.mxu0 0.0
  %1159 = vmatpush1.msra.mxu0 0.0
  %1160 = vmatprep.subr.mxu0 0.0
  %1161 = vmatpush1.msra.mxu0 0.0
  %1162 = vmatprep.subr.mxu0 0.0
  %1163 = vmatpush1.msra.mxu0 0.0
  %1164 = vmatprep.subr.mxu0 0.0
  %1165 = vmatpush1.msra.mxu0 0.0
  %1166 = vmatprep.subr.mxu0 0.0
  %1167 = vmatpush1.msra.mxu0 0.0
  %1168 = vmatprep.subr.mxu0 0.0
  %1169 = vmatpush1.msra.mxu0 0.0
  %1170 = vmatprep.subr.mxu0 0.0
  %1171 = vmatpush1.msra.mxu0 0.0
  %1172 = vmatprep.subr.mxu0 0.0
  %1173 = vmatpush1.msra.mxu0 0.0
  %1174 = vmatprep.subr.mxu0 0.0
  %1175 = vmatpush1.msra.mxu0 %v596
  %1176 = vmatprep.subr.mxu0 0.0
  %1177 = vmatpush2.msra.mxu0 0.0
  %1178 = vmatprep.subr.mxu0 0.0
  %1179 = vmatpush2.msra.mxu0 0.0
  %1180 = vmatprep.subr.mxu0 0.0
  %1181 = vmatpush2.msra.mxu0 0.0
  %1182 = vmatprep.subr.mxu0 0.0
  %1183 = vmatpush2.msra.mxu0 0.0
  %1184 = vmatprep.subr.mxu0 0.0
  %1185 = vmatpush2.msra.mxu0 0.0
  %1186 = vmatprep.subr.mxu0 0.0
  %1187 = vmatpush2.msra.mxu0 0.0
  %1188 = vmatprep.subr.mxu0 0.0
  %1189 = vmatpush2.msra.mxu0 0.0
  %1190 = vmatprep.subr.mxu0 0.0
  %1191 = vmatpush2.msra.mxu0 0.0
  %1192 = vmatprep.subr.mxu0 0.0
  %1193 = vmatpush2.msra.mxu0 0.0
  %1194 = vmatprep.subr.mxu0 0.0
  %1195 = vmatpush2.msra.mxu0 0.0
  %1196 = vmatprep.subr.mxu0 0.0
  %1197 = vmatpush2.msra.mxu0 0.0
  %1198 = vmatprep.subr.mxu0 0.0
  %1199 = vmatpush2.msra.mxu0 0.0
  %1200 = vmatprep.subr.mxu0 0.0
  %1201 = vmatpush2.msra.mxu0 0.0
  %1202 = vmatprep.subr.mxu0 0.0
  %1203 = vmatpush2.msra.mxu0 0.0
  %1204 = vmatprep.subr.mxu0 0.0
  %1205 = vmatpush2.msra.mxu0 0.0
  %1206 = vmatprep.subr.mxu0 0.0
  %1207 = vmatpush2.msra.mxu0 0.0
  %1208 = vmatprep.mubr.f32.mxu0 0.0
  %1209 = vmatmul.mubr.f32.gmra.mxu0 %v1139
  %v1210 = vpop.f32.mrf.mxu0
  %v1211 = vadd.f32 %v1130, %v1210
  %v1212 = vpop.f32.mrf.mxu0
  %1213 = vmatprep.mubr.f32.mxu0 0.0
  %1214 = vmatmul.mubr.f32.gmra.mxu0 %v1142
  %v1215 = vpop.f32.mrf.mxu0
  %v1216 = vadd.f32 %v1135, %v1215
  %v1217 = vpop.f32.mrf.mxu0
  %1218 = vdwg.mxu0
  %s1219 = scalar_lea.vmem %s3, 64
  %v1220 = vld [vmem:[%s1219] sm:$0xff]
  %v1221 = vld [vmem:[%s1219 + $0x8] sm:$0xff]
  %v1222 = vld [vmem:[%s1219 + $0x10] sm:$0xff]
  %v1223 = vld [vmem:[%s1219 + $0x18] sm:$0xff]
  %s1224 = scalar_lea.vmem %s4, 2
  %v1225 = vld [vmem:[%s1224] sm:$0x1]
  %v1227 = vlaneseq
  %v1228 = vshrl.u32 %v1227, 7
  %v1229 = vsub.s32 0, %v1228
  %v1230 = vrot.slane %v1225, %v1229
  %1232 = vmatprep.subr.mxu0 0.0
  %1233 = vmatpush1.msra.mxu0 0.0
  %1234 = vmatprep.subr.mxu0 0.0
  %1235 = vmatpush1.msra.mxu0 0.0
  %1236 = vmatprep.subr.mxu0 0.0
  %1237 = vmatpush1.msra.mxu0 0.0
  %1238 = vmatprep.subr.mxu0 0.0
  %1239 = vmatpush1.msra.mxu0 0.0
  %1240 = vmatprep.subr.mxu0 0.0
  %1241 = vmatpush1.msra.mxu0 0.0
  %1242 = vmatprep.subr.mxu0 0.0
  %1243 = vmatpush1.msra.mxu0 0.0
  %1244 = vmatprep.subr.mxu0 0.0
  %1245 = vmatpush1.msra.mxu0 0.0
  %1246 = vmatprep.subr.mxu0 0.0
  %1247 = vmatpush1.msra.mxu0 0.0
  %1248 = vmatprep.subr.mxu0 0.0
  %1249 = vmatpush1.msra.mxu0 0.0
  %1250 = vmatprep.subr.mxu0 0.0
  %1251 = vmatpush1.msra.mxu0 0.0
  %1252 = vmatprep.subr.mxu0 0.0
  %1253 = vmatpush1.msra.mxu0 0.0
  %1254 = vmatprep.subr.mxu0 0.0
  %1255 = vmatpush1.msra.mxu0 0.0
  %1256 = vmatprep.subr.mxu0 0.0
  %1257 = vmatpush1.msra.mxu0 %v1223
  %1258 = vmatprep.subr.mxu0 0.0
  %1259 = vmatpush1.msra.mxu0 %v1222
  %1260 = vmatprep.subr.mxu0 0.0
  %1261 = vmatpush1.msra.mxu0 %v1221
  %1262 = vmatprep.subr.mxu0 0.0
  %1263 = vmatpush1.msra.mxu0 %v1220
  %1264 = vmatprep.subr.mxu0 0.0
  %1265 = vmatpush2.msra.mxu0 0.0
  %1266 = vmatprep.subr.mxu0 0.0
  %1267 = vmatpush2.msra.mxu0 0.0
  %1268 = vmatprep.subr.mxu0 0.0
  %1269 = vmatpush2.msra.mxu0 0.0
  %1270 = vmatprep.subr.mxu0 0.0
  %1271 = vmatpush2.msra.mxu0 0.0
  %1272 = vmatprep.subr.mxu0 0.0
  %1273 = vmatpush2.msra.mxu0 0.0
  %1274 = vmatprep.subr.mxu0 0.0
  %1275 = vmatpush2.msra.mxu0 0.0
  %1276 = vmatprep.subr.mxu0 0.0
  %1277 = vmatpush2.msra.mxu0 0.0
  %1278 = vmatprep.subr.mxu0 0.0
  %1279 = vmatpush2.msra.mxu0 0.0
  %1280 = vmatprep.subr.mxu0 0.0
  %1281 = vmatpush2.msra.mxu0 0.0
  %1282 = vmatprep.subr.mxu0 0.0
  %1283 = vmatpush2.msra.mxu0 0.0
  %1284 = vmatprep.subr.mxu0 0.0
  %1285 = vmatpush2.msra.mxu0 0.0
  %1286 = vmatprep.subr.mxu0 0.0
  %1287 = vmatpush2.msra.mxu0 0.0
  %1288 = vmatprep.subr.mxu0 0.0
  %1289 = vmatpush2.msra.mxu0 0.0
  %1290 = vmatprep.subr.mxu0 0.0
  %1291 = vmatpush2.msra.mxu0 0.0
  %1292 = vmatprep.subr.mxu0 0.0
  %1293 = vmatpush2.msra.mxu0 0.0
  %1294 = vmatprep.subr.mxu0 0.0
  %1295 = vmatpush2.msra.mxu0 0.0
  %1296 = vmatprep.mubr.f32.mxu0 0.0
  %1297 = vmatmul.mubr.f32.gmra.mxu0 %v144
  %v1298 = vpop.f32.mrf.mxu0
  %v1299 = vadd.f32 %v1230, %v1298
  %v1300 = vpop.f32.mrf.mxu0
  %1301 = vmatprep.mubr.f32.mxu0 0.0
  %1302 = vmatmul.mubr.f32.gmra.mxu0 %v147
  %v1303 = vpop.f32.mrf.mxu0
  %v1304 = vadd.f32 %v1230, %v1303
  %v1305 = vpop.f32.mrf.mxu0
  %1306 = vdwg.mxu0
  %s1307 = scalar_lea.vmem %s3, 192
  %v1308 = vld [vmem:[%s1307] sm:$0xff]
  %v1309 = vld [vmem:[%s1307 + $0x8] sm:$0xff]
  %v1310 = vld [vmem:[%s1307 + $0x10] sm:$0xff]
  %v1311 = vld [vmem:[%s1307 + $0x18] sm:$0xff]
  %s1312 = scalar_lea.vmem %s4, 6
  %v1313 = vld [vmem:[%s1312] sm:$0x1]
  %v1315 = vlaneseq
  %v1316 = vshrl.u32 %v1315, 7
  %v1317 = vsub.s32 0, %v1316
  %v1318 = vrot.slane %v1313, %v1317
  %1320 = vmatprep.subr.mxu0 0.0
  %1321 = vmatpush1.msra.mxu0 0.0
  %1322 = vmatprep.subr.mxu0 0.0
  %1323 = vmatpush1.msra.mxu0 0.0
  %1324 = vmatprep.subr.mxu0 0.0
  %1325 = vmatpush1.msra.mxu0 0.0
  %1326 = vmatprep.subr.mxu0 0.0
  %1327 = vmatpush1.msra.mxu0 0.0
  %1328 = vmatprep.subr.mxu0 0.0
  %1329 = vmatpush1.msra.mxu0 0.0
  %1330 = vmatprep.subr.mxu0 0.0
  %1331 = vmatpush1.msra.mxu0 0.0
  %1332 = vmatprep.subr.mxu0 0.0
  %1333 = vmatpush1.msra.mxu0 0.0
  %1334 = vmatprep.subr.mxu0 0.0
  %1335 = vmatpush1.msra.mxu0 0.0
  %1336 = vmatprep.subr.mxu0 0.0
  %1337 = vmatpush1.msra.mxu0 0.0
  %1338 = vmatprep.subr.mxu0 0.0
  %1339 = vmatpush1.msra.mxu0 0.0
  %1340 = vmatprep.subr.mxu0 0.0
  %1341 = vmatpush1.msra.mxu0 0.0
  %1342 = vmatprep.subr.mxu0 0.0
  %1343 = vmatpush1.msra.mxu0 0.0
  %1344 = vmatprep.subr.mxu0 0.0
  %1345 = vmatpush1.msra.mxu0 %v1311
  %1346 = vmatprep.subr.mxu0 0.0
  %1347 = vmatpush1.msra.mxu0 %v1310
  %1348 = vmatprep.subr.mxu0 0.0
  %1349 = vmatpush1.msra.mxu0 %v1309
  %1350 = vmatprep.subr.mxu0 0.0
  %1351 = vmatpush1.msra.mxu0 %v1308
  %1352 = vmatprep.subr.mxu0 0.0
  %1353 = vmatpush2.msra.mxu0 0.0
  %1354 = vmatprep.subr.mxu0 0.0
  %1355 = vmatpush2.msra.mxu0 0.0
  %1356 = vmatprep.subr.mxu0 0.0
  %1357 = vmatpush2.msra.mxu0 0.0
  %1358 = vmatprep.subr.mxu0 0.0
  %1359 = vmatpush2.msra.mxu0 0.0
  %1360 = vmatprep.subr.mxu0 0.0
  %1361 = vmatpush2.msra.mxu0 0.0
  %1362 = vmatprep.subr.mxu0 0.0
  %1363 = vmatpush2.msra.mxu0 0.0
  %1364 = vmatprep.subr.mxu0 0.0
  %1365 = vmatpush2.msra.mxu0 0.0
  %1366 = vmatprep.subr.mxu0 0.0
  %1367 = vmatpush2.msra.mxu0 0.0
  %1368 = vmatprep.subr.mxu0 0.0
  %1369 = vmatpush2.msra.mxu0 0.0
  %1370 = vmatprep.subr.mxu0 0.0
  %1371 = vmatpush2.msra.mxu0 0.0
  %1372 = vmatprep.subr.mxu0 0.0
  %1373 = vmatpush2.msra.mxu0 0.0
  %1374 = vmatprep.subr.mxu0 0.0
  %1375 = vmatpush2.msra.mxu0 0.0
  %1376 = vmatprep.subr.mxu0 0.0
  %1377 = vmatpush2.msra.mxu0 0.0
  %1378 = vmatprep.subr.mxu0 0.0
  %1379 = vmatpush2.msra.mxu0 0.0
  %1380 = vmatprep.subr.mxu0 0.0
  %1381 = vmatpush2.msra.mxu0 0.0
  %1382 = vmatprep.subr.mxu0 0.0
  %1383 = vmatpush2.msra.mxu0 0.0
  %1384 = vmatprep.mubr.f32.mxu0 0.0
  %1385 = vmatmul.mubr.f32.gmra.mxu0 %v144
  %v1386 = vpop.f32.mrf.mxu0
  %v1387 = vadd.f32 %v1318, %v1386
  %v1388 = vpop.f32.mrf.mxu0
  %1389 = vmatprep.mubr.f32.mxu0 0.0
  %1390 = vmatmul.mubr.f32.gmra.mxu0 %v147
  %v1391 = vpop.f32.mrf.mxu0
  %v1392 = vadd.f32 %v1318, %v1391
  %v1393 = vpop.f32.mrf.mxu0
  %1394 = vdwg.mxu0
  %s1395 = scalar_lea.vmem %s3, 320
  %v1396 = vld [vmem:[%s1395] sm:$0xff]
  %v1397 = vld [vmem:[%s1395 + $0x8] sm:$0xff]
  %v1398 = vld [vmem:[%s1395 + $0x10] sm:$0xff]
  %v1399 = vld [vmem:[%s1395 + $0x18] sm:$0xff]
  %s1400 = scalar_lea.vmem %s4, 10
  %v1401 = vld [vmem:[%s1400] sm:$0x1]
  %v1403 = vlaneseq
  %v1404 = vshrl.u32 %v1403, 7
  %v1405 = vsub.s32 0, %v1404
  %v1406 = vrot.slane %v1401, %v1405
  %1408 = vmatprep.subr.mxu0 0.0
  %1409 = vmatpush1.msra.mxu0 0.0
  %1410 = vmatprep.subr.mxu0 0.0
  %1411 = vmatpush1.msra.mxu0 0.0
  %1412 = vmatprep.subr.mxu0 0.0
  %1413 = vmatpush1.msra.mxu0 0.0
  %1414 = vmatprep.subr.mxu0 0.0
  %1415 = vmatpush1.msra.mxu0 0.0
  %1416 = vmatprep.subr.mxu0 0.0
  %1417 = vmatpush1.msra.mxu0 0.0
  %1418 = vmatprep.subr.mxu0 0.0
  %1419 = vmatpush1.msra.mxu0 0.0
  %1420 = vmatprep.subr.mxu0 0.0
  %1421 = vmatpush1.msra.mxu0 0.0
  %1422 = vmatprep.subr.mxu0 0.0
  %1423 = vmatpush1.msra.mxu0 0.0
  %1424 = vmatprep.subr.mxu0 0.0
  %1425 = vmatpush1.msra.mxu0 0.0
  %1426 = vmatprep.subr.mxu0 0.0
  %1427 = vmatpush1.msra.mxu0 0.0
  %1428 = vmatprep.subr.mxu0 0.0
  %1429 = vmatpush1.msra.mxu0 0.0
  %1430 = vmatprep.subr.mxu0 0.0
  %1431 = vmatpush1.msra.mxu0 0.0
  %1432 = vmatprep.subr.mxu0 0.0
  %1433 = vmatpush1.msra.mxu0 %v1399
  %1434 = vmatprep.subr.mxu0 0.0
  %1435 = vmatpush1.msra.mxu0 %v1398
  %1436 = vmatprep.subr.mxu0 0.0
  %1437 = vmatpush1.msra.mxu0 %v1397
  %1438 = vmatprep.subr.mxu0 0.0
  %1439 = vmatpush1.msra.mxu0 %v1396
  %1440 = vmatprep.subr.mxu0 0.0
  %1441 = vmatpush2.msra.mxu0 0.0
  %1442 = vmatprep.subr.mxu0 0.0
  %1443 = vmatpush2.msra.mxu0 0.0
  %1444 = vmatprep.subr.mxu0 0.0
  %1445 = vmatpush2.msra.mxu0 0.0
  %1446 = vmatprep.subr.mxu0 0.0
  %1447 = vmatpush2.msra.mxu0 0.0
  %1448 = vmatprep.subr.mxu0 0.0
  %1449 = vmatpush2.msra.mxu0 0.0
  %1450 = vmatprep.subr.mxu0 0.0
  %1451 = vmatpush2.msra.mxu0 0.0
  %1452 = vmatprep.subr.mxu0 0.0
  %1453 = vmatpush2.msra.mxu0 0.0
  %1454 = vmatprep.subr.mxu0 0.0
  %1455 = vmatpush2.msra.mxu0 0.0
  %1456 = vmatprep.subr.mxu0 0.0
  %1457 = vmatpush2.msra.mxu0 0.0
  %1458 = vmatprep.subr.mxu0 0.0
  %1459 = vmatpush2.msra.mxu0 0.0
  %1460 = vmatprep.subr.mxu0 0.0
  %1461 = vmatpush2.msra.mxu0 0.0
  %1462 = vmatprep.subr.mxu0 0.0
  %1463 = vmatpush2.msra.mxu0 0.0
  %1464 = vmatprep.subr.mxu0 0.0
  %1465 = vmatpush2.msra.mxu0 0.0
  %1466 = vmatprep.subr.mxu0 0.0
  %1467 = vmatpush2.msra.mxu0 0.0
  %1468 = vmatprep.subr.mxu0 0.0
  %1469 = vmatpush2.msra.mxu0 0.0
  %1470 = vmatprep.subr.mxu0 0.0
  %1471 = vmatpush2.msra.mxu0 0.0
  %1472 = vmatprep.mubr.f32.mxu0 0.0
  %1473 = vmatmul.mubr.f32.gmra.mxu0 %v144
  %v1474 = vpop.f32.mrf.mxu0
  %v1475 = vadd.f32 %v1406, %v1474
  %v1476 = vpop.f32.mrf.mxu0
  %1477 = vmatprep.mubr.f32.mxu0 0.0
  %1478 = vmatmul.mubr.f32.gmra.mxu0 %v147
  %v1479 = vpop.f32.mrf.mxu0
  %v1480 = vadd.f32 %v1406, %v1479
  %v1481 = vpop.f32.mrf.mxu0
  %1482 = vdwg.mxu0
  %v1484 = vsel %vm400, %v1299, 0
  %v1487 = vsel %vm400, %v1304, 0
  %v1490 = vsel %vm400, %v1387, 0
  %v1493 = vsel %vm400, %v1392, 0
  %1495 = vmatprep.subr.mxu0 0.0
  %1496 = vmatpush1.xpose.msra.mxu0 0.0
  %1497 = vmatprep.subr.mxu0 0.0
  %1498 = vmatpush1.xpose.msra.mxu0 0.0
  %1499 = vmatprep.subr.mxu0 0.0
  %1500 = vmatpush1.xpose.msra.mxu0 0.0
  %1501 = vmatprep.subr.mxu0 0.0
  %1502 = vmatpush1.xpose.msra.mxu0 0.0
  %1503 = vmatprep.subr.mxu0 0.0
  %1504 = vmatpush1.xpose.msra.mxu0 0.0
  %1505 = vmatprep.subr.mxu0 0.0
  %1506 = vmatpush1.xpose.msra.mxu0 0.0
  %1507 = vmatprep.subr.mxu0 0.0
  %1508 = vmatpush1.xpose.msra.mxu0 0.0
  %1509 = vmatprep.subr.mxu0 0.0
  %1510 = vmatpush1.xpose.msra.mxu0 0.0
  %1511 = vmatprep.subr.mxu0 0.0
  %1512 = vmatpush1.xpose.msra.mxu0 0.0
  %1513 = vmatprep.subr.mxu0 0.0
  %1514 = vmatpush1.xpose.msra.mxu0 0.0
  %1515 = vmatprep.subr.mxu0 0.0
  %1516 = vmatpush1.xpose.msra.mxu0 0.0
  %1517 = vmatprep.subr.mxu0 0.0
  %1518 = vmatpush1.xpose.msra.mxu0 0.0
  %1519 = vmatprep.subr.mxu0 0.0
  %1520 = vmatpush1.xpose.msra.mxu0 0.0
  %1521 = vmatprep.subr.mxu0 0.0
  %1522 = vmatpush1.xpose.msra.mxu0 0.0
  %1523 = vmatprep.subr.mxu0 0.0
  %1524 = vmatpush1.xpose.msra.mxu0 %v1493
  %1525 = vmatprep.subr.mxu0 0.0
  %1526 = vmatpush1.xpose.msra.mxu0 %v1490
  %1527 = vmatprep.subr.mxu0 0.0
  %1528 = vmatpush2.xpose.msra.mxu0 0.0
  %1529 = vmatprep.subr.mxu0 0.0
  %1530 = vmatpush2.xpose.msra.mxu0 0.0
  %1531 = vmatprep.subr.mxu0 0.0
  %1532 = vmatpush2.xpose.msra.mxu0 0.0
  %1533 = vmatprep.subr.mxu0 0.0
  %1534 = vmatpush2.xpose.msra.mxu0 0.0
  %1535 = vmatprep.subr.mxu0 0.0
  %1536 = vmatpush2.xpose.msra.mxu0 0.0
  %1537 = vmatprep.subr.mxu0 0.0
  %1538 = vmatpush2.xpose.msra.mxu0 0.0
  %1539 = vmatprep.subr.mxu0 0.0
  %1540 = vmatpush2.xpose.msra.mxu0 0.0
  %1541 = vmatprep.subr.mxu0 0.0
  %1542 = vmatpush2.xpose.msra.mxu0 0.0
  %1543 = vmatprep.subr.mxu0 0.0
  %1544 = vmatpush2.xpose.msra.mxu0 0.0
  %1545 = vmatprep.subr.mxu0 0.0
  %1546 = vmatpush2.xpose.msra.mxu0 0.0
  %1547 = vmatprep.subr.mxu0 0.0
  %1548 = vmatpush2.xpose.msra.mxu0 0.0
  %1549 = vmatprep.subr.mxu0 0.0
  %1550 = vmatpush2.xpose.msra.mxu0 0.0
  %1551 = vmatprep.subr.mxu0 0.0
  %1552 = vmatpush2.xpose.msra.mxu0 0.0
  %1553 = vmatprep.subr.mxu0 0.0
  %1554 = vmatpush2.xpose.msra.mxu0 0.0
  %1555 = vmatprep.subr.mxu0 0.0
  %1556 = vmatpush2.xpose.msra.mxu0 0.0
  %1557 = vmatprep.subr.mxu0 0.0
  %1558 = vmatpush2.xpose.msra.mxu0 0.0
  %1559 = vmatprep.mubr.f32.mxu0 0.0
  %1560 = vmatmul.mubr.f32.gmra.mxu0 %v1484
  %v1561 = vpop.f32.mrf.mxu0
  %v1562 = vadd.f32 0.0, %v1561
  %v1563 = vpop.f32.mrf.mxu0
  %1564 = vmatprep.mubr.f32.mxu0 0.0
  %1565 = vmatmul.mubr.f32.gmra.mxu0 %v1487
  %v1566 = vpop.f32.mrf.mxu0
  %v1567 = vadd.f32 0.0, %v1566
  %v1568 = vpop.f32.mrf.mxu0
  %1569 = vdwg.mxu0
  %v1570 = vmul.f32 %v1562, 0.35355338
  %v1571 = vmul.f32 %v1567, 0.35355338
  %v1572 = vadd.f32 %v1570, %v129
  %v1573 = vadd.f32 %v1571, %v130
  %v1574 = vsel %vm492, %v1572, -inf
  %1575 = vmax.xlane.f32.xlu0 %v1574
  %v1576 = vpop.xlane.xlu0 %1575
  %v1577 = vsel %vm492, %v1573, -inf
  %1578 = vmax.xlane.f32.xlu0 %v1577
  %v1579 = vpop.xlane.xlu0 %1578
  %v1580 = vsub.f32 %v1572, %v1576
  %v1581 = vsub.f32 %v1573, %v1579
  %v1582 = vmul.f32 %v1580, 1.442695
  %v1583 = vpow.pop %v1582
  %v1584 = vmul.f32 %v1581, 1.442695
  %v1585 = vpow.pop %v1584
  %v1586 = vsel %vm492, %v1583, 0.0
  %1587 = vadd.xlane.f32.xlu0 %v1586
  %v1588 = vpop.xlane.xlu0 %1587
  %v1589 = vsel %vm492, %v1585, 0.0
  %1590 = vadd.xlane.f32.xlu0 %v1589
  %v1591 = vpop.xlane.xlu0 %1590
  %v1592 = vrcp.pop %v1588
  %v1593 = vrcp.pop %v1591
  %v1594 = vmul.f32 %v1583, %v1592
  %v1595 = vmul.f32 %v1585, %v1593
  %v1597 = vsel %vm492, %v1594, 0
  %v1600 = vsel %vm492, %v1595, 0
  %1602 = vmatprep.subr.mxu0 0.0
  %1603 = vmatpush1.msra.mxu0 0.0
  %1604 = vmatprep.subr.mxu0 0.0
  %1605 = vmatpush1.msra.mxu0 0.0
  %1606 = vmatprep.subr.mxu0 0.0
  %1607 = vmatpush1.msra.mxu0 0.0
  %1608 = vmatprep.subr.mxu0 0.0
  %1609 = vmatpush1.msra.mxu0 0.0
  %1610 = vmatprep.subr.mxu0 0.0
  %1611 = vmatpush1.msra.mxu0 0.0
  %1612 = vmatprep.subr.mxu0 0.0
  %1613 = vmatpush1.msra.mxu0 0.0
  %1614 = vmatprep.subr.mxu0 0.0
  %1615 = vmatpush1.msra.mxu0 0.0
  %1616 = vmatprep.subr.mxu0 0.0
  %1617 = vmatpush1.msra.mxu0 0.0
  %1618 = vmatprep.subr.mxu0 0.0
  %1619 = vmatpush1.msra.mxu0 0.0
  %1620 = vmatprep.subr.mxu0 0.0
  %1621 = vmatpush1.msra.mxu0 0.0
  %1622 = vmatprep.subr.mxu0 0.0
  %1623 = vmatpush1.msra.mxu0 0.0
  %1624 = vmatprep.subr.mxu0 0.0
  %1625 = vmatpush1.msra.mxu0 0.0
  %1626 = vmatprep.subr.mxu0 0.0
  %1627 = vmatpush1.msra.mxu0 0.0
  %1628 = vmatprep.subr.mxu0 0.0
  %1629 = vmatpush1.msra.mxu0 0.0
  %1630 = vmatprep.subr.mxu0 0.0
  %1631 = vmatpush1.msra.mxu0 %v1480
  %1632 = vmatprep.subr.mxu0 0.0
  %1633 = vmatpush1.msra.mxu0 %v1475
  %1634 = vmatprep.subr.mxu0 0.0
  %1635 = vmatpush2.msra.mxu0 0.0
  %1636 = vmatprep.subr.mxu0 0.0
  %1637 = vmatpush2.msra.mxu0 0.0
  %1638 = vmatprep.subr.mxu0 0.0
  %1639 = vmatpush2.msra.mxu0 0.0
  %1640 = vmatprep.subr.mxu0 0.0
  %1641 = vmatpush2.msra.mxu0 0.0
  %1642 = vmatprep.subr.mxu0 0.0
  %1643 = vmatpush2.msra.mxu0 0.0
  %1644 = vmatprep.subr.mxu0 0.0
  %1645 = vmatpush2.msra.mxu0 0.0
  %1646 = vmatprep.subr.mxu0 0.0
  %1647 = vmatpush2.msra.mxu0 0.0
  %1648 = vmatprep.subr.mxu0 0.0
  %1649 = vmatpush2.msra.mxu0 0.0
  %1650 = vmatprep.subr.mxu0 0.0
  %1651 = vmatpush2.msra.mxu0 0.0
  %1652 = vmatprep.subr.mxu0 0.0
  %1653 = vmatpush2.msra.mxu0 0.0
  %1654 = vmatprep.subr.mxu0 0.0
  %1655 = vmatpush2.msra.mxu0 0.0
  %1656 = vmatprep.subr.mxu0 0.0
  %1657 = vmatpush2.msra.mxu0 0.0
  %1658 = vmatprep.subr.mxu0 0.0
  %1659 = vmatpush2.msra.mxu0 0.0
  %1660 = vmatprep.subr.mxu0 0.0
  %1661 = vmatpush2.msra.mxu0 0.0
  %1662 = vmatprep.subr.mxu0 0.0
  %1663 = vmatpush2.msra.mxu0 0.0
  %1664 = vmatprep.subr.mxu0 0.0
  %1665 = vmatpush2.msra.mxu0 0.0
  %1666 = vmatprep.mubr.f32.mxu0 0.0
  %1667 = vmatmul.mubr.f32.gmra.mxu0 %v1597
  %v1668 = vpop.f32.mrf.mxu0
  %v1669 = vadd.f32 0.0, %v1668
  %v1670 = vpop.f32.mrf.mxu0
  %1671 = vmatprep.mubr.f32.mxu0 0.0
  %1672 = vmatmul.mubr.f32.gmra.mxu0 %v1600
  %v1673 = vpop.f32.mrf.mxu0
  %v1674 = vadd.f32 0.0, %v1673
  %v1675 = vpop.f32.mrf.mxu0
  %1676 = vdwg.mxu0
  %s1677 = scalar_lea.vmem %s5, 16
  %v1678 = vld [vmem:[%s1677] sm:$0xff]
  %v1680 = vsel %vm400, %v1669, 0
  %v1683 = vsel %vm400, %v1674, 0
  %1685 = vmatprep.subr.mxu0 0.0
  %1686 = vmatpush1.msra.mxu0 0.0
  %1687 = vmatprep.subr.mxu0 0.0
  %1688 = vmatpush1.msra.mxu0 0.0
  %1689 = vmatprep.subr.mxu0 0.0
  %1690 = vmatpush1.msra.mxu0 0.0
  %1691 = vmatprep.subr.mxu0 0.0
  %1692 = vmatpush1.msra.mxu0 0.0
  %1693 = vmatprep.subr.mxu0 0.0
  %1694 = vmatpush1.msra.mxu0 0.0
  %1695 = vmatprep.subr.mxu0 0.0
  %1696 = vmatpush1.msra.mxu0 0.0
  %1697 = vmatprep.subr.mxu0 0.0
  %1698 = vmatpush1.msra.mxu0 0.0
  %1699 = vmatprep.subr.mxu0 0.0
  %1700 = vmatpush1.msra.mxu0 0.0
  %1701 = vmatprep.subr.mxu0 0.0
  %1702 = vmatpush1.msra.mxu0 0.0
  %1703 = vmatprep.subr.mxu0 0.0
  %1704 = vmatpush1.msra.mxu0 0.0
  %1705 = vmatprep.subr.mxu0 0.0
  %1706 = vmatpush1.msra.mxu0 0.0
  %1707 = vmatprep.subr.mxu0 0.0
  %1708 = vmatpush1.msra.mxu0 0.0
  %1709 = vmatprep.subr.mxu0 0.0
  %1710 = vmatpush1.msra.mxu0 0.0
  %1711 = vmatprep.subr.mxu0 0.0
  %1712 = vmatpush1.msra.mxu0 0.0
  %1713 = vmatprep.subr.mxu0 0.0
  %1714 = vmatpush1.msra.mxu0 0.0
  %1715 = vmatprep.subr.mxu0 0.0
  %1716 = vmatpush1.msra.mxu0 %v1678
  %1717 = vmatprep.subr.mxu0 0.0
  %1718 = vmatpush2.msra.mxu0 0.0
  %1719 = vmatprep.subr.mxu0 0.0
  %1720 = vmatpush2.msra.mxu0 0.0
  %1721 = vmatprep.subr.mxu0 0.0
  %1722 = vmatpush2.msra.mxu0 0.0
  %1723 = vmatprep.subr.mxu0 0.0
  %1724 = vmatpush2.msra.mxu0 0.0
  %1725 = vmatprep.subr.mxu0 0.0
  %1726 = vmatpush2.msra.mxu0 0.0
  %1727 = vmatprep.subr.mxu0 0.0
  %1728 = vmatpush2.msra.mxu0 0.0
  %1729 = vmatprep.subr.mxu0 0.0
  %1730 = vmatpush2.msra.mxu0 0.0
  %1731 = vmatprep.subr.mxu0 0.0
  %1732 = vmatpush2.msra.mxu0 0.0
  %1733 = vmatprep.subr.mxu0 0.0
  %1734 = vmatpush2.msra.mxu0 0.0
  %1735 = vmatprep.subr.mxu0 0.0
  %1736 = vmatpush2.msra.mxu0 0.0
  %1737 = vmatprep.subr.mxu0 0.0
  %1738 = vmatpush2.msra.mxu0 0.0
  %1739 = vmatprep.subr.mxu0 0.0
  %1740 = vmatpush2.msra.mxu0 0.0
  %1741 = vmatprep.subr.mxu0 0.0
  %1742 = vmatpush2.msra.mxu0 0.0
  %1743 = vmatprep.subr.mxu0 0.0
  %1744 = vmatpush2.msra.mxu0 0.0
  %1745 = vmatprep.subr.mxu0 0.0
  %1746 = vmatpush2.msra.mxu0 0.0
  %1747 = vmatprep.subr.mxu0 0.0
  %1748 = vmatpush2.msra.mxu0 0.0
  %1749 = vmatprep.mubr.f32.mxu0 0.0
  %1750 = vmatmul.mubr.f32.gmra.mxu0 %v1680
  %v1751 = vpop.f32.mrf.mxu0
  %v1752 = vadd.f32 0.0, %v1751
  %v1753 = vpop.f32.mrf.mxu0
  %1754 = vmatprep.mubr.f32.mxu0 0.0
  %1755 = vmatmul.mubr.f32.gmra.mxu0 %v1683
  %v1756 = vpop.f32.mrf.mxu0
  %v1757 = vadd.f32 0.0, %v1756
  %v1758 = vpop.f32.mrf.mxu0
  %1759 = vdwg.mxu0
  %v1760 = vadd.f32 %v1211, %v1752
  %v1761 = vadd.f32 %v1216, %v1757
  %s1762 = scalar_lea.vmem %s3, 96
  %v1763 = vld [vmem:[%s1762] sm:$0xff]
  %v1764 = vld [vmem:[%s1762 + $0x8] sm:$0xff]
  %v1765 = vld [vmem:[%s1762 + $0x10] sm:$0xff]
  %v1766 = vld [vmem:[%s1762 + $0x18] sm:$0xff]
  %s1767 = scalar_lea.vmem %s4, 3
  %v1768 = vld [vmem:[%s1767] sm:$0x1]
  %v1770 = vlaneseq
  %v1771 = vshrl.u32 %v1770, 7
  %v1772 = vsub.s32 0, %v1771
  %v1773 = vrot.slane %v1768, %v1772
  %1775 = vmatprep.subr.mxu0 0.0
  %1776 = vmatpush1.msra.mxu0 0.0
  %1777 = vmatprep.subr.mxu0 0.0
  %1778 = vmatpush1.msra.mxu0 0.0
  %1779 = vmatprep.subr.mxu0 0.0
  %1780 = vmatpush1.msra.mxu0 0.0
  %1781 = vmatprep.subr.mxu0 0.0
  %1782 = vmatpush1.msra.mxu0 0.0
  %1783 = vmatprep.subr.mxu0 0.0
  %1784 = vmatpush1.msra.mxu0 0.0
  %1785 = vmatprep.subr.mxu0 0.0
  %1786 = vmatpush1.msra.mxu0 0.0
  %1787 = vmatprep.subr.mxu0 0.0
  %1788 = vmatpush1.msra.mxu0 0.0
  %1789 = vmatprep.subr.mxu0 0.0
  %1790 = vmatpush1.msra.mxu0 0.0
  %1791 = vmatprep.subr.mxu0 0.0
  %1792 = vmatpush1.msra.mxu0 0.0
  %1793 = vmatprep.subr.mxu0 0.0
  %1794 = vmatpush1.msra.mxu0 0.0
  %1795 = vmatprep.subr.mxu0 0.0
  %1796 = vmatpush1.msra.mxu0 0.0
  %1797 = vmatprep.subr.mxu0 0.0
  %1798 = vmatpush1.msra.mxu0 0.0
  %1799 = vmatprep.subr.mxu0 0.0
  %1800 = vmatpush1.msra.mxu0 %v1766
  %1801 = vmatprep.subr.mxu0 0.0
  %1802 = vmatpush1.msra.mxu0 %v1765
  %1803 = vmatprep.subr.mxu0 0.0
  %1804 = vmatpush1.msra.mxu0 %v1764
  %1805 = vmatprep.subr.mxu0 0.0
  %1806 = vmatpush1.msra.mxu0 %v1763
  %1807 = vmatprep.subr.mxu0 0.0
  %1808 = vmatpush2.msra.mxu0 0.0
  %1809 = vmatprep.subr.mxu0 0.0
  %1810 = vmatpush2.msra.mxu0 0.0
  %1811 = vmatprep.subr.mxu0 0.0
  %1812 = vmatpush2.msra.mxu0 0.0
  %1813 = vmatprep.subr.mxu0 0.0
  %1814 = vmatpush2.msra.mxu0 0.0
  %1815 = vmatprep.subr.mxu0 0.0
  %1816 = vmatpush2.msra.mxu0 0.0
  %1817 = vmatprep.subr.mxu0 0.0
  %1818 = vmatpush2.msra.mxu0 0.0
  %1819 = vmatprep.subr.mxu0 0.0
  %1820 = vmatpush2.msra.mxu0 0.0
  %1821 = vmatprep.subr.mxu0 0.0
  %1822 = vmatpush2.msra.mxu0 0.0
  %1823 = vmatprep.subr.mxu0 0.0
  %1824 = vmatpush2.msra.mxu0 0.0
  %1825 = vmatprep.subr.mxu0 0.0
  %1826 = vmatpush2.msra.mxu0 0.0
  %1827 = vmatprep.subr.mxu0 0.0
  %1828 = vmatpush2.msra.mxu0 0.0
  %1829 = vmatprep.subr.mxu0 0.0
  %1830 = vmatpush2.msra.mxu0 0.0
  %1831 = vmatprep.subr.mxu0 0.0
  %1832 = vmatpush2.msra.mxu0 0.0
  %1833 = vmatprep.subr.mxu0 0.0
  %1834 = vmatpush2.msra.mxu0 0.0
  %1835 = vmatprep.subr.mxu0 0.0
  %1836 = vmatpush2.msra.mxu0 0.0
  %1837 = vmatprep.subr.mxu0 0.0
  %1838 = vmatpush2.msra.mxu0 0.0
  %1839 = vmatprep.mubr.f32.mxu0 0.0
  %1840 = vmatmul.mubr.f32.gmra.mxu0 %v144
  %v1841 = vpop.f32.mrf.mxu0
  %v1842 = vadd.f32 %v1773, %v1841
  %v1843 = vpop.f32.mrf.mxu0
  %1844 = vmatprep.mubr.f32.mxu0 0.0
  %1845 = vmatmul.mubr.f32.gmra.mxu0 %v147
  %v1846 = vpop.f32.mrf.mxu0
  %v1847 = vadd.f32 %v1773, %v1846
  %v1848 = vpop.f32.mrf.mxu0
  %1849 = vdwg.mxu0
  %s1850 = scalar_lea.vmem %s3, 224
  %v1851 = vld [vmem:[%s1850] sm:$0xff]
  %v1852 = vld [vmem:[%s1850 + $0x8] sm:$0xff]
  %v1853 = vld [vmem:[%s1850 + $0x10] sm:$0xff]
  %v1854 = vld [vmem:[%s1850 + $0x18] sm:$0xff]
  %s1855 = scalar_lea.vmem %s4, 7
  %v1856 = vld [vmem:[%s1855] sm:$0x1]
  %v1858 = vlaneseq
  %v1859 = vshrl.u32 %v1858, 7
  %v1860 = vsub.s32 0, %v1859
  %v1861 = vrot.slane %v1856, %v1860
  %1863 = vmatprep.subr.mxu0 0.0
  %1864 = vmatpush1.msra.mxu0 0.0
  %1865 = vmatprep.subr.mxu0 0.0
  %1866 = vmatpush1.msra.mxu0 0.0
  %1867 = vmatprep.subr.mxu0 0.0
  %1868 = vmatpush1.msra.mxu0 0.0
  %1869 = vmatprep.subr.mxu0 0.0
  %1870 = vmatpush1.msra.mxu0 0.0
  %1871 = vmatprep.subr.mxu0 0.0
  %1872 = vmatpush1.msra.mxu0 0.0
  %1873 = vmatprep.subr.mxu0 0.0
  %1874 = vmatpush1.msra.mxu0 0.0
  %1875 = vmatprep.subr.mxu0 0.0
  %1876 = vmatpush1.msra.mxu0 0.0
  %1877 = vmatprep.subr.mxu0 0.0
  %1878 = vmatpush1.msra.mxu0 0.0
  %1879 = vmatprep.subr.mxu0 0.0
  %1880 = vmatpush1.msra.mxu0 0.0
  %1881 = vmatprep.subr.mxu0 0.0
  %1882 = vmatpush1.msra.mxu0 0.0
  %1883 = vmatprep.subr.mxu0 0.0
  %1884 = vmatpush1.msra.mxu0 0.0
  %1885 = vmatprep.subr.mxu0 0.0
  %1886 = vmatpush1.msra.mxu0 0.0
  %1887 = vmatprep.subr.mxu0 0.0
  %1888 = vmatpush1.msra.mxu0 %v1854
  %1889 = vmatprep.subr.mxu0 0.0
  %1890 = vmatpush1.msra.mxu0 %v1853
  %1891 = vmatprep.subr.mxu0 0.0
  %1892 = vmatpush1.msra.mxu0 %v1852
  %1893 = vmatprep.subr.mxu0 0.0
  %1894 = vmatpush1.msra.mxu0 %v1851
  %1895 = vmatprep.subr.mxu0 0.0
  %1896 = vmatpush2.msra.mxu0 0.0
  %1897 = vmatprep.subr.mxu0 0.0
  %1898 = vmatpush2.msra.mxu0 0.0
  %1899 = vmatprep.subr.mxu0 0.0
  %1900 = vmatpush2.msra.mxu0 0.0
  %1901 = vmatprep.subr.mxu0 0.0
  %1902 = vmatpush2.msra.mxu0 0.0
  %1903 = vmatprep.subr.mxu0 0.0
  %1904 = vmatpush2.msra.mxu0 0.0
  %1905 = vmatprep.subr.mxu0 0.0
  %1906 = vmatpush2.msra.mxu0 0.0
  %1907 = vmatprep.subr.mxu0 0.0
  %1908 = vmatpush2.msra.mxu0 0.0
  %1909 = vmatprep.subr.mxu0 0.0
  %1910 = vmatpush2.msra.mxu0 0.0
  %1911 = vmatprep.subr.mxu0 0.0
  %1912 = vmatpush2.msra.mxu0 0.0
  %1913 = vmatprep.subr.mxu0 0.0
  %1914 = vmatpush2.msra.mxu0 0.0
  %1915 = vmatprep.subr.mxu0 0.0
  %1916 = vmatpush2.msra.mxu0 0.0
  %1917 = vmatprep.subr.mxu0 0.0
  %1918 = vmatpush2.msra.mxu0 0.0
  %1919 = vmatprep.subr.mxu0 0.0
  %1920 = vmatpush2.msra.mxu0 0.0
  %1921 = vmatprep.subr.mxu0 0.0
  %1922 = vmatpush2.msra.mxu0 0.0
  %1923 = vmatprep.subr.mxu0 0.0
  %1924 = vmatpush2.msra.mxu0 0.0
  %1925 = vmatprep.subr.mxu0 0.0
  %1926 = vmatpush2.msra.mxu0 0.0
  %1927 = vmatprep.mubr.f32.mxu0 0.0
  %1928 = vmatmul.mubr.f32.gmra.mxu0 %v144
  %v1929 = vpop.f32.mrf.mxu0
  %v1930 = vadd.f32 %v1861, %v1929
  %v1931 = vpop.f32.mrf.mxu0
  %1932 = vmatprep.mubr.f32.mxu0 0.0
  %1933 = vmatmul.mubr.f32.gmra.mxu0 %v147
  %v1934 = vpop.f32.mrf.mxu0
  %v1935 = vadd.f32 %v1861, %v1934
  %v1936 = vpop.f32.mrf.mxu0
  %1937 = vdwg.mxu0
  %s1938 = scalar_lea.vmem %s3, 352
  %v1939 = vld [vmem:[%s1938] sm:$0xff]
  %v1940 = vld [vmem:[%s1938 + $0x8] sm:$0xff]
  %v1941 = vld [vmem:[%s1938 + $0x10] sm:$0xff]
  %v1942 = vld [vmem:[%s1938 + $0x18] sm:$0xff]
  %s1943 = scalar_lea.vmem %s4, 11
  %v1944 = vld [vmem:[%s1943] sm:$0x1]
  %v1946 = vlaneseq
  %v1947 = vshrl.u32 %v1946, 7
  %v1948 = vsub.s32 0, %v1947
  %v1949 = vrot.slane %v1944, %v1948
  %1951 = vmatprep.subr.mxu0 0.0
  %1952 = vmatpush1.msra.mxu0 0.0
  %1953 = vmatprep.subr.mxu0 0.0
  %1954 = vmatpush1.msra.mxu0 0.0
  %1955 = vmatprep.subr.mxu0 0.0
  %1956 = vmatpush1.msra.mxu0 0.0
  %1957 = vmatprep.subr.mxu0 0.0
  %1958 = vmatpush1.msra.mxu0 0.0
  %1959 = vmatprep.subr.mxu0 0.0
  %1960 = vmatpush1.msra.mxu0 0.0
  %1961 = vmatprep.subr.mxu0 0.0
  %1962 = vmatpush1.msra.mxu0 0.0
  %1963 = vmatprep.subr.mxu0 0.0
  %1964 = vmatpush1.msra.mxu0 0.0
  %1965 = vmatprep.subr.mxu0 0.0
  %1966 = vmatpush1.msra.mxu0 0.0
  %1967 = vmatprep.subr.mxu0 0.0
  %1968 = vmatpush1.msra.mxu0 0.0
  %1969 = vmatprep.subr.mxu0 0.0
  %1970 = vmatpush1.msra.mxu0 0.0
  %1971 = vmatprep.subr.mxu0 0.0
  %1972 = vmatpush1.msra.mxu0 0.0
  %1973 = vmatprep.subr.mxu0 0.0
  %1974 = vmatpush1.msra.mxu0 0.0
  %1975 = vmatprep.subr.mxu0 0.0
  %1976 = vmatpush1.msra.mxu0 %v1942
  %1977 = vmatprep.subr.mxu0 0.0
  %1978 = vmatpush1.msra.mxu0 %v1941
  %1979 = vmatprep.subr.mxu0 0.0
  %1980 = vmatpush1.msra.mxu0 %v1940
  %1981 = vmatprep.subr.mxu0 0.0
  %1982 = vmatpush1.msra.mxu0 %v1939
  %1983 = vmatprep.subr.mxu0 0.0
  %1984 = vmatpush2.msra.mxu0 0.0
  %1985 = vmatprep.subr.mxu0 0.0
  %1986 = vmatpush2.msra.mxu0 0.0
  %1987 = vmatprep.subr.mxu0 0.0
  %1988 = vmatpush2.msra.mxu0 0.0
  %1989 = vmatprep.subr.mxu0 0.0
  %1990 = vmatpush2.msra.mxu0 0.0
  %1991 = vmatprep.subr.mxu0 0.0
  %1992 = vmatpush2.msra.mxu0 0.0
  %1993 = vmatprep.subr.mxu0 0.0
  %1994 = vmatpush2.msra.mxu0 0.0
  %1995 = vmatprep.subr.mxu0 0.0
  %1996 = vmatpush2.msra.mxu0 0.0
  %1997 = vmatprep.subr.mxu0 0.0
  %1998 = vmatpush2.msra.mxu0 0.0
  %1999 = vmatprep.subr.mxu0 0.0
  %2000 = vmatpush2.msra.mxu0 0.0
  %2001 = vmatprep.subr.mxu0 0.0
  %2002 = vmatpush2.msra.mxu0 0.0
  %2003 = vmatprep.subr.mxu0 0.0
  %2004 = vmatpush2.msra.mxu0 0.0
  %2005 = vmatprep.subr.mxu0 0.0
  %2006 = vmatpush2.msra.mxu0 0.0
  %2007 = vmatprep.subr.mxu0 0.0
  %2008 = vmatpush2.msra.mxu0 0.0
  %2009 = vmatprep.subr.mxu0 0.0
  %2010 = vmatpush2.msra.mxu0 0.0
  %2011 = vmatprep.subr.mxu0 0.0
  %2012 = vmatpush2.msra.mxu0 0.0
  %2013 = vmatprep.subr.mxu0 0.0
  %2014 = vmatpush2.msra.mxu0 0.0
  %2015 = vmatprep.mubr.f32.mxu0 0.0
  %2016 = vmatmul.mubr.f32.gmra.mxu0 %v144
  %v2017 = vpop.f32.mrf.mxu0
  %v2018 = vadd.f32 %v1949, %v2017
  %v2019 = vpop.f32.mrf.mxu0
  %2020 = vmatprep.mubr.f32.mxu0 0.0
  %2021 = vmatmul.mubr.f32.gmra.mxu0 %v147
  %v2022 = vpop.f32.mrf.mxu0
  %v2023 = vadd.f32 %v1949, %v2022
  %v2024 = vpop.f32.mrf.mxu0
  %2025 = vdwg.mxu0
  %v2027 = vsel %vm400, %v1842, 0
  %v2030 = vsel %vm400, %v1847, 0
  %v2033 = vsel %vm400, %v1930, 0
  %v2036 = vsel %vm400, %v1935, 0
  %2038 = vmatprep.subr.mxu0 0.0
  %2039 = vmatpush1.xpose.msra.mxu0 0.0
  %2040 = vmatprep.subr.mxu0 0.0
  %2041 = vmatpush1.xpose.msra.mxu0 0.0
  %2042 = vmatprep.subr.mxu0 0.0
  %2043 = vmatpush1.xpose.msra.mxu0 0.0
  %2044 = vmatprep.subr.mxu0 0.0
  %2045 = vmatpush1.xpose.msra.mxu0 0.0
  %2046 = vmatprep.subr.mxu0 0.0
  %2047 = vmatpush1.xpose.msra.mxu0 0.0
  %2048 = vmatprep.subr.mxu0 0.0
  %2049 = vmatpush1.xpose.msra.mxu0 0.0
  %2050 = vmatprep.subr.mxu0 0.0
  %2051 = vmatpush1.xpose.msra.mxu0 0.0
  %2052 = vmatprep.subr.mxu0 0.0
  %2053 = vmatpush1.xpose.msra.mxu0 0.0
  %2054 = vmatprep.subr.mxu0 0.0
  %2055 = vmatpush1.xpose.msra.mxu0 0.0
  %2056 = vmatprep.subr.mxu0 0.0
  %2057 = vmatpush1.xpose.msra.mxu0 0.0
  %2058 = vmatprep.subr.mxu0 0.0
  %2059 = vmatpush1.xpose.msra.mxu0 0.0
  %2060 = vmatprep.subr.mxu0 0.0
  %2061 = vmatpush1.xpose.msra.mxu0 0.0
  %2062 = vmatprep.subr.mxu0 0.0
  %2063 = vmatpush1.xpose.msra.mxu0 0.0
  %2064 = vmatprep.subr.mxu0 0.0
  %2065 = vmatpush1.xpose.msra.mxu0 0.0
  %2066 = vmatprep.subr.mxu0 0.0
  %2067 = vmatpush1.xpose.msra.mxu0 %v2036
  %2068 = vmatprep.subr.mxu0 0.0
  %2069 = vmatpush1.xpose.msra.mxu0 %v2033
  %2070 = vmatprep.subr.mxu0 0.0
  %2071 = vmatpush2.xpose.msra.mxu0 0.0
  %2072 = vmatprep.subr.mxu0 0.0
  %2073 = vmatpush2.xpose.msra.mxu0 0.0
  %2074 = vmatprep.subr.mxu0 0.0
  %2075 = vmatpush2.xpose.msra.mxu0 0.0
  %2076 = vmatprep.subr.mxu0 0.0
  %2077 = vmatpush2.xpose.msra.mxu0 0.0
  %2078 = vmatprep.subr.mxu0 0.0
  %2079 = vmatpush2.xpose.msra.mxu0 0.0
  %2080 = vmatprep.subr.mxu0 0.0
  %2081 = vmatpush2.xpose.msra.mxu0 0.0
  %2082 = vmatprep.subr.mxu0 0.0
  %2083 = vmatpush2.xpose.msra.mxu0 0.0
  %2084 = vmatprep.subr.mxu0 0.0
  %2085 = vmatpush2.xpose.msra.mxu0 0.0
  %2086 = vmatprep.subr.mxu0 0.0
  %2087 = vmatpush2.xpose.msra.mxu0 0.0
  %2088 = vmatprep.subr.mxu0 0.0
  %2089 = vmatpush2.xpose.msra.mxu0 0.0
  %2090 = vmatprep.subr.mxu0 0.0
  %2091 = vmatpush2.xpose.msra.mxu0 0.0
  %2092 = vmatprep.subr.mxu0 0.0
  %2093 = vmatpush2.xpose.msra.mxu0 0.0
  %2094 = vmatprep.subr.mxu0 0.0
  %2095 = vmatpush2.xpose.msra.mxu0 0.0
  %2096 = vmatprep.subr.mxu0 0.0
  %2097 = vmatpush2.xpose.msra.mxu0 0.0
  %2098 = vmatprep.subr.mxu0 0.0
  %2099 = vmatpush2.xpose.msra.mxu0 0.0
  %2100 = vmatprep.subr.mxu0 0.0
  %2101 = vmatpush2.xpose.msra.mxu0 0.0
  %2102 = vmatprep.mubr.f32.mxu0 0.0
  %2103 = vmatmul.mubr.f32.gmra.mxu0 %v2027
  %v2104 = vpop.f32.mrf.mxu0
  %v2105 = vadd.f32 0.0, %v2104
  %v2106 = vpop.f32.mrf.mxu0
  %2107 = vmatprep.mubr.f32.mxu0 0.0
  %2108 = vmatmul.mubr.f32.gmra.mxu0 %v2030
  %v2109 = vpop.f32.mrf.mxu0
  %v2110 = vadd.f32 0.0, %v2109
  %v2111 = vpop.f32.mrf.mxu0
  %2112 = vdwg.mxu0
  %v2113 = vmul.f32 %v2105, 0.35355338
  %v2114 = vmul.f32 %v2110, 0.35355338
  %v2115 = vadd.f32 %v2113, %v129
  %v2116 = vadd.f32 %v2114, %v130
  %v2117 = vsel %vm492, %v2115, -inf
  %2118 = vmax.xlane.f32.xlu0 %v2117
  %v2119 = vpop.xlane.xlu0 %2118
  %v2120 = vsel %vm492, %v2116, -inf
  %2121 = vmax.xlane.f32.xlu0 %v2120
  %v2122 = vpop.xlane.xlu0 %2121
  %v2123 = vsub.f32 %v2115, %v2119
  %v2124 = vsub.f32 %v2116, %v2122
  %v2125 = vmul.f32 %v2123, 1.442695
  %v2126 = vpow.pop %v2125
  %v2127 = vmul.f32 %v2124, 1.442695
  %v2128 = vpow.pop %v2127
  %v2129 = vsel %vm492, %v2126, 0.0
  %2130 = vadd.xlane.f32.xlu0 %v2129
  %v2131 = vpop.xlane.xlu0 %2130
  %v2132 = vsel %vm492, %v2128, 0.0
  %2133 = vadd.xlane.f32.xlu0 %v2132
  %v2134 = vpop.xlane.xlu0 %2133
  %v2135 = vrcp.pop %v2131
  %v2136 = vrcp.pop %v2134
  %v2137 = vmul.f32 %v2126, %v2135
  %v2138 = vmul.f32 %v2128, %v2136
  %v2140 = vsel %vm492, %v2137, 0
  %v2143 = vsel %vm492, %v2138, 0
  %2145 = vmatprep.subr.mxu0 0.0
  %2146 = vmatpush1.msra.mxu0 0.0
  %2147 = vmatprep.subr.mxu0 0.0
  %2148 = vmatpush1.msra.mxu0 0.0
  %2149 = vmatprep.subr.mxu0 0.0
  %2150 = vmatpush1.msra.mxu0 0.0
  %2151 = vmatprep.subr.mxu0 0.0
  %2152 = vmatpush1.msra.mxu0 0.0
  %2153 = vmatprep.subr.mxu0 0.0
  %2154 = vmatpush1.msra.mxu0 0.0
  %2155 = vmatprep.subr.mxu0 0.0
  %2156 = vmatpush1.msra.mxu0 0.0
  %2157 = vmatprep.subr.mxu0 0.0
  %2158 = vmatpush1.msra.mxu0 0.0
  %2159 = vmatprep.subr.mxu0 0.0
  %2160 = vmatpush1.msra.mxu0 0.0
  %2161 = vmatprep.subr.mxu0 0.0
  %2162 = vmatpush1.msra.mxu0 0.0
  %2163 = vmatprep.subr.mxu0 0.0
  %2164 = vmatpush1.msra.mxu0 0.0
  %2165 = vmatprep.subr.mxu0 0.0
  %2166 = vmatpush1.msra.mxu0 0.0
  %2167 = vmatprep.subr.mxu0 0.0
  %2168 = vmatpush1.msra.mxu0 0.0
  %2169 = vmatprep.subr.mxu0 0.0
  %2170 = vmatpush1.msra.mxu0 0.0
  %2171 = vmatprep.subr.mxu0 0.0
  %2172 = vmatpush1.msra.mxu0 0.0
  %2173 = vmatprep.subr.mxu0 0.0
  %2174 = vmatpush1.msra.mxu0 %v2023
  %2175 = vmatprep.subr.mxu0 0.0
  %2176 = vmatpush1.msra.mxu0 %v2018
  %2177 = vmatprep.subr.mxu0 0.0
  %2178 = vmatpush2.msra.mxu0 0.0
  %2179 = vmatprep.subr.mxu0 0.0
  %2180 = vmatpush2.msra.mxu0 0.0
  %2181 = vmatprep.subr.mxu0 0.0
  %2182 = vmatpush2.msra.mxu0 0.0
  %2183 = vmatprep.subr.mxu0 0.0
  %2184 = vmatpush2.msra.mxu0 0.0
  %2185 = vmatprep.subr.mxu0 0.0
  %2186 = vmatpush2.msra.mxu0 0.0
  %2187 = vmatprep.subr.mxu0 0.0
  %2188 = vmatpush2.msra.mxu0 0.0
  %2189 = vmatprep.subr.mxu0 0.0
  %2190 = vmatpush2.msra.mxu0 0.0
  %2191 = vmatprep.subr.mxu0 0.0
  %2192 = vmatpush2.msra.mxu0 0.0
  %2193 = vmatprep.subr.mxu0 0.0
  %2194 = vmatpush2.msra.mxu0 0.0
  %2195 = vmatprep.subr.mxu0 0.0
  %2196 = vmatpush2.msra.mxu0 0.0
  %2197 = vmatprep.subr.mxu0 0.0
  %2198 = vmatpush2.msra.mxu0 0.0
  %2199 = vmatprep.subr.mxu0 0.0
  %2200 = vmatpush2.msra.mxu0 0.0
  %2201 = vmatprep.subr.mxu0 0.0
  %2202 = vmatpush2.msra.mxu0 0.0
  %2203 = vmatprep.subr.mxu0 0.0
  %2204 = vmatpush2.msra.mxu0 0.0
  %2205 = vmatprep.subr.mxu0 0.0
  %2206 = vmatpush2.msra.mxu0 0.0
  %2207 = vmatprep.subr.mxu0 0.0
  %2208 = vmatpush2.msra.mxu0 0.0
  %2209 = vmatprep.mubr.f32.mxu0 0.0
  %2210 = vmatmul.mubr.f32.gmra.mxu0 %v2140
  %v2211 = vpop.f32.mrf.mxu0
  %v2212 = vadd.f32 0.0, %v2211
  %v2213 = vpop.f32.mrf.mxu0
  %2214 = vmatprep.mubr.f32.mxu0 0.0
  %2215 = vmatmul.mubr.f32.gmra.mxu0 %v2143
  %v2216 = vpop.f32.mrf.mxu0
  %v2217 = vadd.f32 0.0, %v2216
  %v2218 = vpop.f32.mrf.mxu0
  %2219 = vdwg.mxu0
  %s2220 = scalar_lea.vmem %s5, 24
  %v2221 = vld [vmem:[%s2220] sm:$0xff]
  %v2223 = vsel %vm400, %v2212, 0
  %v2226 = vsel %vm400, %v2217, 0
  %2228 = vmatprep.subr.mxu0 0.0
  %2229 = vmatpush1.msra.mxu0 0.0
  %2230 = vmatprep.subr.mxu0 0.0
  %2231 = vmatpush1.msra.mxu0 0.0
  %2232 = vmatprep.subr.mxu0 0.0
  %2233 = vmatpush1.msra.mxu0 0.0
  %2234 = vmatprep.subr.mxu0 0.0
  %2235 = vmatpush1.msra.mxu0 0.0
  %2236 = vmatprep.subr.mxu0 0.0
  %2237 = vmatpush1.msra.mxu0 0.0
  %2238 = vmatprep.subr.mxu0 0.0
  %2239 = vmatpush1.msra.mxu0 0.0
  %2240 = vmatprep.subr.mxu0 0.0
  %2241 = vmatpush1.msra.mxu0 0.0
  %2242 = vmatprep.subr.mxu0 0.0
  %2243 = vmatpush1.msra.mxu0 0.0
  %2244 = vmatprep.subr.mxu0 0.0
  %2245 = vmatpush1.msra.mxu0 0.0
  %2246 = vmatprep.subr.mxu0 0.0
  %2247 = vmatpush1.msra.mxu0 0.0
  %2248 = vmatprep.subr.mxu0 0.0
  %2249 = vmatpush1.msra.mxu0 0.0
  %2250 = vmatprep.subr.mxu0 0.0
  %2251 = vmatpush1.msra.mxu0 0.0
  %2252 = vmatprep.subr.mxu0 0.0
  %2253 = vmatpush1.msra.mxu0 0.0
  %2254 = vmatprep.subr.mxu0 0.0
  %2255 = vmatpush1.msra.mxu0 0.0
  %2256 = vmatprep.subr.mxu0 0.0
  %2257 = vmatpush1.msra.mxu0 0.0
  %2258 = vmatprep.subr.mxu0 0.0
  %2259 = vmatpush1.msra.mxu0 %v2221
  %2260 = vmatprep.subr.mxu0 0.0
  %2261 = vmatpush2.msra.mxu0 0.0
  %2262 = vmatprep.subr.mxu0 0.0
  %2263 = vmatpush2.msra.mxu0 0.0
  %2264 = vmatprep.subr.mxu0 0.0
  %2265 = vmatpush2.msra.mxu0 0.0
  %2266 = vmatprep.subr.mxu0 0.0
  %2267 = vmatpush2.msra.mxu0 0.0
  %2268 = vmatprep.subr.mxu0 0.0
  %2269 = vmatpush2.msra.mxu0 0.0
  %2270 = vmatprep.subr.mxu0 0.0
  %2271 = vmatpush2.msra.mxu0 0.0
  %2272 = vmatprep.subr.mxu0 0.0
  %2273 = vmatpush2.msra.mxu0 0.0
  %2274 = vmatprep.subr.mxu0 0.0
  %2275 = vmatpush2.msra.mxu0 0.0
  %2276 = vmatprep.subr.mxu0 0.0
  %2277 = vmatpush2.msra.mxu0 0.0
  %2278 = vmatprep.subr.mxu0 0.0
  %2279 = vmatpush2.msra.mxu0 0.0
  %2280 = vmatprep.subr.mxu0 0.0
  %2281 = vmatpush2.msra.mxu0 0.0
  %2282 = vmatprep.subr.mxu0 0.0
  %2283 = vmatpush2.msra.mxu0 0.0
  %2284 = vmatprep.subr.mxu0 0.0
  %2285 = vmatpush2.msra.mxu0 0.0
  %2286 = vmatprep.subr.mxu0 0.0
  %2287 = vmatpush2.msra.mxu0 0.0
  %2288 = vmatprep.subr.mxu0 0.0
  %2289 = vmatpush2.msra.mxu0 0.0
  %2290 = vmatprep.subr.mxu0 0.0
  %2291 = vmatpush2.msra.mxu0 0.0
  %2292 = vmatprep.mubr.f32.mxu0 0.0
  %2293 = vmatmul.mubr.f32.gmra.mxu0 %v2223
  %v2294 = vpop.f32.mrf.mxu0
  %v2295 = vadd.f32 0.0, %v2294
  %v2296 = vpop.f32.mrf.mxu0
  %2297 = vmatprep.mubr.f32.mxu0 0.0
  %2298 = vmatmul.mubr.f32.gmra.mxu0 %v2226
  %v2299 = vpop.f32.mrf.mxu0
  %v2300 = vadd.f32 0.0, %v2299
  %v2301 = vpop.f32.mrf.mxu0
  %2302 = vdwg.mxu0
  %v2303 = vadd.f32 %v1760, %v2295
  %v2304 = vadd.f32 %v1761, %v2300
  %v2305 = vld [vmem:[%s8] sm:$0x1]
  %s2306 = scalar_lea.vmem %s8, 1
  %v2307 = vld [vmem:[%s2306] sm:$0x1]
  %s2308 = scalar_lea.vmem %s8, 2
  %v2309 = vld [vmem:[%s2308] sm:$0x1]
  %s2310 = scalar_lea.vmem %s8, 3
  %v2311 = vld [vmem:[%s2310] sm:$0x1]
  %s2312 = scalar_lea.vmem %s8, 4
  %v2313 = vld [vmem:[%s2312] sm:$0x1]
  %s2314 = scalar_lea.vmem %s8, 5
  %v2315 = vld [vmem:[%s2314] sm:$0x1]
  %s2316 = scalar_lea.vmem %s8, 6
  %v2317 = vld [vmem:[%s2316] sm:$0x1]
  %v2319 = vlaneseq
  %v2320 = vshrl.u32 %v2319, 7
  %v2321 = vsub.s32 0, %v2320
  %v2322 = vrot.slane %v2307, %v2321
  %v2324 = vadd.f32 %v2303, %v2322
  %v2325 = vadd.f32 %v2304, %v2322
  %v2326 = vadd.f32 %v121, %v2324
  %v2327 = vadd.f32 %v126, %v2325
  %v2328 = vsel %vm142, %v2326, 0.0
  %2329 = vadd.xlane.f32.xlu0 %v2328
  %v2330 = vpop.xlane.xlu0 %2329
  %v2331 = vsel %vm142, %v2327, 0.0
  %2332 = vadd.xlane.f32.xlu0 %v2331
  %v2333 = vpop.xlane.xlu0 %2332
  %v2334 = vrcp.pop 32.0
  %v2335 = vmul.f32 %v2330, %v2334
  %v2336 = vmul.f32 %v2333, %v2334
  %v2337 = vsub.f32 %v2326, %v2335
  %v2338 = vsub.f32 %v2327, %v2336
  %v2339 = vmul.f32 %v2337, %v2337
  %v2340 = vmul.f32 %v2338, %v2338
  %v2341 = vsel %vm142, %v2339, 0.0
  %2342 = vadd.xlane.f32.xlu0 %v2341
  %v2343 = vpop.xlane.xlu0 %2342
  %v2344 = vsel %vm142, %v2340, 0.0
  %2345 = vadd.xlane.f32.xlu0 %v2344
  %v2346 = vpop.xlane.xlu0 %2345
  %v2347 = vmul.f32 %v2343, %v2334
  %v2348 = vmul.f32 %v2346, %v2334
  %v2349 = vadd.f32 %v2347, 1e-05
  %v2350 = vadd.f32 %v2348, 1e-05
  %v2351 = vrsqrt.pop %v2349
  %v2352 = vrsqrt.pop %v2350
  %v2353 = vmul.f32 %v2337, %v2351
  %v2354 = vmul.f32 %v2338, %v2352
  %v2356 = vlaneseq
  %v2357 = vshrl.u32 %v2356, 7
  %v2358 = vsub.s32 0, %v2357
  %v2359 = vrot.slane %v2311, %v2358
  %v2361 = vmul.f32 %v2353, %v2359
  %v2362 = vmul.f32 %v2354, %v2359
  %v2364 = vlaneseq
  %v2365 = vshrl.u32 %v2364, 7
  %v2366 = vsub.s32 0, %v2365
  %v2367 = vrot.slane %v2313, %v2366
  %v2369 = vadd.f32 %v2361, %v2367
  %v2370 = vadd.f32 %v2362, %v2367
  %v2371 = vld [vmem:[%s6] sm:$0xff]
  %v2372 = vld [vmem:[%s6 + $0x8] sm:$0xff]
  %v2373 = vld [vmem:[%s6 + $0x10] sm:$0xff]
  %v2374 = vld [vmem:[%s6 + $0x18] sm:$0xff]
  %v2376 = vlaneseq
  %v2377 = vshrl.u32 %v2376, 7
  %v2378 = vsub.s32 0, %v2377
  %v2379 = vrot.slane %v2305, %v2378
  %v2382 = vsel %vm142, %v2369, 0
  %v2385 = vsel %vm142, %v2370, 0
  %2387 = vmatprep.subr.mxu0 0.0
  %2388 = vmatpush1.msra.mxu0 0.0
  %2389 = vmatprep.subr.mxu0 0.0
  %2390 = vmatpush1.msra.mxu0 0.0
  %2391 = vmatprep.subr.mxu0 0.0
  %2392 = vmatpush1.msra.mxu0 0.0
  %2393 = vmatprep.subr.mxu0 0.0
  %2394 = vmatpush1.msra.mxu0 0.0
  %2395 = vmatprep.subr.mxu0 0.0
  %2396 = vmatpush1.msra.mxu0 0.0
  %2397 = vmatprep.subr.mxu0 0.0
  %2398 = vmatpush1.msra.mxu0 0.0
  %2399 = vmatprep.subr.mxu0 0.0
  %2400 = vmatpush1.msra.mxu0 0.0
  %2401 = vmatprep.subr.mxu0 0.0
  %2402 = vmatpush1.msra.mxu0 0.0
  %2403 = vmatprep.subr.mxu0 0.0
  %2404 = vmatpush1.msra.mxu0 0.0
  %2405 = vmatprep.subr.mxu0 0.0
  %2406 = vmatpush1.msra.mxu0 0.0
  %2407 = vmatprep.subr.mxu0 0.0
  %2408 = vmatpush1.msra.mxu0 0.0
  %2409 = vmatprep.subr.mxu0 0.0
  %2410 = vmatpush1.msra.mxu0 0.0
  %2411 = vmatprep.subr.mxu0 0.0
  %2412 = vmatpush1.msra.mxu0 %v2374
  %2413 = vmatprep.subr.mxu0 0.0
  %2414 = vmatpush1.msra.mxu0 %v2373
  %2415 = vmatprep.subr.mxu0 0.0
  %2416 = vmatpush1.msra.mxu0 %v2372
  %2417 = vmatprep.subr.mxu0 0.0
  %2418 = vmatpush1.msra.mxu0 %v2371
  %2419 = vmatprep.subr.mxu0 0.0
  %2420 = vmatpush2.msra.mxu0 0.0
  %2421 = vmatprep.subr.mxu0 0.0
  %2422 = vmatpush2.msra.mxu0 0.0
  %2423 = vmatprep.subr.mxu0 0.0
  %2424 = vmatpush2.msra.mxu0 0.0
  %2425 = vmatprep.subr.mxu0 0.0
  %2426 = vmatpush2.msra.mxu0 0.0
  %2427 = vmatprep.subr.mxu0 0.0
  %2428 = vmatpush2.msra.mxu0 0.0
  %2429 = vmatprep.subr.mxu0 0.0
  %2430 = vmatpush2.msra.mxu0 0.0
  %2431 = vmatprep.subr.mxu0 0.0
  %2432 = vmatpush2.msra.mxu0 0.0
  %2433 = vmatprep.subr.mxu0 0.0
  %2434 = vmatpush2.msra.mxu0 0.0
  %2435 = vmatprep.subr.mxu0 0.0
  %2436 = vmatpush2.msra.mxu0 0.0
  %2437 = vmatprep.subr.mxu0 0.0
  %2438 = vmatpush2.msra.mxu0 0.0
  %2439 = vmatprep.subr.mxu0 0.0
  %2440 = vmatpush2.msra.mxu0 0.0
  %2441 = vmatprep.subr.mxu0 0.0
  %2442 = vmatpush2.msra.mxu0 0.0
  %2443 = vmatprep.subr.mxu0 0.0
  %2444 = vmatpush2.msra.mxu0 0.0
  %2445 = vmatprep.subr.mxu0 0.0
  %2446 = vmatpush2.msra.mxu0 0.0
  %2447 = vmatprep.subr.mxu0 0.0
  %2448 = vmatpush2.msra.mxu0 0.0
  %2449 = vmatprep.subr.mxu0 0.0
  %2450 = vmatpush2.msra.mxu0 0.0
  %2451 = vmatprep.mubr.f32.mxu0 0.0
  %2452 = vmatmul.mubr.f32.gmra.mxu0 %v2382
  %v2453 = vpop.f32.mrf.mxu0
  %v2454 = vadd.f32 %v2379, %v2453
  %v2455 = vpop.f32.mrf.mxu0
  %2456 = vmatprep.mubr.f32.mxu0 0.0
  %2457 = vmatmul.mubr.f32.gmra.mxu0 %v2385
  %v2458 = vpop.f32.mrf.mxu0
  %v2459 = vadd.f32 %v2379, %v2458
  %v2460 = vpop.f32.mrf.mxu0
  %2461 = vdwg.mxu0
  %v2462 = vmax.f32 %v2454, 0.0
  %v2463 = vmax.f32 %v2459, 0.0
  %v2464 = vld [vmem:[%s7] sm:$0xff]
  %v2465 = vld [vmem:[%s7 + $0x8] sm:$0xff]
  %v2466 = vld [vmem:[%s7 + $0x10] sm:$0xff]
  %v2467 = vld [vmem:[%s7 + $0x18] sm:$0xff]
  %v2468 = vld [vmem:[%s7 + $0x20] sm:$0xff]
  %v2469 = vld [vmem:[%s7 + $0x28] sm:$0xff]
  %v2470 = vld [vmem:[%s7 + $0x30] sm:$0xff]
  %v2471 = vld [vmem:[%s7 + $0x38] sm:$0xff]
  %v2473 = vlaneseq
  %v2474 = vshrl.u32 %v2473, 7
  %v2475 = vsub.s32 0, %v2474
  %v2476 = vrot.slane %v2309, %v2475
  %vm2478 = vcmask 523264
  %v2480 = vsel %vm2478, %v2462, 0
  %v2483 = vsel %vm2478, %v2463, 0
  %2485 = vmatprep.subr.mxu0 0.0
  %2486 = vmatpush1.msra.mxu0 0.0
  %2487 = vmatprep.subr.mxu0 0.0
  %2488 = vmatpush1.msra.mxu0 0.0
  %2489 = vmatprep.subr.mxu0 0.0
  %2490 = vmatpush1.msra.mxu0 0.0
  %2491 = vmatprep.subr.mxu0 0.0
  %2492 = vmatpush1.msra.mxu0 0.0
  %2493 = vmatprep.subr.mxu0 0.0
  %2494 = vmatpush1.msra.mxu0 0.0
  %2495 = vmatprep.subr.mxu0 0.0
  %2496 = vmatpush1.msra.mxu0 0.0
  %2497 = vmatprep.subr.mxu0 0.0
  %2498 = vmatpush1.msra.mxu0 0.0
  %2499 = vmatprep.subr.mxu0 0.0
  %2500 = vmatpush1.msra.mxu0 0.0
  %2501 = vmatprep.subr.mxu0 0.0
  %2502 = vmatpush1.msra.mxu0 %v2471
  %2503 = vmatprep.subr.mxu0 0.0
  %2504 = vmatpush1.msra.mxu0 %v2470
  %2505 = vmatprep.subr.mxu0 0.0
  %2506 = vmatpush1.msra.mxu0 %v2469
  %2507 = vmatprep.subr.mxu0 0.0
  %2508 = vmatpush1.msra.mxu0 %v2468
  %2509 = vmatprep.subr.mxu0 0.0
  %2510 = vmatpush1.msra.mxu0 %v2467
  %2511 = vmatprep.subr.mxu0 0.0
  %2512 = vmatpush1.msra.mxu0 %v2466
  %2513 = vmatprep.subr.mxu0 0.0
  %2514 = vmatpush1.msra.mxu0 %v2465
  %2515 = vmatprep.subr.mxu0 0.0
  %2516 = vmatpush1.msra.mxu0 %v2464
  %2517 = vmatprep.subr.mxu0 0.0
  %2518 = vmatpush2.msra.mxu0 0.0
  %2519 = vmatprep.subr.mxu0 0.0
  %2520 = vmatpush2.msra.mxu0 0.0
  %2521 = vmatprep.subr.mxu0 0.0
  %2522 = vmatpush2.msra.mxu0 0.0
  %2523 = vmatprep.subr.mxu0 0.0
  %2524 = vmatpush2.msra.mxu0 0.0
  %2525 = vmatprep.subr.mxu0 0.0
  %2526 = vmatpush2.msra.mxu0 0.0
  %2527 = vmatprep.subr.mxu0 0.0
  %2528 = vmatpush2.msra.mxu0 0.0
  %2529 = vmatprep.subr.mxu0 0.0
  %2530 = vmatpush2.msra.mxu0 0.0
  %2531 = vmatprep.subr.mxu0 0.0
  %2532 = vmatpush2.msra.mxu0 0.0
  %2533 = vmatprep.subr.mxu0 0.0
  %2534 = vmatpush2.msra.mxu0 0.0
  %2535 = vmatprep.subr.mxu0 0.0
  %2536 = vmatpush2.msra.mxu0 0.0
  %2537 = vmatprep.subr.mxu0 0.0
  %2538 = vmatpush2.msra.mxu0 0.0
  %2539 = vmatprep.subr.mxu0 0.0
  %2540 = vmatpush2.msra.mxu0 0.0
  %2541 = vmatprep.subr.mxu0 0.0
  %2542 = vmatpush2.msra.mxu0 0.0
  %2543 = vmatprep.subr.mxu0 0.0
  %2544 = vmatpush2.msra.mxu0 0.0
  %2545 = vmatprep.subr.mxu0 0.0
  %2546 = vmatpush2.msra.mxu0 0.0
  %2547 = vmatprep.subr.mxu0 0.0
  %2548 = vmatpush2.msra.mxu0 0.0
  %2549 = vmatprep.mubr.f32.mxu0 0.0
  %2550 = vmatmul.mubr.f32.gmra.mxu0 %v2480
  %v2551 = vpop.f32.mrf.mxu0
  %v2552 = vadd.f32 %v2476, %v2551
  %v2553 = vpop.f32.mrf.mxu0
  %2554 = vmatprep.mubr.f32.mxu0 0.0
  %2555 = vmatmul.mubr.f32.gmra.mxu0 %v2483
  %v2556 = vpop.f32.mrf.mxu0
  %v2557 = vadd.f32 %v2476, %v2556
  %v2558 = vpop.f32.mrf.mxu0
  %2559 = vdwg.mxu0
  %v2560 = vadd.f32 %v2369, %v2552
  %v2561 = vadd.f32 %v2370, %v2557
  %v2562 = vsel %vm142, %v2560, 0.0
  %2563 = vadd.xlane.f32.xlu0 %v2562
  %v2564 = vpop.xlane.xlu0 %2563
  %v2565 = vsel %vm142, %v2561, 0.0
  %2566 = vadd.xlane.f32.xlu0 %v2565
  %v2567 = vpop.xlane.xlu0 %2566
  %v2568 = vmul.f32 %v2564, %v2334
  %v2569 = vmul.f32 %v2567, %v2334
  %v2570 = vsub.f32 %v2560, %v2568
  %v2571 = vsub.f32 %v2561, %v2569
  %v2572 = vmul.f32 %v2570, %v2570
  %v2573 = vmul.f32 %v2571, %v2571
  %v2574 = vsel %vm142, %v2572, 0.0
  %2575 = vadd.xlane.f32.xlu0 %v2574
  %v2576 = vpop.xlane.xlu0 %2575
  %v2577 = vsel %vm142, %v2573, 0.0
  %2578 = vadd.xlane.f32.xlu0 %v2577
  %v2579 = vpop.xlane.xlu0 %2578
  %v2580 = vmul.f32 %v2576, %v2334
  %v2581 = vmul.f32 %v2579, %v2334
  %v2582 = vadd.f32 %v2580, 1e-05
  %v2583 = vadd.f32 %v2581, 1e-05
  %v2584 = vrsqrt.pop %v2582
  %v2585 = vrsqrt.pop %v2583
  %v2586 = vmul.f32 %v2570, %v2584
  %v2587 = vmul.f32 %v2571, %v2585
  %v2589 = vlaneseq
  %v2590 = vshrl.u32 %v2589, 7
  %v2591 = vsub.s32 0, %v2590
  %v2592 = vrot.slane %v2315, %v2591
  %v2594 = vmul.f32 %v2586, %v2592
  %v2595 = vmul.f32 %v2587, %v2592
  %v2597 = vlaneseq
  %v2598 = vshrl.u32 %v2597, 7
  %v2599 = vsub.s32 0, %v2598
  %v2600 = vrot.slane %v2317, %v2599
  %v2602 = vadd.f32 %v2594, %v2600
  %v2603 = vadd.f32 %v2595, %v2600
  %s2604 = scalar_lea.vmem %s3, 384
  %v2605 = vld [vmem:[%s2604] sm:$0xff]
  %v2606 = vld [vmem:[%s2604 + $0x8] sm:$0xff]
  %v2607 = vld [vmem:[%s2604 + $0x10] sm:$0xff]
  %v2608 = vld [vmem:[%s2604 + $0x18] sm:$0xff]
  %s2609 = scalar_lea.vmem %s4, 12
  %v2610 = vld [vmem:[%s2609] sm:$0x1]
  %v2612 = vlaneseq
  %v2613 = vshrl.u32 %v2612, 7
  %v2614 = vsub.s32 0, %v2613
  %v2615 = vrot.slane %v2610, %v2614
  %v2618 = vsel %vm142, %v2602, 0
  %v2621 = vsel %vm142, %v2603, 0
  %2623 = vmatprep.subr.mxu0 0.0
  %2624 = vmatpush1.msra.mxu0 0.0
  %2625 = vmatprep.subr.mxu0 0.0
  %2626 = vmatpush1.msra.mxu0 0.0
  %2627 = vmatprep.subr.mxu0 0.0
  %2628 = vmatpush1.msra.mxu0 0.0
  %2629 = vmatprep.subr.mxu0 0.0
  %2630 = vmatpush1.msra.mxu0 0.0
  %2631 = vmatprep.subr.mxu0 0.0
  %2632 = vmatpush1.msra.mxu0 0.0
  %2633 = vmatprep.subr.mxu0 0.0
  %2634 = vmatpush1.msra.mxu0 0.0
  %2635 = vmatprep.subr.mxu0 0.0
  %2636 = vmatpush1.msra.mxu0 0.0
  %2637 = vmatprep.subr.mxu0 0.0
  %2638 = vmatpush1.msra.mxu0 0.0
  %2639 = vmatprep.subr.mxu0 0.0
  %2640 = vmatpush1.msra.mxu0 0.0
  %2641 = vmatprep.subr.mxu0 0.0
  %2642 = vmatpush1.msra.mxu0 0.0
  %2643 = vmatprep.subr.mxu0 0.0
  %2644 = vmatpush1.msra.mxu0 0.0
  %2645 = vmatprep.subr.mxu0 0.0
  %2646 = vmatpush1.msra.mxu0 0.0
  %2647 = vmatprep.subr.mxu0 0.0
  %2648 = vmatpush1.msra.mxu0 %v2608
  %2649 = vmatprep.subr.mxu0 0.0
  %2650 = vmatpush1.msra.mxu0 %v2607
  %2651 = vmatprep.subr.mxu0 0.0
  %2652 = vmatpush1.msra.mxu0 %v2606
  %2653 = vmatprep.subr.mxu0 0.0
  %2654 = vmatpush1.msra.mxu0 %v2605
  %2655 = vmatprep.subr.mxu0 0.0
  %2656 = vmatpush2.msra.mxu0 0.0
  %2657 = vmatprep.subr.mxu0 0.0
  %2658 = vmatpush2.msra.mxu0 0.0
  %2659 = vmatprep.subr.mxu0 0.0
  %2660 = vmatpush2.msra.mxu0 0.0
  %2661 = vmatprep.subr.mxu0 0.0
  %2662 = vmatpush2.msra.mxu0 0.0
  %2663 = vmatprep.subr.mxu0 0.0
  %2664 = vmatpush2.msra.mxu0 0.0
  %2665 = vmatprep.subr.mxu0 0.0
  %2666 = vmatpush2.msra.mxu0 0.0
  %2667 = vmatprep.subr.mxu0 0.0
  %2668 = vmatpush2.msra.mxu0 0.0
  %2669 = vmatprep.subr.mxu0 0.0
  %2670 = vmatpush2.msra.mxu0 0.0
  %2671 = vmatprep.subr.mxu0 0.0
  %2672 = vmatpush2.msra.mxu0 0.0
  %2673 = vmatprep.subr.mxu0 0.0
  %2674 = vmatpush2.msra.mxu0 0.0
  %2675 = vmatprep.subr.mxu0 0.0
  %2676 = vmatpush2.msra.mxu0 0.0
  %2677 = vmatprep.subr.mxu0 0.0
  %2678 = vmatpush2.msra.mxu0 0.0
  %2679 = vmatprep.subr.mxu0 0.0
  %2680 = vmatpush2.msra.mxu0 0.0
  %2681 = vmatprep.subr.mxu0 0.0
  %2682 = vmatpush2.msra.mxu0 0.0
  %2683 = vmatprep.subr.mxu0 0.0
  %2684 = vmatpush2.msra.mxu0 0.0
  %2685 = vmatprep.subr.mxu0 0.0
  %2686 = vmatpush2.msra.mxu0 0.0
  %2687 = vmatprep.mubr.f32.mxu0 0.0
  %2688 = vmatmul.mubr.f32.gmra.mxu0 %v2618
  %v2689 = vpop.f32.mrf.mxu0
  %v2690 = vadd.f32 %v2615, %v2689
  %v2691 = vpop.f32.mrf.mxu0
  %2692 = vmatprep.mubr.f32.mxu0 0.0
  %2693 = vmatmul.mubr.f32.gmra.mxu0 %v2621
  %v2694 = vpop.f32.mrf.mxu0
  %v2695 = vadd.f32 %v2615, %v2694
  %v2696 = vpop.f32.mrf.mxu0
  %2697 = vdwg.mxu0
  %s2698 = scalar_lea.vmem %s3, 512
  %v2699 = vld [vmem:[%s2698] sm:$0xff]
  %v2700 = vld [vmem:[%s2698 + $0x8] sm:$0xff]
  %v2701 = vld [vmem:[%s2698 + $0x10] sm:$0xff]
  %v2702 = vld [vmem:[%s2698 + $0x18] sm:$0xff]
  %s2703 = scalar_lea.vmem %s4, 16
  %v2704 = vld [vmem:[%s2703] sm:$0x1]
  %v2706 = vlaneseq
  %v2707 = vshrl.u32 %v2706, 7
  %v2708 = vsub.s32 0, %v2707
  %v2709 = vrot.slane %v2704, %v2708
  %2711 = vmatprep.subr.mxu0 0.0
  %2712 = vmatpush1.msra.mxu0 0.0
  %2713 = vmatprep.subr.mxu0 0.0
  %2714 = vmatpush1.msra.mxu0 0.0
  %2715 = vmatprep.subr.mxu0 0.0
  %2716 = vmatpush1.msra.mxu0 0.0
  %2717 = vmatprep.subr.mxu0 0.0
  %2718 = vmatpush1.msra.mxu0 0.0
  %2719 = vmatprep.subr.mxu0 0.0
  %2720 = vmatpush1.msra.mxu0 0.0
  %2721 = vmatprep.subr.mxu0 0.0
  %2722 = vmatpush1.msra.mxu0 0.0
  %2723 = vmatprep.subr.mxu0 0.0
  %2724 = vmatpush1.msra.mxu0 0.0
  %2725 = vmatprep.subr.mxu0 0.0
  %2726 = vmatpush1.msra.mxu0 0.0
  %2727 = vmatprep.subr.mxu0 0.0
  %2728 = vmatpush1.msra.mxu0 0.0
  %2729 = vmatprep.subr.mxu0 0.0
  %2730 = vmatpush1.msra.mxu0 0.0
  %2731 = vmatprep.subr.mxu0 0.0
  %2732 = vmatpush1.msra.mxu0 0.0
  %2733 = vmatprep.subr.mxu0 0.0
  %2734 = vmatpush1.msra.mxu0 0.0
  %2735 = vmatprep.subr.mxu0 0.0
  %2736 = vmatpush1.msra.mxu0 %v2702
  %2737 = vmatprep.subr.mxu0 0.0
  %2738 = vmatpush1.msra.mxu0 %v2701
  %2739 = vmatprep.subr.mxu0 0.0
  %2740 = vmatpush1.msra.mxu0 %v2700
  %2741 = vmatprep.subr.mxu0 0.0
  %2742 = vmatpush1.msra.mxu0 %v2699
  %2743 = vmatprep.subr.mxu0 0.0
  %2744 = vmatpush2.msra.mxu0 0.0
  %2745 = vmatprep.subr.mxu0 0.0
  %2746 = vmatpush2.msra.mxu0 0.0
  %2747 = vmatprep.subr.mxu0 0.0
  %2748 = vmatpush2.msra.mxu0 0.0
  %2749 = vmatprep.subr.mxu0 0.0
  %2750 = vmatpush2.msra.mxu0 0.0
  %2751 = vmatprep.subr.mxu0 0.0
  %2752 = vmatpush2.msra.mxu0 0.0
  %2753 = vmatprep.subr.mxu0 0.0
  %2754 = vmatpush2.msra.mxu0 0.0
  %2755 = vmatprep.subr.mxu0 0.0
  %2756 = vmatpush2.msra.mxu0 0.0
  %2757 = vmatprep.subr.mxu0 0.0
  %2758 = vmatpush2.msra.mxu0 0.0
  %2759 = vmatprep.subr.mxu0 0.0
  %2760 = vmatpush2.msra.mxu0 0.0
  %2761 = vmatprep.subr.mxu0 0.0
  %2762 = vmatpush2.msra.mxu0 0.0
  %2763 = vmatprep.subr.mxu0 0.0
  %2764 = vmatpush2.msra.mxu0 0.0
  %2765 = vmatprep.subr.mxu0 0.0
  %2766 = vmatpush2.msra.mxu0 0.0
  %2767 = vmatprep.subr.mxu0 0.0
  %2768 = vmatpush2.msra.mxu0 0.0
  %2769 = vmatprep.subr.mxu0 0.0
  %2770 = vmatpush2.msra.mxu0 0.0
  %2771 = vmatprep.subr.mxu0 0.0
  %2772 = vmatpush2.msra.mxu0 0.0
  %2773 = vmatprep.subr.mxu0 0.0
  %2774 = vmatpush2.msra.mxu0 0.0
  %2775 = vmatprep.mubr.f32.mxu0 0.0
  %2776 = vmatmul.mubr.f32.gmra.mxu0 %v2618
  %v2777 = vpop.f32.mrf.mxu0
  %v2778 = vadd.f32 %v2709, %v2777
  %v2779 = vpop.f32.mrf.mxu0
  %2780 = vmatprep.mubr.f32.mxu0 0.0
  %2781 = vmatmul.mubr.f32.gmra.mxu0 %v2621
  %v2782 = vpop.f32.mrf.mxu0
  %v2783 = vadd.f32 %v2709, %v2782
  %v2784 = vpop.f32.mrf.mxu0
  %2785 = vdwg.mxu0
  %s2786 = scalar_lea.vmem %s3, 640
  %v2787 = vld [vmem:[%s2786] sm:$0xff]
  %v2788 = vld [vmem:[%s2786 + $0x8] sm:$0xff]
  %v2789 = vld [vmem:[%s2786 + $0x10] sm:$0xff]
  %v2790 = vld [vmem:[%s2786 + $0x18] sm:$0xff]
  %s2791 = scalar_lea.vmem %s4, 20
  %v2792 = vld [vmem:[%s2791] sm:$0x1]
  %v2794 = vlaneseq
  %v2795 = vshrl.u32 %v2794, 7
  %v2796 = vsub.s32 0, %v2795
  %v2797 = vrot.slane %v2792, %v2796
  %2799 = vmatprep.subr.mxu0 0.0
  %2800 = vmatpush1.msra.mxu0 0.0
  %2801 = vmatprep.subr.mxu0 0.0
  %2802 = vmatpush1.msra.mxu0 0.0
  %2803 = vmatprep.subr.mxu0 0.0
  %2804 = vmatpush1.msra.mxu0 0.0
  %2805 = vmatprep.subr.mxu0 0.0
  %2806 = vmatpush1.msra.mxu0 0.0
  %2807 = vmatprep.subr.mxu0 0.0
  %2808 = vmatpush1.msra.mxu0 0.0
  %2809 = vmatprep.subr.mxu0 0.0
  %2810 = vmatpush1.msra.mxu0 0.0
  %2811 = vmatprep.subr.mxu0 0.0
  %2812 = vmatpush1.msra.mxu0 0.0
  %2813 = vmatprep.subr.mxu0 0.0
  %2814 = vmatpush1.msra.mxu0 0.0
  %2815 = vmatprep.subr.mxu0 0.0
  %2816 = vmatpush1.msra.mxu0 0.0
  %2817 = vmatprep.subr.mxu0 0.0
  %2818 = vmatpush1.msra.mxu0 0.0
  %2819 = vmatprep.subr.mxu0 0.0
  %2820 = vmatpush1.msra.mxu0 0.0
  %2821 = vmatprep.subr.mxu0 0.0
  %2822 = vmatpush1.msra.mxu0 0.0
  %2823 = vmatprep.subr.mxu0 0.0
  %2824 = vmatpush1.msra.mxu0 %v2790
  %2825 = vmatprep.subr.mxu0 0.0
  %2826 = vmatpush1.msra.mxu0 %v2789
  %2827 = vmatprep.subr.mxu0 0.0
  %2828 = vmatpush1.msra.mxu0 %v2788
  %2829 = vmatprep.subr.mxu0 0.0
  %2830 = vmatpush1.msra.mxu0 %v2787
  %2831 = vmatprep.subr.mxu0 0.0
  %2832 = vmatpush2.msra.mxu0 0.0
  %2833 = vmatprep.subr.mxu0 0.0
  %2834 = vmatpush2.msra.mxu0 0.0
  %2835 = vmatprep.subr.mxu0 0.0
  %2836 = vmatpush2.msra.mxu0 0.0
  %2837 = vmatprep.subr.mxu0 0.0
  %2838 = vmatpush2.msra.mxu0 0.0
  %2839 = vmatprep.subr.mxu0 0.0
  %2840 = vmatpush2.msra.mxu0 0.0
  %2841 = vmatprep.subr.mxu0 0.0
  %2842 = vmatpush2.msra.mxu0 0.0
  %2843 = vmatprep.subr.mxu0 0.0
  %2844 = vmatpush2.msra.mxu0 0.0
  %2845 = vmatprep.subr.mxu0 0.0
  %2846 = vmatpush2.msra.mxu0 0.0
  %2847 = vmatprep.subr.mxu0 0.0
  %2848 = vmatpush2.msra.mxu0 0.0
  %2849 = vmatprep.subr.mxu0 0.0
  %2850 = vmatpush2.msra.mxu0 0.0
  %2851 = vmatprep.subr.mxu0 0.0
  %2852 = vmatpush2.msra.mxu0 0.0
  %2853 = vmatprep.subr.mxu0 0.0
  %2854 = vmatpush2.msra.mxu0 0.0
  %2855 = vmatprep.subr.mxu0 0.0
  %2856 = vmatpush2.msra.mxu0 0.0
  %2857 = vmatprep.subr.mxu0 0.0
  %2858 = vmatpush2.msra.mxu0 0.0
  %2859 = vmatprep.subr.mxu0 0.0
  %2860 = vmatpush2.msra.mxu0 0.0
  %2861 = vmatprep.subr.mxu0 0.0
  %2862 = vmatpush2.msra.mxu0 0.0
  %2863 = vmatprep.mubr.f32.mxu0 0.0
  %2864 = vmatmul.mubr.f32.gmra.mxu0 %v2618
  %v2865 = vpop.f32.mrf.mxu0
  %v2866 = vadd.f32 %v2797, %v2865
  %v2867 = vpop.f32.mrf.mxu0
  %2868 = vmatprep.mubr.f32.mxu0 0.0
  %2869 = vmatmul.mubr.f32.gmra.mxu0 %v2621
  %v2870 = vpop.f32.mrf.mxu0
  %v2871 = vadd.f32 %v2797, %v2870
  %v2872 = vpop.f32.mrf.mxu0
  %2873 = vdwg.mxu0
  %v2875 = vsel %vm400, %v2690, 0
  %v2878 = vsel %vm400, %v2695, 0
  %v2881 = vsel %vm400, %v2778, 0
  %v2884 = vsel %vm400, %v2783, 0
  %2886 = vmatprep.subr.mxu0 0.0
  %2887 = vmatpush1.xpose.msra.mxu0 0.0
  %2888 = vmatprep.subr.mxu0 0.0
  %2889 = vmatpush1.xpose.msra.mxu0 0.0
  %2890 = vmatprep.subr.mxu0 0.0
  %2891 = vmatpush1.xpose.msra.mxu0 0.0
  %2892 = vmatprep.subr.mxu0 0.0
  %2893 = vmatpush1.xpose.msra.mxu0 0.0
  %2894 = vmatprep.subr.mxu0 0.0
  %2895 = vmatpush1.xpose.msra.mxu0 0.0
  %2896 = vmatprep.subr.mxu0 0.0
  %2897 = vmatpush1.xpose.msra.mxu0 0.0
  %2898 = vmatprep.subr.mxu0 0.0
  %2899 = vmatpush1.xpose.msra.mxu0 0.0
  %2900 = vmatprep.subr.mxu0 0.0
  %2901 = vmatpush1.xpose.msra.mxu0 0.0
  %2902 = vmatprep.subr.mxu0 0.0
  %2903 = vmatpush1.xpose.msra.mxu0 0.0
  %2904 = vmatprep.subr.mxu0 0.0
  %2905 = vmatpush1.xpose.msra.mxu0 0.0
  %2906 = vmatprep.subr.mxu0 0.0
  %2907 = vmatpush1.xpose.msra.mxu0 0.0
  %2908 = vmatprep.subr.mxu0 0.0
  %2909 = vmatpush1.xpose.msra.mxu0 0.0
  %2910 = vmatprep.subr.mxu0 0.0
  %2911 = vmatpush1.xpose.msra.mxu0 0.0
  %2912 = vmatprep.subr.mxu0 0.0
  %2913 = vmatpush1.xpose.msra.mxu0 0.0
  %2914 = vmatprep.subr.mxu0 0.0
  %2915 = vmatpush1.xpose.msra.mxu0 %v2884
  %2916 = vmatprep.subr.mxu0 0.0
  %2917 = vmatpush1.xpose.msra.mxu0 %v2881
  %2918 = vmatprep.subr.mxu0 0.0
  %2919 = vmatpush2.xpose.msra.mxu0 0.0
  %2920 = vmatprep.subr.mxu0 0.0
  %2921 = vmatpush2.xpose.msra.mxu0 0.0
  %2922 = vmatprep.subr.mxu0 0.0
  %2923 = vmatpush2.xpose.msra.mxu0 0.0
  %2924 = vmatprep.subr.mxu0 0.0
  %2925 = vmatpush2.xpose.msra.mxu0 0.0
  %2926 = vmatprep.subr.mxu0 0.0
  %2927 = vmatpush2.xpose.msra.mxu0 0.0
  %2928 = vmatprep.subr.mxu0 0.0
  %2929 = vmatpush2.xpose.msra.mxu0 0.0
  %2930 = vmatprep.subr.mxu0 0.0
  %2931 = vmatpush2.xpose.msra.mxu0 0.0
  %2932 = vmatprep.subr.mxu0 0.0
  %2933 = vmatpush2.xpose.msra.mxu0 0.0
  %2934 = vmatprep.subr.mxu0 0.0
  %2935 = vmatpush2.xpose.msra.mxu0 0.0
  %2936 = vmatprep.subr.mxu0 0.0
  %2937 = vmatpush2.xpose.msra.mxu0 0.0
  %2938 = vmatprep.subr.mxu0 0.0
  %2939 = vmatpush2.xpose.msra.mxu0 0.0
  %2940 = vmatprep.subr.mxu0 0.0
  %2941 = vmatpush2.xpose.msra.mxu0 0.0
  %2942 = vmatprep.subr.mxu0 0.0
  %2943 = vmatpush2.xpose.msra.mxu0 0.0
  %2944 = vmatprep.subr.mxu0 0.0
  %2945 = vmatpush2.xpose.msra.mxu0 0.0
  %2946 = vmatprep.subr.mxu0 0.0
  %2947 = vmatpush2.xpose.msra.mxu0 0.0
  %2948 = vmatprep.subr.mxu0 0.0
  %2949 = vmatpush2.xpose.msra.mxu0 0.0
  %2950 = vmatprep.mubr.f32.mxu0 0.0
  %2951 = vmatmul.mubr.f32.gmra.mxu0 %v2875
  %v2952 = vpop.f32.mrf.mxu0
  %v2953 = vadd.f32 0.0, %v2952
  %v2954 = vpop.f32.mrf.mxu0
  %2955 = vmatprep.mubr.f32.mxu0 0.0
  %2956 = vmatmul.mubr.f32.gmra.mxu0 %v2878
  %v2957 = vpop.f32.mrf.mxu0
  %v2958 = vadd.f32 0.0, %v2957
  %v2959 = vpop.f32.mrf.mxu0
  %2960 = vdwg.mxu0
  %v2961 = vmul.f32 %v2953, 0.35355338
  %v2962 = vmul.f32 %v2958, 0.35355338
  %v2963 = vadd.f32 %v2961, %v129
  %v2964 = vadd.f32 %v2962, %v130
  %v2965 = vsel %vm492, %v2963, -inf
  %2966 = vmax.xlane.f32.xlu0 %v2965
  %v2967 = vpop.xlane.xlu0 %2966
  %v2968 = vsel %vm492, %v2964, -inf
  %2969 = vmax.xlane.f32.xlu0 %v2968
  %v2970 = vpop.xlane.xlu0 %2969
  %v2971 = vsub.f32 %v2963, %v2967
  %v2972 = vsub.f32 %v2964, %v2970
  %v2973 = vmul.f32 %v2971, 1.442695
  %v2974 = vpow.pop %v2973
  %v2975 = vmul.f32 %v2972, 1.442695
  %v2976 = vpow.pop %v2975
  %v2977 = vsel %vm492, %v2974, 0.0
  %2978 = vadd.xlane.f32.xlu0 %v2977
  %v2979 = vpop.xlane.xlu0 %2978
  %v2980 = vsel %vm492, %v2976, 0.0
  %2981 = vadd.xlane.f32.xlu0 %v2980
  %v2982 = vpop.xlane.xlu0 %2981
  %v2983 = vrcp.pop %v2979
  %v2984 = vrcp.pop %v2982
  %v2985 = vmul.f32 %v2974, %v2983
  %v2986 = vmul.f32 %v2976, %v2984
  %v2988 = vsel %vm492, %v2985, 0
  %v2991 = vsel %vm492, %v2986, 0
  %2993 = vmatprep.subr.mxu0 0.0
  %2994 = vmatpush1.msra.mxu0 0.0
  %2995 = vmatprep.subr.mxu0 0.0
  %2996 = vmatpush1.msra.mxu0 0.0
  %2997 = vmatprep.subr.mxu0 0.0
  %2998 = vmatpush1.msra.mxu0 0.0
  %2999 = vmatprep.subr.mxu0 0.0
  %3000 = vmatpush1.msra.mxu0 0.0
  %3001 = vmatprep.subr.mxu0 0.0
  %3002 = vmatpush1.msra.mxu0 0.0
  %3003 = vmatprep.subr.mxu0 0.0
  %3004 = vmatpush1.msra.mxu0 0.0
  %3005 = vmatprep.subr.mxu0 0.0
  %3006 = vmatpush1.msra.mxu0 0.0
  %3007 = vmatprep.subr.mxu0 0.0
  %3008 = vmatpush1.msra.mxu0 0.0
  %3009 = vmatprep.subr.mxu0 0.0
  %3010 = vmatpush1.msra.mxu0 0.0
  %3011 = vmatprep.subr.mxu0 0.0
  %3012 = vmatpush1.msra.mxu0 0.0
  %3013 = vmatprep.subr.mxu0 0.0
  %3014 = vmatpush1.msra.mxu0 0.0
  %3015 = vmatprep.subr.mxu0 0.0
  %3016 = vmatpush1.msra.mxu0 0.0
  %3017 = vmatprep.subr.mxu0 0.0
  %3018 = vmatpush1.msra.mxu0 0.0
  %3019 = vmatprep.subr.mxu0 0.0
  %3020 = vmatpush1.msra.mxu0 0.0
  %3021 = vmatprep.subr.mxu0 0.0
  %3022 = vmatpush1.msra.mxu0 %v2871
  %3023 = vmatprep.subr.mxu0 0.0
  %3024 = vmatpush1.msra.mxu0 %v2866
  %3025 = vmatprep.subr.mxu0 0.0
  %3026 = vmatpush2.msra.mxu0 0.0
  %3027 = vmatprep.subr.mxu0 0.0
  %3028 = vmatpush2.msra.mxu0 0.0
  %3029 = vmatprep.subr.mxu0 0.0
  %3030 = vmatpush2.msra.mxu0 0.0
  %3031 = vmatprep.subr.mxu0 0.0
  %3032 = vmatpush2.msra.mxu0 0.0
  %3033 = vmatprep.subr.mxu0 0.0
  %3034 = vmatpush2.msra.mxu0 0.0
  %3035 = vmatprep.subr.mxu0 0.0
  %3036 = vmatpush2.msra.mxu0 0.0
  %3037 = vmatprep.subr.mxu0 0.0
  %3038 = vmatpush2.msra.mxu0 0.0
  %3039 = vmatprep.subr.mxu0 0.0
  %3040 = vmatpush2.msra.mxu0 0.0
  %3041 = vmatprep.subr.mxu0 0.0
  %3042 = vmatpush2.msra.mxu0 0.0
  %3043 = vmatprep.subr.mxu0 0.0
  %3044 = vmatpush2.msra.mxu0 0.0
  %3045 = vmatprep.subr.mxu0 0.0
  %3046 = vmatpush2.msra.mxu0 0.0
  %3047 = vmatprep.subr.mxu0 0.0
  %3048 = vmatpush2.msra.mxu0 0.0
  %3049 = vmatprep.subr.mxu0 0.0
  %3050 = vmatpush2.msra.mxu0 0.0
  %3051 = vmatprep.subr.mxu0 0.0
  %3052 = vmatpush2.msra.mxu0 0.0
  %3053 = vmatprep.subr.mxu0 0.0
  %3054 = vmatpush2.msra.mxu0 0.0
  %3055 = vmatprep.subr.mxu0 0.0
  %3056 = vmatpush2.msra.mxu0 0.0
  %3057 = vmatprep.mubr.f32.mxu0 0.0
  %3058 = vmatmul.mubr.f32.gmra.mxu0 %v2988
  %v3059 = vpop.f32.mrf.mxu0
  %v3060 = vadd.f32 0.0, %v3059
  %v3061 = vpop.f32.mrf.mxu0
  %3062 = vmatprep.mubr.f32.mxu0 0.0
  %3063 = vmatmul.mubr.f32.gmra.mxu0 %v2991
  %v3064 = vpop.f32.mrf.mxu0
  %v3065 = vadd.f32 0.0, %v3064
  %v3066 = vpop.f32.mrf.mxu0
  %3067 = vdwg.mxu0
  %s3068 = scalar_lea.vmem %s5, 32
  %v3069 = vld [vmem:[%s3068] sm:$0xff]
  %s3070 = scalar_lea.vmem %s3, 416
  %v3071 = vld [vmem:[%s3070] sm:$0xff]
  %v3072 = vld [vmem:[%s3070 + $0x8] sm:$0xff]
  %v3073 = vld [vmem:[%s3070 + $0x10] sm:$0xff]
  %v3074 = vld [vmem:[%s3070 + $0x18] sm:$0xff]
  %s3075 = scalar_lea.vmem %s4, 13
  %v3076 = vld [vmem:[%s3075] sm:$0x1]
  %v3078 = vlaneseq
  %v3079 = vshrl.u32 %v3078, 7
  %v3080 = vsub.s32 0, %v3079
  %v3081 = vrot.slane %v3076, %v3080
  %3083 = vmatprep.subr.mxu0 0.0
  %3084 = vmatpush1.msra.mxu0 0.0
  %3085 = vmatprep.subr.mxu0 0.0
  %3086 = vmatpush1.msra.mxu0 0.0
  %3087 = vmatprep.subr.mxu0 0.0
  %3088 = vmatpush1.msra.mxu0 0.0
  %3089 = vmatprep.subr.mxu0 0.0
  %3090 = vmatpush1.msra.mxu0 0.0
  %3091 = vmatprep.subr.mxu0 0.0
  %3092 = vmatpush1.msra.mxu0 0.0
  %3093 = vmatprep.subr.mxu0 0.0
  %3094 = vmatpush1.msra.mxu0 0.0
  %3095 = vmatprep.subr.mxu0 0.0
  %3096 = vmatpush1.msra.mxu0 0.0
  %3097 = vmatprep.subr.mxu0 0.0
  %3098 = vmatpush1.msra.mxu0 0.0
  %3099 = vmatprep.subr.mxu0 0.0
  %3100 = vmatpush1.msra.mxu0 0.0
  %3101 = vmatprep.subr.mxu0 0.0
  %3102 = vmatpush1.msra.mxu0 0.0
  %3103 = vmatprep.subr.mxu0 0.0
  %3104 = vmatpush1.msra.mxu0 0.0
  %3105 = vmatprep.subr.mxu0 0.0
  %3106 = vmatpush1.msra.mxu0 0.0
  %3107 = vmatprep.subr.mxu0 0.0
  %3108 = vmatpush1.msra.mxu0 %v3074
  %3109 = vmatprep.subr.mxu0 0.0
  %3110 = vmatpush1.msra.mxu0 %v3073
  %3111 = vmatprep.subr.mxu0 0.0
  %3112 = vmatpush1.msra.mxu0 %v3072
  %3113 = vmatprep.subr.mxu0 0.0
  %3114 = vmatpush1.msra.mxu0 %v3071
  %3115 = vmatprep.subr.mxu0 0.0
  %3116 = vmatpush2.msra.mxu0 0.0
  %3117 = vmatprep.subr.mxu0 0.0
  %3118 = vmatpush2.msra.mxu0 0.0
  %3119 = vmatprep.subr.mxu0 0.0
  %3120 = vmatpush2.msra.mxu0 0.0
  %3121 = vmatprep.subr.mxu0 0.0
  %3122 = vmatpush2.msra.mxu0 0.0
  %3123 = vmatprep.subr.mxu0 0.0
  %3124 = vmatpush2.msra.mxu0 0.0
  %3125 = vmatprep.subr.mxu0 0.0
  %3126 = vmatpush2.msra.mxu0 0.0
  %3127 = vmatprep.subr.mxu0 0.0
  %3128 = vmatpush2.msra.mxu0 0.0
  %3129 = vmatprep.subr.mxu0 0.0
  %3130 = vmatpush2.msra.mxu0 0.0
  %3131 = vmatprep.subr.mxu0 0.0
  %3132 = vmatpush2.msra.mxu0 0.0
  %3133 = vmatprep.subr.mxu0 0.0
  %3134 = vmatpush2.msra.mxu0 0.0
  %3135 = vmatprep.subr.mxu0 0.0
  %3136 = vmatpush2.msra.mxu0 0.0
  %3137 = vmatprep.subr.mxu0 0.0
  %3138 = vmatpush2.msra.mxu0 0.0
  %3139 = vmatprep.subr.mxu0 0.0
  %3140 = vmatpush2.msra.mxu0 0.0
  %3141 = vmatprep.subr.mxu0 0.0
  %3142 = vmatpush2.msra.mxu0 0.0
  %3143 = vmatprep.subr.mxu0 0.0
  %3144 = vmatpush2.msra.mxu0 0.0
  %3145 = vmatprep.subr.mxu0 0.0
  %3146 = vmatpush2.msra.mxu0 0.0
  %3147 = vmatprep.mubr.f32.mxu0 0.0
  %3148 = vmatmul.mubr.f32.gmra.mxu0 %v2618
  %v3149 = vpop.f32.mrf.mxu0
  %v3150 = vadd.f32 %v3081, %v3149
  %v3151 = vpop.f32.mrf.mxu0
  %3152 = vmatprep.mubr.f32.mxu0 0.0
  %3153 = vmatmul.mubr.f32.gmra.mxu0 %v2621
  %v3154 = vpop.f32.mrf.mxu0
  %v3155 = vadd.f32 %v3081, %v3154
  %v3156 = vpop.f32.mrf.mxu0
  %3157 = vdwg.mxu0
  %s3158 = scalar_lea.vmem %s3, 544
  %v3159 = vld [vmem:[%s3158] sm:$0xff]
  %v3160 = vld [vmem:[%s3158 + $0x8] sm:$0xff]
  %v3161 = vld [vmem:[%s3158 + $0x10] sm:$0xff]
  %v3162 = vld [vmem:[%s3158 + $0x18] sm:$0xff]
  %s3163 = scalar_lea.vmem %s4, 17
  %v3164 = vld [vmem:[%s3163] sm:$0x1]
  %v3166 = vlaneseq
  %v3167 = vshrl.u32 %v3166, 7
  %v3168 = vsub.s32 0, %v3167
  %v3169 = vrot.slane %v3164, %v3168
  %3171 = vmatprep.subr.mxu0 0.0
  %3172 = vmatpush1.msra.mxu0 0.0
  %3173 = vmatprep.subr.mxu0 0.0
  %3174 = vmatpush1.msra.mxu0 0.0
  %3175 = vmatprep.subr.mxu0 0.0
  %3176 = vmatpush1.msra.mxu0 0.0
  %3177 = vmatprep.subr.mxu0 0.0
  %3178 = vmatpush1.msra.mxu0 0.0
  %3179 = vmatprep.subr.mxu0 0.0
  %3180 = vmatpush1.msra.mxu0 0.0
  %3181 = vmatprep.subr.mxu0 0.0
  %3182 = vmatpush1.msra.mxu0 0.0
  %3183 = vmatprep.subr.mxu0 0.0
  %3184 = vmatpush1.msra.mxu0 0.0
  %3185 = vmatprep.subr.mxu0 0.0
  %3186 = vmatpush1.msra.mxu0 0.0
  %3187 = vmatprep.subr.mxu0 0.0
  %3188 = vmatpush1.msra.mxu0 0.0
  %3189 = vmatprep.subr.mxu0 0.0
  %3190 = vmatpush1.msra.mxu0 0.0
  %3191 = vmatprep.subr.mxu0 0.0
  %3192 = vmatpush1.msra.mxu0 0.0
  %3193 = vmatprep.subr.mxu0 0.0
  %3194 = vmatpush1.msra.mxu0 0.0
  %3195 = vmatprep.subr.mxu0 0.0
  %3196 = vmatpush1.msra.mxu0 %v3162
  %3197 = vmatprep.subr.mxu0 0.0
  %3198 = vmatpush1.msra.mxu0 %v3161
  %3199 = vmatprep.subr.mxu0 0.0
  %3200 = vmatpush1.msra.mxu0 %v3160
  %3201 = vmatprep.subr.mxu0 0.0
  %3202 = vmatpush1.msra.mxu0 %v3159
  %3203 = vmatprep.subr.mxu0 0.0
  %3204 = vmatpush2.msra.mxu0 0.0
  %3205 = vmatprep.subr.mxu0 0.0
  %3206 = vmatpush2.msra.mxu0 0.0
  %3207 = vmatprep.subr.mxu0 0.0
  %3208 = vmatpush2.msra.mxu0 0.0
  %3209 = vmatprep.subr.mxu0 0.0
  %3210 = vmatpush2.msra.mxu0 0.0
  %3211 = vmatprep.subr.mxu0 0.0
  %3212 = vmatpush2.msra.mxu0 0.0
  %3213 = vmatprep.subr.mxu0 0.0
  %3214 = vmatpush2.msra.mxu0 0.0
  %3215 = vmatprep.subr.mxu0 0.0
  %3216 = vmatpush2.msra.mxu0 0.0
  %3217 = vmatprep.subr.mxu0 0.0
  %3218 = vmatpush2.msra.mxu0 0.0
  %3219 = vmatprep.subr.mxu0 0.0
  %3220 = vmatpush2.msra.mxu0 0.0
  %3221 = vmatprep.subr.mxu0 0.0
  %3222 = vmatpush2.msra.mxu0 0.0
  %3223 = vmatprep.subr.mxu0 0.0
  %3224 = vmatpush2.msra.mxu0 0.0
  %3225 = vmatprep.subr.mxu0 0.0
  %3226 = vmatpush2.msra.mxu0 0.0
  %3227 = vmatprep.subr.mxu0 0.0
  %3228 = vmatpush2.msra.mxu0 0.0
  %3229 = vmatprep.subr.mxu0 0.0
  %3230 = vmatpush2.msra.mxu0 0.0
  %3231 = vmatprep.subr.mxu0 0.0
  %3232 = vmatpush2.msra.mxu0 0.0
  %3233 = vmatprep.subr.mxu0 0.0
  %3234 = vmatpush2.msra.mxu0 0.0
  %3235 = vmatprep.mubr.f32.mxu0 0.0
  %3236 = vmatmul.mubr.f32.gmra.mxu0 %v2618
  %v3237 = vpop.f32.mrf.mxu0
  %v3238 = vadd.f32 %v3169, %v3237
  %v3239 = vpop.f32.mrf.mxu0
  %3240 = vmatprep.mubr.f32.mxu0 0.0
  %3241 = vmatmul.mubr.f32.gmra.mxu0 %v2621
  %v3242 = vpop.f32.mrf.mxu0
  %v3243 = vadd.f32 %v3169, %v3242
  %v3244 = vpop.f32.mrf.mxu0
  %3245 = vdwg.mxu0
  %s3246 = scalar_lea.vmem %s3, 672
  %v3247 = vld [vmem:[%s3246] sm:$0xff]
  %v3248 = vld [vmem:[%s3246 + $0x8] sm:$0xff]
  %v3249 = vld [vmem:[%s3246 + $0x10] sm:$0xff]
  %v3250 = vld [vmem:[%s3246 + $0x18] sm:$0xff]
  %s3251 = scalar_lea.vmem %s4, 21
  %v3252 = vld [vmem:[%s3251] sm:$0x1]
  %v3254 = vlaneseq
  %v3255 = vshrl.u32 %v3254, 7
  %v3256 = vsub.s32 0, %v3255
  %v3257 = vrot.slane %v3252, %v3256
  %3259 = vmatprep.subr.mxu0 0.0
  %3260 = vmatpush1.msra.mxu0 0.0
  %3261 = vmatprep.subr.mxu0 0.0
  %3262 = vmatpush1.msra.mxu0 0.0
  %3263 = vmatprep.subr.mxu0 0.0
  %3264 = vmatpush1.msra.mxu0 0.0
  %3265 = vmatprep.subr.mxu0 0.0
  %3266 = vmatpush1.msra.mxu0 0.0
  %3267 = vmatprep.subr.mxu0 0.0
  %3268 = vmatpush1.msra.mxu0 0.0
  %3269 = vmatprep.subr.mxu0 0.0
  %3270 = vmatpush1.msra.mxu0 0.0
  %3271 = vmatprep.subr.mxu0 0.0
  %3272 = vmatpush1.msra.mxu0 0.0
  %3273 = vmatprep.subr.mxu0 0.0
  %3274 = vmatpush1.msra.mxu0 0.0
  %3275 = vmatprep.subr.mxu0 0.0
  %3276 = vmatpush1.msra.mxu0 0.0
  %3277 = vmatprep.subr.mxu0 0.0
  %3278 = vmatpush1.msra.mxu0 0.0
  %3279 = vmatprep.subr.mxu0 0.0
  %3280 = vmatpush1.msra.mxu0 0.0
  %3281 = vmatprep.subr.mxu0 0.0
  %3282 = vmatpush1.msra.mxu0 0.0
  %3283 = vmatprep.subr.mxu0 0.0
  %3284 = vmatpush1.msra.mxu0 %v3250
  %3285 = vmatprep.subr.mxu0 0.0
  %3286 = vmatpush1.msra.mxu0 %v3249
  %3287 = vmatprep.subr.mxu0 0.0
  %3288 = vmatpush1.msra.mxu0 %v3248
  %3289 = vmatprep.subr.mxu0 0.0
  %3290 = vmatpush1.msra.mxu0 %v3247
  %3291 = vmatprep.subr.mxu0 0.0
  %3292 = vmatpush2.msra.mxu0 0.0
  %3293 = vmatprep.subr.mxu0 0.0
  %3294 = vmatpush2.msra.mxu0 0.0
  %3295 = vmatprep.subr.mxu0 0.0
  %3296 = vmatpush2.msra.mxu0 0.0
  %3297 = vmatprep.subr.mxu0 0.0
  %3298 = vmatpush2.msra.mxu0 0.0
  %3299 = vmatprep.subr.mxu0 0.0
  %3300 = vmatpush2.msra.mxu0 0.0
  %3301 = vmatprep.subr.mxu0 0.0
  %3302 = vmatpush2.msra.mxu0 0.0
  %3303 = vmatprep.subr.mxu0 0.0
  %3304 = vmatpush2.msra.mxu0 0.0
  %3305 = vmatprep.subr.mxu0 0.0
  %3306 = vmatpush2.msra.mxu0 0.0
  %3307 = vmatprep.subr.mxu0 0.0
  %3308 = vmatpush2.msra.mxu0 0.0
  %3309 = vmatprep.subr.mxu0 0.0
  %3310 = vmatpush2.msra.mxu0 0.0
  %3311 = vmatprep.subr.mxu0 0.0
  %3312 = vmatpush2.msra.mxu0 0.0
  %3313 = vmatprep.subr.mxu0 0.0
  %3314 = vmatpush2.msra.mxu0 0.0
  %3315 = vmatprep.subr.mxu0 0.0
  %3316 = vmatpush2.msra.mxu0 0.0
  %3317 = vmatprep.subr.mxu0 0.0
  %3318 = vmatpush2.msra.mxu0 0.0
  %3319 = vmatprep.subr.mxu0 0.0
  %3320 = vmatpush2.msra.mxu0 0.0
  %3321 = vmatprep.subr.mxu0 0.0
  %3322 = vmatpush2.msra.mxu0 0.0
  %3323 = vmatprep.mubr.f32.mxu0 0.0
  %3324 = vmatmul.mubr.f32.gmra.mxu0 %v2618
  %v3325 = vpop.f32.mrf.mxu0
  %v3326 = vadd.f32 %v3257, %v3325
  %v3327 = vpop.f32.mrf.mxu0
  %3328 = vmatprep.mubr.f32.mxu0 0.0
  %3329 = vmatmul.mubr.f32.gmra.mxu0 %v2621
  %v3330 = vpop.f32.mrf.mxu0
  %v3331 = vadd.f32 %v3257, %v3330
  %v3332 = vpop.f32.mrf.mxu0
  %3333 = vdwg.mxu0
  %v3335 = vsel %vm400, %v3150, 0
  %v3338 = vsel %vm400, %v3155, 0
  %v3341 = vsel %vm400, %v3238, 0
  %v3344 = vsel %vm400, %v3243, 0
  %3346 = vmatprep.subr.mxu0 0.0
  %3347 = vmatpush1.xpose.msra.mxu0 0.0
  %3348 = vmatprep.subr.mxu0 0.0
  %3349 = vmatpush1.xpose.msra.mxu0 0.0
  %3350 = vmatprep.subr.mxu0 0.0
  %3351 = vmatpush1.xpose.msra.mxu0 0.0
  %3352 = vmatprep.subr.mxu0 0.0
  %3353 = vmatpush1.xpose.msra.mxu0 0.0
  %3354 = vmatprep.subr.mxu0 0.0
  %3355 = vmatpush1.xpose.msra.mxu0 0.0
  %3356 = vmatprep.subr.mxu0 0.0
  %3357 = vmatpush1.xpose.msra.mxu0 0.0
  %3358 = vmatprep.subr.mxu0 0.0
  %3359 = vmatpush1.xpose.msra.mxu0 0.0
  %3360 = vmatprep.subr.mxu0 0.0
  %3361 = vmatpush1.xpose.msra.mxu0 0.0
  %3362 = vmatprep.subr.mxu0 0.0
  %3363 = vmatpush1.xpose.msra.mxu0 0.0
  %3364 = vmatprep.subr.mxu0 0.0
  %3365 = vmatpush1.xpose.msra.mxu0 0.0
  %3366 = vmatprep.subr.mxu0 0.0
  %3367 = vmatpush1.xpose.msra.mxu0 0.0
  %3368 = vmatprep.subr.mxu0 0.0
  %3369 = vmatpush1.xpose.msra.mxu0 0.0
  %3370 = vmatprep.subr.mxu0 0.0
  %3371 = vmatpush1.xpose.msra.mxu0 0.0
  %3372 = vmatprep.subr.mxu0 0.0
  %3373 = vmatpush1.xpose.msra.mxu0 0.0
  %3374 = vmatprep.subr.mxu0 0.0
  %3375 = vmatpush1.xpose.msra.mxu0 %v3344
  %3376 = vmatprep.subr.mxu0 0.0
  %3377 = vmatpush1.xpose.msra.mxu0 %v3341
  %3378 = vmatprep.subr.mxu0 0.0
  %3379 = vmatpush2.xpose.msra.mxu0 0.0
  %3380 = vmatprep.subr.mxu0 0.0
  %3381 = vmatpush2.xpose.msra.mxu0 0.0
  %3382 = vmatprep.subr.mxu0 0.0
  %3383 = vmatpush2.xpose.msra.mxu0 0.0
  %3384 = vmatprep.subr.mxu0 0.0
  %3385 = vmatpush2.xpose.msra.mxu0 0.0
  %3386 = vmatprep.subr.mxu0 0.0
  %3387 = vmatpush2.xpose.msra.mxu0 0.0
  %3388 = vmatprep.subr.mxu0 0.0
  %3389 = vmatpush2.xpose.msra.mxu0 0.0
  %3390 = vmatprep.subr.mxu0 0.0
  %3391 = vmatpush2.xpose.msra.mxu0 0.0
  %3392 = vmatprep.subr.mxu0 0.0
  %3393 = vmatpush2.xpose.msra.mxu0 0.0
  %3394 = vmatprep.subr.mxu0 0.0
  %3395 = vmatpush2.xpose.msra.mxu0 0.0
  %3396 = vmatprep.subr.mxu0 0.0
  %3397 = vmatpush2.xpose.msra.mxu0 0.0
  %3398 = vmatprep.subr.mxu0 0.0
  %3399 = vmatpush2.xpose.msra.mxu0 0.0
  %3400 = vmatprep.subr.mxu0 0.0
  %3401 = vmatpush2.xpose.msra.mxu0 0.0
  %3402 = vmatprep.subr.mxu0 0.0
  %3403 = vmatpush2.xpose.msra.mxu0 0.0
  %3404 = vmatprep.subr.mxu0 0.0
  %3405 = vmatpush2.xpose.msra.mxu0 0.0
  %3406 = vmatprep.subr.mxu0 0.0
  %3407 = vmatpush2.xpose.msra.mxu0 0.0
  %3408 = vmatprep.subr.mxu0 0.0
  %3409 = vmatpush2.xpose.msra.mxu0 0.0
  %3410 = vmatprep.mubr.f32.mxu0 0.0
  %3411 = vmatmul.mubr.f32.gmra.mxu0 %v3335
  %v3412 = vpop.f32.mrf.mxu0
  %v3413 = vadd.f32 0.0, %v3412
  %v3414 = vpop.f32.mrf.mxu0
  %3415 = vmatprep.mubr.f32.mxu0 0.0
  %3416 = vmatmul.mubr.f32.gmra.mxu0 %v3338
  %v3417 = vpop.f32.mrf.mxu0
  %v3418 = vadd.f32 0.0, %v3417
  %v3419 = vpop.f32.mrf.mxu0
  %3420 = vdwg.mxu0
  %v3421 = vmul.f32 %v3413, 0.35355338
  %v3422 = vmul.f32 %v3418, 0.35355338
  %v3423 = vadd.f32 %v3421, %v129
  %v3424 = vadd.f32 %v3422, %v130
  %v3425 = vsel %vm492, %v3423, -inf
  %3426 = vmax.xlane.f32.xlu0 %v3425
  %v3427 = vpop.xlane.xlu0 %3426
  %v3428 = vsel %vm492, %v3424, -inf
  %3429 = vmax.xlane.f32.xlu0 %v3428
  %v3430 = vpop.xlane.xlu0 %3429
  %v3431 = vsub.f32 %v3423, %v3427
  %v3432 = vsub.f32 %v3424, %v3430
  %v3433 = vmul.f32 %v3431, 1.442695
  %v3434 = vpow.pop %v3433
  %v3435 = vmul.f32 %v3432, 1.442695
  %v3436 = vpow.pop %v3435
  %v3437 = vsel %vm492, %v3434, 0.0
  %3438 = vadd.xlane.f32.xlu0 %v3437
  %v3439 = vpop.xlane.xlu0 %3438
  %v3440 = vsel %vm492, %v3436, 0.0
  %3441 = vadd.xlane.f32.xlu0 %v3440
  %v3442 = vpop.xlane.xlu0 %3441
  %v3443 = vrcp.pop %v3439
  %v3444 = vrcp.pop %v3442
  %v3445 = vmul.f32 %v3434, %v3443
  %v3446 = vmul.f32 %v3436, %v3444
  %v3448 = vsel %vm492, %v3445, 0
  %v3451 = vsel %vm492, %v3446, 0
  %3453 = vmatprep.subr.mxu0 0.0
  %3454 = vmatpush1.msra.mxu0 0.0
  %3455 = vmatprep.subr.mxu0 0.0
  %3456 = vmatpush1.msra.mxu0 0.0
  %3457 = vmatprep.subr.mxu0 0.0
  %3458 = vmatpush1.msra.mxu0 0.0
  %3459 = vmatprep.subr.mxu0 0.0
  %3460 = vmatpush1.msra.mxu0 0.0
  %3461 = vmatprep.subr.mxu0 0.0
  %3462 = vmatpush1.msra.mxu0 0.0
  %3463 = vmatprep.subr.mxu0 0.0
  %3464 = vmatpush1.msra.mxu0 0.0
  %3465 = vmatprep.subr.mxu0 0.0
  %3466 = vmatpush1.msra.mxu0 0.0
  %3467 = vmatprep.subr.mxu0 0.0
  %3468 = vmatpush1.msra.mxu0 0.0
  %3469 = vmatprep.subr.mxu0 0.0
  %3470 = vmatpush1.msra.mxu0 0.0
  %3471 = vmatprep.subr.mxu0 0.0
  %3472 = vmatpush1.msra.mxu0 0.0
  %3473 = vmatprep.subr.mxu0 0.0
  %3474 = vmatpush1.msra.mxu0 0.0
  %3475 = vmatprep.subr.mxu0 0.0
  %3476 = vmatpush1.msra.mxu0 0.0
  %3477 = vmatprep.subr.mxu0 0.0
  %3478 = vmatpush1.msra.mxu0 0.0
  %3479 = vmatprep.subr.mxu0 0.0
  %3480 = vmatpush1.msra.mxu0 0.0
  %3481 = vmatprep.subr.mxu0 0.0
  %3482 = vmatpush1.msra.mxu0 %v3331
  %3483 = vmatprep.subr.mxu0 0.0
  %3484 = vmatpush1.msra.mxu0 %v3326
  %3485 = vmatprep.subr.mxu0 0.0
  %3486 = vmatpush2.msra.mxu0 0.0
  %3487 = vmatprep.subr.mxu0 0.0
  %3488 = vmatpush2.msra.mxu0 0.0
  %3489 = vmatprep.subr.mxu0 0.0
  %3490 = vmatpush2.msra.mxu0 0.0
  %3491 = vmatprep.subr.mxu0 0.0
  %3492 = vmatpush2.msra.mxu0 0.0
  %3493 = vmatprep.subr.mxu0 0.0
  %3494 = vmatpush2.msra.mxu0 0.0
  %3495 = vmatprep.subr.mxu0 0.0
  %3496 = vmatpush2.msra.mxu0 0.0
  %3497 = vmatprep.subr.mxu0 0.0
  %3498 = vmatpush2.msra.mxu0 0.0
  %3499 = vmatprep.subr.mxu0 0.0
  %3500 = vmatpush2.msra.mxu0 0.0
  %3501 = vmatprep.subr.mxu0 0.0
  %3502 = vmatpush2.msra.mxu0 0.0
  %3503 = vmatprep.subr.mxu0 0.0
  %3504 = vmatpush2.msra.mxu0 0.0
  %3505 = vmatprep.subr.mxu0 0.0
  %3506 = vmatpush2.msra.mxu0 0.0
  %3507 = vmatprep.subr.mxu0 0.0
  %3508 = vmatpush2.msra.mxu0 0.0
  %3509 = vmatprep.subr.mxu0 0.0
  %3510 = vmatpush2.msra.mxu0 0.0
  %3511 = vmatprep.subr.mxu0 0.0
  %3512 = vmatpush2.msra.mxu0 0.0
  %3513 = vmatprep.subr.mxu0 0.0
  %3514 = vmatpush2.msra.mxu0 0.0
  %3515 = vmatprep.subr.mxu0 0.0
  %3516 = vmatpush2.msra.mxu0 0.0
  %3517 = vmatprep.mubr.f32.mxu0 0.0
  %3518 = vmatmul.mubr.f32.gmra.mxu0 %v3448
  %v3519 = vpop.f32.mrf.mxu0
  %v3520 = vadd.f32 0.0, %v3519
  %v3521 = vpop.f32.mrf.mxu0
  %3522 = vmatprep.mubr.f32.mxu0 0.0
  %3523 = vmatmul.mubr.f32.gmra.mxu0 %v3451
  %v3524 = vpop.f32.mrf.mxu0
  %v3525 = vadd.f32 0.0, %v3524
  %v3526 = vpop.f32.mrf.mxu0
  %3527 = vdwg.mxu0
  %s3528 = scalar_lea.vmem %s5, 40
  %v3529 = vld [vmem:[%s3528] sm:$0xff]
  %v3531 = vsel %vm400, %v3520, 0
  %v3534 = vsel %vm400, %v3525, 0
  %3536 = vmatprep.subr.mxu0 0.0
  %3537 = vmatpush1.msra.mxu0 0.0
  %3538 = vmatprep.subr.mxu0 0.0
  %3539 = vmatpush1.msra.mxu0 0.0
  %3540 = vmatprep.subr.mxu0 0.0
  %3541 = vmatpush1.msra.mxu0 0.0
  %3542 = vmatprep.subr.mxu0 0.0
  %3543 = vmatpush1.msra.mxu0 0.0
  %3544 = vmatprep.subr.mxu0 0.0
  %3545 = vmatpush1.msra.mxu0 0.0
  %3546 = vmatprep.subr.mxu0 0.0
  %3547 = vmatpush1.msra.mxu0 0.0
  %3548 = vmatprep.subr.mxu0 0.0
  %3549 = vmatpush1.msra.mxu0 0.0
  %3550 = vmatprep.subr.mxu0 0.0
  %3551 = vmatpush1.msra.mxu0 0.0
  %3552 = vmatprep.subr.mxu0 0.0
  %3553 = vmatpush1.msra.mxu0 0.0
  %3554 = vmatprep.subr.mxu0 0.0
  %3555 = vmatpush1.msra.mxu0 0.0
  %3556 = vmatprep.subr.mxu0 0.0
  %3557 = vmatpush1.msra.mxu0 0.0
  %3558 = vmatprep.subr.mxu0 0.0
  %3559 = vmatpush1.msra.mxu0 0.0
  %3560 = vmatprep.subr.mxu0 0.0
  %3561 = vmatpush1.msra.mxu0 0.0
  %3562 = vmatprep.subr.mxu0 0.0
  %3563 = vmatpush1.msra.mxu0 0.0
  %3564 = vmatprep.subr.mxu0 0.0
  %3565 = vmatpush1.msra.mxu0 0.0
  %3566 = vmatprep.subr.mxu0 0.0
  %3567 = vmatpush1.msra.mxu0 %v3529
  %3568 = vmatprep.subr.mxu0 0.0
  %3569 = vmatpush2.msra.mxu0 0.0
  %3570 = vmatprep.subr.mxu0 0.0
  %3571 = vmatpush2.msra.mxu0 0.0
  %3572 = vmatprep.subr.mxu0 0.0
  %3573 = vmatpush2.msra.mxu0 0.0
  %3574 = vmatprep.subr.mxu0 0.0
  %3575 = vmatpush2.msra.mxu0 0.0
  %3576 = vmatprep.subr.mxu0 0.0
  %3577 = vmatpush2.msra.mxu0 0.0
  %3578 = vmatprep.subr.mxu0 0.0
  %3579 = vmatpush2.msra.mxu0 0.0
  %3580 = vmatprep.subr.mxu0 0.0
  %3581 = vmatpush2.msra.mxu0 0.0
  %3582 = vmatprep.subr.mxu0 0.0
  %3583 = vmatpush2.msra.mxu0 0.0
  %3584 = vmatprep.subr.mxu0 0.0
  %3585 = vmatpush2.msra.mxu0 0.0
  %3586 = vmatprep.subr.mxu0 0.0
  %3587 = vmatpush2.msra.mxu0 0.0
  %3588 = vmatprep.subr.mxu0 0.0
  %3589 = vmatpush2.msra.mxu0 0.0
  %3590 = vmatprep.subr.mxu0 0.0
  %3591 = vmatpush2.msra.mxu0 0.0
  %3592 = vmatprep.subr.mxu0 0.0
  %3593 = vmatpush2.msra.mxu0 0.0
  %3594 = vmatprep.subr.mxu0 0.0
  %3595 = vmatpush2.msra.mxu0 0.0
  %3596 = vmatprep.subr.mxu0 0.0
  %3597 = vmatpush2.msra.mxu0 0.0
  %3598 = vmatprep.subr.mxu0 0.0
  %3599 = vmatpush2.msra.mxu0 0.0
  %3600 = vmatprep.mubr.f32.mxu0 0.0
  %3601 = vmatmul.mubr.f32.gmra.mxu0 %v3531
  %v3602 = vpop.f32.mrf.mxu0
  %v3603 = vadd.f32 0.0, %v3602
  %v3604 = vpop.f32.mrf.mxu0
  %3605 = vmatprep.mubr.f32.mxu0 0.0
  %3606 = vmatmul.mubr.f32.gmra.mxu0 %v3534
  %v3607 = vpop.f32.mrf.mxu0
  %v3608 = vadd.f32 0.0, %v3607
  %v3609 = vpop.f32.mrf.mxu0
  %3610 = vdwg.mxu0
  %v3612 = vsel %vm400, %v3060, 0
  %v3615 = vsel %vm400, %v3065, 0
  %3617 = vmatprep.subr.mxu0 0.0
  %3618 = vmatpush1.msra.mxu0 0.0
  %3619 = vmatprep.subr.mxu0 0.0
  %3620 = vmatpush1.msra.mxu0 0.0
  %3621 = vmatprep.subr.mxu0 0.0
  %3622 = vmatpush1.msra.mxu0 0.0
  %3623 = vmatprep.subr.mxu0 0.0
  %3624 = vmatpush1.msra.mxu0 0.0
  %3625 = vmatprep.subr.mxu0 0.0
  %3626 = vmatpush1.msra.mxu0 0.0
  %3627 = vmatprep.subr.mxu0 0.0
  %3628 = vmatpush1.msra.mxu0 0.0
  %3629 = vmatprep.subr.mxu0 0.0
  %3630 = vmatpush1.msra.mxu0 0.0
  %3631 = vmatprep.subr.mxu0 0.0
  %3632 = vmatpush1.msra.mxu0 0.0
  %3633 = vmatprep.subr.mxu0 0.0
  %3634 = vmatpush1.msra.mxu0 0.0
  %3635 = vmatprep.subr.mxu0 0.0
  %3636 = vmatpush1.msra.mxu0 0.0
  %3637 = vmatprep.subr.mxu0 0.0
  %3638 = vmatpush1.msra.mxu0 0.0
  %3639 = vmatprep.subr.mxu0 0.0
  %3640 = vmatpush1.msra.mxu0 0.0
  %3641 = vmatprep.subr.mxu0 0.0
  %3642 = vmatpush1.msra.mxu0 0.0
  %3643 = vmatprep.subr.mxu0 0.0
  %3644 = vmatpush1.msra.mxu0 0.0
  %3645 = vmatprep.subr.mxu0 0.0
  %3646 = vmatpush1.msra.mxu0 0.0
  %3647 = vmatprep.subr.mxu0 0.0
  %3648 = vmatpush1.msra.mxu0 %v3069
  %3649 = vmatprep.subr.mxu0 0.0
  %3650 = vmatpush2.msra.mxu0 0.0
  %3651 = vmatprep.subr.mxu0 0.0
  %3652 = vmatpush2.msra.mxu0 0.0
  %3653 = vmatprep.subr.mxu0 0.0
  %3654 = vmatpush2.msra.mxu0 0.0
  %3655 = vmatprep.subr.mxu0 0.0
  %3656 = vmatpush2.msra.mxu0 0.0
  %3657 = vmatprep.subr.mxu0 0.0
  %3658 = vmatpush2.msra.mxu0 0.0
  %3659 = vmatprep.subr.mxu0 0.0
  %3660 = vmatpush2.msra.mxu0 0.0
  %3661 = vmatprep.subr.mxu0 0.0
  %3662 = vmatpush2.msra.mxu0 0.0
  %3663 = vmatprep.subr.mxu0 0.0
  %3664 = vmatpush2.msra.mxu0 0.0
  %3665 = vmatprep.subr.mxu0 0.0
  %3666 = vmatpush2.msra.mxu0 0.0
  %3667 = vmatprep.subr.mxu0 0.0
  %3668 = vmatpush2.msra.mxu0 0.0
  %3669 = vmatprep.subr.mxu0 0.0
  %3670 = vmatpush2.msra.mxu0 0.0
  %3671 = vmatprep.subr.mxu0 0.0
  %3672 = vmatpush2.msra.mxu0 0.0
  %3673 = vmatprep.subr.mxu0 0.0
  %3674 = vmatpush2.msra.mxu0 0.0
  %3675 = vmatprep.subr.mxu0 0.0
  %3676 = vmatpush2.msra.mxu0 0.0
  %3677 = vmatprep.subr.mxu0 0.0
  %3678 = vmatpush2.msra.mxu0 0.0
  %3679 = vmatprep.subr.mxu0 0.0
  %3680 = vmatpush2.msra.mxu0 0.0
  %3681 = vmatprep.mubr.f32.mxu0 0.0
  %3682 = vmatmul.mubr.f32.gmra.mxu0 %v3612
  %v3683 = vpop.f32.mrf.mxu0
  %v3684 = vadd.f32 %v3603, %v3683
  %v3685 = vpop.f32.mrf.mxu0
  %3686 = vmatprep.mubr.f32.mxu0 0.0
  %3687 = vmatmul.mubr.f32.gmra.mxu0 %v3615
  %v3688 = vpop.f32.mrf.mxu0
  %v3689 = vadd.f32 %v3608, %v3688
  %v3690 = vpop.f32.mrf.mxu0
  %3691 = vdwg.mxu0
  %s3692 = scalar_lea.vmem %s3, 448
  %v3693 = vld [vmem:[%s3692] sm:$0xff]
  %v3694 = vld [vmem:[%s3692 + $0x8] sm:$0xff]
  %v3695 = vld [vmem:[%s3692 + $0x10] sm:$0xff]
  %v3696 = vld [vmem:[%s3692 + $0x18] sm:$0xff]
  %s3697 = scalar_lea.vmem %s4, 14
  %v3698 = vld [vmem:[%s3697] sm:$0x1]
  %v3700 = vlaneseq
  %v3701 = vshrl.u32 %v3700, 7
  %v3702 = vsub.s32 0, %v3701
  %v3703 = vrot.slane %v3698, %v3702
  %3705 = vmatprep.subr.mxu0 0.0
  %3706 = vmatpush1.msra.mxu0 0.0
  %3707 = vmatprep.subr.mxu0 0.0
  %3708 = vmatpush1.msra.mxu0 0.0
  %3709 = vmatprep.subr.mxu0 0.0
  %3710 = vmatpush1.msra.mxu0 0.0
  %3711 = vmatprep.subr.mxu0 0.0
  %3712 = vmatpush1.msra.mxu0 0.0
  %3713 = vmatprep.subr.mxu0 0.0
  %3714 = vmatpush1.msra.mxu0 0.0
  %3715 = vmatprep.subr.mxu0 0.0
  %3716 = vmatpush1.msra.mxu0 0.0
  %3717 = vmatprep.subr.mxu0 0.0
  %3718 = vmatpush1.msra.mxu0 0.0
  %3719 = vmatprep.subr.mxu0 0.0
  %3720 = vmatpush1.msra.mxu0 0.0
  %3721 = vmatprep.subr.mxu0 0.0
  %3722 = vmatpush1.msra.mxu0 0.0
  %3723 = vmatprep.subr.mxu0 0.0
  %3724 = vmatpush1.msra.mxu0 0.0
  %3725 = vmatprep.subr.mxu0 0.0
  %3726 = vmatpush1.msra.mxu0 0.0
  %3727 = vmatprep.subr.mxu0 0.0
  %3728 = vmatpush1.msra.mxu0 0.0
  %3729 = vmatprep.subr.mxu0 0.0
  %3730 = vmatpush1.msra.mxu0 %v3696
  %3731 = vmatprep.subr.mxu0 0.0
  %3732 = vmatpush1.msra.mxu0 %v3695
  %3733 = vmatprep.subr.mxu0 0.0
  %3734 = vmatpush1.msra.mxu0 %v3694
  %3735 = vmatprep.subr.mxu0 0.0
  %3736 = vmatpush1.msra.mxu0 %v3693
  %3737 = vmatprep.subr.mxu0 0.0
  %3738 = vmatpush2.msra.mxu0 0.0
  %3739 = vmatprep.subr.mxu0 0.0
  %3740 = vmatpush2.msra.mxu0 0.0
  %3741 = vmatprep.subr.mxu0 0.0
  %3742 = vmatpush2.msra.mxu0 0.0
  %3743 = vmatprep.subr.mxu0 0.0
  %3744 = vmatpush2.msra.mxu0 0.0
  %3745 = vmatprep.subr.mxu0 0.0
  %3746 = vmatpush2.msra.mxu0 0.0
  %3747 = vmatprep.subr.mxu0 0.0
  %3748 = vmatpush2.msra.mxu0 0.0
  %3749 = vmatprep.subr.mxu0 0.0
  %3750 = vmatpush2.msra.mxu0 0.0
  %3751 = vmatprep.subr.mxu0 0.0
  %3752 = vmatpush2.msra.mxu0 0.0
  %3753 = vmatprep.subr.mxu0 0.0
  %3754 = vmatpush2.msra.mxu0 0.0
  %3755 = vmatprep.subr.mxu0 0.0
  %3756 = vmatpush2.msra.mxu0 0.0
  %3757 = vmatprep.subr.mxu0 0.0
  %3758 = vmatpush2.msra.mxu0 0.0
  %3759 = vmatprep.subr.mxu0 0.0
  %3760 = vmatpush2.msra.mxu0 0.0
  %3761 = vmatprep.subr.mxu0 0.0
  %3762 = vmatpush2.msra.mxu0 0.0
  %3763 = vmatprep.subr.mxu0 0.0
  %3764 = vmatpush2.msra.mxu0 0.0
  %3765 = vmatprep.subr.mxu0 0.0
  %3766 = vmatpush2.msra.mxu0 0.0
  %3767 = vmatprep.subr.mxu0 0.0
  %3768 = vmatpush2.msra.mxu0 0.0
  %3769 = vmatprep.mubr.f32.mxu0 0.0
  %3770 = vmatmul.mubr.f32.gmra.mxu0 %v2618
  %v3771 = vpop.f32.mrf.mxu0
  %v3772 = vadd.f32 %v3703, %v3771
  %v3773 = vpop.f32.mrf.mxu0
  %3774 = vmatprep.mubr.f32.mxu0 0.0
  %3775 = vmatmul.mubr.f32.gmra.mxu0 %v2621
  %v3776 = vpop.f32.mrf.mxu0
  %v3777 = vadd.f32 %v3703, %v3776
  %v3778 = vpop.f32.mrf.mxu0
  %3779 = vdwg.mxu0
  %s3780 = scalar_lea.vmem %s3, 576
  %v3781 = vld [vmem:[%s3780] sm:$0xff]
  %v3782 = vld [vmem:[%s3780 + $0x8] sm:$0xff]
  %v3783 = vld [vmem:[%s3780 + $0x10] sm:$0xff]
  %v3784 = vld [vmem:[%s3780 + $0x18] sm:$0xff]
  %s3785 = scalar_lea.vmem %s4, 18
  %v3786 = vld [vmem:[%s3785] sm:$0x1]
  %v3788 = vlaneseq
  %v3789 = vshrl.u32 %v3788, 7
  %v3790 = vsub.s32 0, %v3789
  %v3791 = vrot.slane %v3786, %v3790
  %3793 = vmatprep.subr.mxu0 0.0
  %3794 = vmatpush1.msra.mxu0 0.0
  %3795 = vmatprep.subr.mxu0 0.0
  %3796 = vmatpush1.msra.mxu0 0.0
  %3797 = vmatprep.subr.mxu0 0.0
  %3798 = vmatpush1.msra.mxu0 0.0
  %3799 = vmatprep.subr.mxu0 0.0
  %3800 = vmatpush1.msra.mxu0 0.0
  %3801 = vmatprep.subr.mxu0 0.0
  %3802 = vmatpush1.msra.mxu0 0.0
  %3803 = vmatprep.subr.mxu0 0.0
  %3804 = vmatpush1.msra.mxu0 0.0
  %3805 = vmatprep.subr.mxu0 0.0
  %3806 = vmatpush1.msra.mxu0 0.0
  %3807 = vmatprep.subr.mxu0 0.0
  %3808 = vmatpush1.msra.mxu0 0.0
  %3809 = vmatprep.subr.mxu0 0.0
  %3810 = vmatpush1.msra.mxu0 0.0
  %3811 = vmatprep.subr.mxu0 0.0
  %3812 = vmatpush1.msra.mxu0 0.0
  %3813 = vmatprep.subr.mxu0 0.0
  %3814 = vmatpush1.msra.mxu0 0.0
  %3815 = vmatprep.subr.mxu0 0.0
  %3816 = vmatpush1.msra.mxu0 0.0
  %3817 = vmatprep.subr.mxu0 0.0
  %3818 = vmatpush1.msra.mxu0 %v3784
  %3819 = vmatprep.subr.mxu0 0.0
  %3820 = vmatpush1.msra.mxu0 %v3783
  %3821 = vmatprep.subr.mxu0 0.0
  %3822 = vmatpush1.msra.mxu0 %v3782
  %3823 = vmatprep.subr.mxu0 0.0
  %3824 = vmatpush1.msra.mxu0 %v3781
  %3825 = vmatprep.subr.mxu0 0.0
  %3826 = vmatpush2.msra.mxu0 0.0
  %3827 = vmatprep.subr.mxu0 0.0
  %3828 = vmatpush2.msra.mxu0 0.0
  %3829 = vmatprep.subr.mxu0 0.0
  %3830 = vmatpush2.msra.mxu0 0.0
  %3831 = vmatprep.subr.mxu0 0.0
  %3832 = vmatpush2.msra.mxu0 0.0
  %3833 = vmatprep.subr.mxu0 0.0
  %3834 = vmatpush2.msra.mxu0 0.0
  %3835 = vmatprep.subr.mxu0 0.0
  %3836 = vmatpush2.msra.mxu0 0.0
  %3837 = vmatprep.subr.mxu0 0.0
  %3838 = vmatpush2.msra.mxu0 0.0
  %3839 = vmatprep.subr.mxu0 0.0
  %3840 = vmatpush2.msra.mxu0 0.0
  %3841 = vmatprep.subr.mxu0 0.0
  %3842 = vmatpush2.msra.mxu0 0.0
  %3843 = vmatprep.subr.mxu0 0.0
  %3844 = vmatpush2.msra.mxu0 0.0
  %3845 = vmatprep.subr.mxu0 0.0
  %3846 = vmatpush2.msra.mxu0 0.0
  %3847 = vmatprep.subr.mxu0 0.0
  %3848 = vmatpush2.msra.mxu0 0.0
  %3849 = vmatprep.subr.mxu0 0.0
  %3850 = vmatpush2.msra.mxu0 0.0
  %3851 = vmatprep.subr.mxu0 0.0
  %3852 = vmatpush2.msra.mxu0 0.0
  %3853 = vmatprep.subr.mxu0 0.0
  %3854 = vmatpush2.msra.mxu0 0.0
  %3855 = vmatprep.subr.mxu0 0.0
  %3856 = vmatpush2.msra.mxu0 0.0
  %3857 = vmatprep.mubr.f32.mxu0 0.0
  %3858 = vmatmul.mubr.f32.gmra.mxu0 %v2618
  %v3859 = vpop.f32.mrf.mxu0
  %v3860 = vadd.f32 %v3791, %v3859
  %v3861 = vpop.f32.mrf.mxu0
  %3862 = vmatprep.mubr.f32.mxu0 0.0
  %3863 = vmatmul.mubr.f32.gmra.mxu0 %v2621
  %v3864 = vpop.f32.mrf.mxu0
  %v3865 = vadd.f32 %v3791, %v3864
  %v3866 = vpop.f32.mrf.mxu0
  %3867 = vdwg.mxu0
  %s3868 = scalar_lea.vmem %s3, 704
  %v3869 = vld [vmem:[%s3868] sm:$0xff]
  %v3870 = vld [vmem:[%s3868 + $0x8] sm:$0xff]
  %v3871 = vld [vmem:[%s3868 + $0x10] sm:$0xff]
  %v3872 = vld [vmem:[%s3868 + $0x18] sm:$0xff]
  %s3873 = scalar_lea.vmem %s4, 22
  %v3874 = vld [vmem:[%s3873] sm:$0x1]
  %v3876 = vlaneseq
  %v3877 = vshrl.u32 %v3876, 7
  %v3878 = vsub.s32 0, %v3877
  %v3879 = vrot.slane %v3874, %v3878
  %3881 = vmatprep.subr.mxu0 0.0
  %3882 = vmatpush1.msra.mxu0 0.0
  %3883 = vmatprep.subr.mxu0 0.0
  %3884 = vmatpush1.msra.mxu0 0.0
  %3885 = vmatprep.subr.mxu0 0.0
  %3886 = vmatpush1.msra.mxu0 0.0
  %3887 = vmatprep.subr.mxu0 0.0
  %3888 = vmatpush1.msra.mxu0 0.0
  %3889 = vmatprep.subr.mxu0 0.0
  %3890 = vmatpush1.msra.mxu0 0.0
  %3891 = vmatprep.subr.mxu0 0.0
  %3892 = vmatpush1.msra.mxu0 0.0
  %3893 = vmatprep.subr.mxu0 0.0
  %3894 = vmatpush1.msra.mxu0 0.0
  %3895 = vmatprep.subr.mxu0 0.0
  %3896 = vmatpush1.msra.mxu0 0.0
  %3897 = vmatprep.subr.mxu0 0.0
  %3898 = vmatpush1.msra.mxu0 0.0
  %3899 = vmatprep.subr.mxu0 0.0
  %3900 = vmatpush1.msra.mxu0 0.0
  %3901 = vmatprep.subr.mxu0 0.0
  %3902 = vmatpush1.msra.mxu0 0.0
  %3903 = vmatprep.subr.mxu0 0.0
  %3904 = vmatpush1.msra.mxu0 0.0
  %3905 = vmatprep.subr.mxu0 0.0
  %3906 = vmatpush1.msra.mxu0 %v3872
  %3907 = vmatprep.subr.mxu0 0.0
  %3908 = vmatpush1.msra.mxu0 %v3871
  %3909 = vmatprep.subr.mxu0 0.0
  %3910 = vmatpush1.msra.mxu0 %v3870
  %3911 = vmatprep.subr.mxu0 0.0
  %3912 = vmatpush1.msra.mxu0 %v3869
  %3913 = vmatprep.subr.mxu0 0.0
  %3914 = vmatpush2.msra.mxu0 0.0
  %3915 = vmatprep.subr.mxu0 0.0
  %3916 = vmatpush2.msra.mxu0 0.0
  %3917 = vmatprep.subr.mxu0 0.0
  %3918 = vmatpush2.msra.mxu0 0.0
  %3919 = vmatprep.subr.mxu0 0.0
  %3920 = vmatpush2.msra.mxu0 0.0
  %3921 = vmatprep.subr.mxu0 0.0
  %3922 = vmatpush2.msra.mxu0 0.0
  %3923 = vmatprep.subr.mxu0 0.0
  %3924 = vmatpush2.msra.mxu0 0.0
  %3925 = vmatprep.subr.mxu0 0.0
  %3926 = vmatpush2.msra.mxu0 0.0
  %3927 = vmatprep.subr.mxu0 0.0
  %3928 = vmatpush2.msra.mxu0 0.0
  %3929 = vmatprep.subr.mxu0 0.0
  %3930 = vmatpush2.msra.mxu0 0.0
  %3931 = vmatprep.subr.mxu0 0.0
  %3932 = vmatpush2.msra.mxu0 0.0
  %3933 = vmatprep.subr.mxu0 0.0
  %3934 = vmatpush2.msra.mxu0 0.0
  %3935 = vmatprep.subr.mxu0 0.0
  %3936 = vmatpush2.msra.mxu0 0.0
  %3937 = vmatprep.subr.mxu0 0.0
  %3938 = vmatpush2.msra.mxu0 0.0
  %3939 = vmatprep.subr.mxu0 0.0
  %3940 = vmatpush2.msra.mxu0 0.0
  %3941 = vmatprep.subr.mxu0 0.0
  %3942 = vmatpush2.msra.mxu0 0.0
  %3943 = vmatprep.subr.mxu0 0.0
  %3944 = vmatpush2.msra.mxu0 0.0
  %3945 = vmatprep.mubr.f32.mxu0 0.0
  %3946 = vmatmul.mubr.f32.gmra.mxu0 %v2618
  %v3947 = vpop.f32.mrf.mxu0
  %v3948 = vadd.f32 %v3879, %v3947
  %v3949 = vpop.f32.mrf.mxu0
  %3950 = vmatprep.mubr.f32.mxu0 0.0
  %3951 = vmatmul.mubr.f32.gmra.mxu0 %v2621
  %v3952 = vpop.f32.mrf.mxu0
  %v3953 = vadd.f32 %v3879, %v3952
  %v3954 = vpop.f32.mrf.mxu0
  %3955 = vdwg.mxu0
  %v3957 = vsel %vm400, %v3772, 0
  %v3960 = vsel %vm400, %v3777, 0
  %v3963 = vsel %vm400, %v3860, 0
  %v3966 = vsel %vm400, %v3865, 0
  %3968 = vmatprep.subr.mxu0 0.0
  %3969 = vmatpush1.xpose.msra.mxu0 0.0
  %3970 = vmatprep.subr.mxu0 0.0
  %3971 = vmatpush1.xpose.msra.mxu0 0.0
  %3972 = vmatprep.subr.mxu0 0.0
  %3973 = vmatpush1.xpose.msra.mxu0 0.0
  %3974 = vmatprep.subr.mxu0 0.0
  %3975 = vmatpush1.xpose.msra.mxu0 0.0
  %3976 = vmatprep.subr.mxu0 0.0
  %3977 = vmatpush1.xpose.msra.mxu0 0.0
  %3978 = vmatprep.subr.mxu0 0.0
  %3979 = vmatpush1.xpose.msra.mxu0 0.0
  %3980 = vmatprep.subr.mxu0 0.0
  %3981 = vmatpush1.xpose.msra.mxu0 0.0
  %3982 = vmatprep.subr.mxu0 0.0
  %3983 = vmatpush1.xpose.msra.mxu0 0.0
  %3984 = vmatprep.subr.mxu0 0.0
  %3985 = vmatpush1.xpose.msra.mxu0 0.0
  %3986 = vmatprep.subr.mxu0 0.0
  %3987 = vmatpush1.xpose.msra.mxu0 0.0
  %3988 = vmatprep.subr.mxu0 0.0
  %3989 = vmatpush1.xpose.msra.mxu0 0.0
  %3990 = vmatprep.subr.mxu0 0.0
  %3991 = vmatpush1.xpose.msra.mxu0 0.0
  %3992 = vmatprep.subr.mxu0 0.0
  %3993 = vmatpush1.xpose.msra.mxu0 0.0
  %3994 = vmatprep.subr.mxu0 0.0
  %3995 = vmatpush1.xpose.msra.mxu0 0.0
  %3996 = vmatprep.subr.mxu0 0.0
  %3997 = vmatpush1.xpose.msra.mxu0 %v3966
  %3998 = vmatprep.subr.mxu0 0.0
  %3999 = vmatpush1.xpose.msra.mxu0 %v3963
  %4000 = vmatprep.subr.mxu0 0.0
  %4001 = vmatpush2.xpose.msra.mxu0 0.0
  %4002 = vmatprep.subr.mxu0 0.0
  %4003 = vmatpush2.xpose.msra.mxu0 0.0
  %4004 = vmatprep.subr.mxu0 0.0
  %4005 = vmatpush2.xpose.msra.mxu0 0.0
  %4006 = vmatprep.subr.mxu0 0.0
  %4007 = vmatpush2.xpose.msra.mxu0 0.0
  %4008 = vmatprep.subr.mxu0 0.0
  %4009 = vmatpush2.xpose.msra.mxu0 0.0
  %4010 = vmatprep.subr.mxu0 0.0
  %4011 = vmatpush2.xpose.msra.mxu0 0.0
  %4012 = vmatprep.subr.mxu0 0.0
  %4013 = vmatpush2.xpose.msra.mxu0 0.0
  %4014 = vmatprep.subr.mxu0 0.0
  %4015 = vmatpush2.xpose.msra.mxu0 0.0
  %4016 = vmatprep.subr.mxu0 0.0
  %4017 = vmatpush2.xpose.msra.mxu0 0.0
  %4018 = vmatprep.subr.mxu0 0.0
  %4019 = vmatpush2.xpose.msra.mxu0 0.0
  %4020 = vmatprep.subr.mxu0 0.0
  %4021 = vmatpush2.xpose.msra.mxu0 0.0
  %4022 = vmatprep.subr.mxu0 0.0
  %4023 = vmatpush2.xpose.msra.mxu0 0.0
  %4024 = vmatprep.subr.mxu0 0.0
  %4025 = vmatpush2.xpose.msra.mxu0 0.0
  %4026 = vmatprep.subr.mxu0 0.0
  %4027 = vmatpush2.xpose.msra.mxu0 0.0
  %4028 = vmatprep.subr.mxu0 0.0
  %4029 = vmatpush2.xpose.msra.mxu0 0.0
  %4030 = vmatprep.subr.mxu0 0.0
  %4031 = vmatpush2.xpose.msra.mxu0 0.0
  %4032 = vmatprep.mubr.f32.mxu0 0.0
  %4033 = vmatmul.mubr.f32.gmra.mxu0 %v3957
  %v4034 = vpop.f32.mrf.mxu0
  %v4035 = vadd.f32 0.0, %v4034
  %v4036 = vpop.f32.mrf.mxu0
  %4037 = vmatprep.mubr.f32.mxu0 0.0
  %4038 = vmatmul.mubr.f32.gmra.mxu0 %v3960
  %v4039 = vpop.f32.mrf.mxu0
  %v4040 = vadd.f32 0.0, %v4039
  %v4041 = vpop.f32.mrf.mxu0
  %4042 = vdwg.mxu0
  %v4043 = vmul.f32 %v4035, 0.35355338
  %v4044 = vmul.f32 %v4040, 0.35355338
  %v4045 = vadd.f32 %v4043, %v129
  %v4046 = vadd.f32 %v4044, %v130
  %v4047 = vsel %vm492, %v4045, -inf
  %4048 = vmax.xlane.f32.xlu0 %v4047
  %v4049 = vpop.xlane.xlu0 %4048
  %v4050 = vsel %vm492, %v4046, -inf
  %4051 = vmax.xlane.f32.xlu0 %v4050
  %v4052 = vpop.xlane.xlu0 %4051
  %v4053 = vsub.f32 %v4045, %v4049
  %v4054 = vsub.f32 %v4046, %v4052
  %v4055 = vmul.f32 %v4053, 1.442695
  %v4056 = vpow.pop %v4055
  %v4057 = vmul.f32 %v4054, 1.442695
  %v4058 = vpow.pop %v4057
  %v4059 = vsel %vm492, %v4056, 0.0
  %4060 = vadd.xlane.f32.xlu0 %v4059
  %v4061 = vpop.xlane.xlu0 %4060
  %v4062 = vsel %vm492, %v4058, 0.0
  %4063 = vadd.xlane.f32.xlu0 %v4062
  %v4064 = vpop.xlane.xlu0 %4063
  %v4065 = vrcp.pop %v4061
  %v4066 = vrcp.pop %v4064
  %v4067 = vmul.f32 %v4056, %v4065
  %v4068 = vmul.f32 %v4058, %v4066
  %v4070 = vsel %vm492, %v4067, 0
  %v4073 = vsel %vm492, %v4068, 0
  %4075 = vmatprep.subr.mxu0 0.0
  %4076 = vmatpush1.msra.mxu0 0.0
  %4077 = vmatprep.subr.mxu0 0.0
  %4078 = vmatpush1.msra.mxu0 0.0
  %4079 = vmatprep.subr.mxu0 0.0
  %4080 = vmatpush1.msra.mxu0 0.0
  %4081 = vmatprep.subr.mxu0 0.0
  %4082 = vmatpush1.msra.mxu0 0.0
  %4083 = vmatprep.subr.mxu0 0.0
  %4084 = vmatpush1.msra.mxu0 0.0
  %4085 = vmatprep.subr.mxu0 0.0
  %4086 = vmatpush1.msra.mxu0 0.0
  %4087 = vmatprep.subr.mxu0 0.0
  %4088 = vmatpush1.msra.mxu0 0.0
  %4089 = vmatprep.subr.mxu0 0.0
  %4090 = vmatpush1.msra.mxu0 0.0
  %4091 = vmatprep.subr.mxu0 0.0
  %4092 = vmatpush1.msra.mxu0 0.0
  %4093 = vmatprep.subr.mxu0 0.0
  %4094 = vmatpush1.msra.mxu0 0.0
  %4095 = vmatprep.subr.mxu0 0.0
  %4096 = vmatpush1.msra.mxu0 0.0
  %4097 = vmatprep.subr.mxu0 0.0
  %4098 = vmatpush1.msra.mxu0 0.0
  %4099 = vmatprep.subr.mxu0 0.0
  %4100 = vmatpush1.msra.mxu0 0.0
  %4101 = vmatprep.subr.mxu0 0.0
  %4102 = vmatpush1.msra.mxu0 0.0
  %4103 = vmatprep.subr.mxu0 0.0
  %4104 = vmatpush1.msra.mxu0 %v3953
  %4105 = vmatprep.subr.mxu0 0.0
  %4106 = vmatpush1.msra.mxu0 %v3948
  %4107 = vmatprep.subr.mxu0 0.0
  %4108 = vmatpush2.msra.mxu0 0.0
  %4109 = vmatprep.subr.mxu0 0.0
  %4110 = vmatpush2.msra.mxu0 0.0
  %4111 = vmatprep.subr.mxu0 0.0
  %4112 = vmatpush2.msra.mxu0 0.0
  %4113 = vmatprep.subr.mxu0 0.0
  %4114 = vmatpush2.msra.mxu0 0.0
  %4115 = vmatprep.subr.mxu0 0.0
  %4116 = vmatpush2.msra.mxu0 0.0
  %4117 = vmatprep.subr.mxu0 0.0
  %4118 = vmatpush2.msra.mxu0 0.0
  %4119 = vmatprep.subr.mxu0 0.0
  %4120 = vmatpush2.msra.mxu0 0.0
  %4121 = vmatprep.subr.mxu0 0.0
  %4122 = vmatpush2.msra.mxu0 0.0
  %4123 = vmatprep.subr.mxu0 0.0
  %4124 = vmatpush2.msra.mxu0 0.0
  %4125 = vmatprep.subr.mxu0 0.0
  %4126 = vmatpush2.msra.mxu0 0.0
  %4127 = vmatprep.subr.mxu0 0.0
  %4128 = vmatpush2.msra.mxu0 0.0
  %4129 = vmatprep.subr.mxu0 0.0
  %4130 = vmatpush2.msra.mxu0 0.0
  %4131 = vmatprep.subr.mxu0 0.0
  %4132 = vmatpush2.msra.mxu0 0.0
  %4133 = vmatprep.subr.mxu0 0.0
  %4134 = vmatpush2.msra.mxu0 0.0
  %4135 = vmatprep.subr.mxu0 0.0
  %4136 = vmatpush2.msra.mxu0 0.0
  %4137 = vmatprep.subr.mxu0 0.0
  %4138 = vmatpush2.msra.mxu0 0.0
  %4139 = vmatprep.mubr.f32.mxu0 0.0
  %4140 = vmatmul.mubr.f32.gmra.mxu0 %v4070
  %v4141 = vpop.f32.mrf.mxu0
  %v4142 = vadd.f32 0.0, %v4141
  %v4143 = vpop.f32.mrf.mxu0
  %4144 = vmatprep.mubr.f32.mxu0 0.0
  %4145 = vmatmul.mubr.f32.gmra.mxu0 %v4073
  %v4146 = vpop.f32.mrf.mxu0
  %v4147 = vadd.f32 0.0, %v4146
  %v4148 = vpop.f32.mrf.mxu0
  %4149 = vdwg.mxu0
  %s4150 = scalar_lea.vmem %s5, 48
  %v4151 = vld [vmem:[%s4150] sm:$0xff]
  %v4153 = vsel %vm400, %v4142, 0
  %v4156 = vsel %vm400, %v4147, 0
  %4158 = vmatprep.subr.mxu0 0.0
  %4159 = vmatpush1.msra.mxu0 0.0
  %4160 = vmatprep.subr.mxu0 0.0
  %4161 = vmatpush1.msra.mxu0 0.0
  %4162 = vmatprep.subr.mxu0 0.0
  %4163 = vmatpush1.msra.mxu0 0.0
  %4164 = vmatprep.subr.mxu0 0.0
  %4165 = vmatpush1.msra.mxu0 0.0
  %4166 = vmatprep.subr.mxu0 0.0
  %4167 = vmatpush1.msra.mxu0 0.0
  %4168 = vmatprep.subr.mxu0 0.0
  %4169 = vmatpush1.msra.mxu0 0.0
  %4170 = vmatprep.subr.mxu0 0.0
  %4171 = vmatpush1.msra.mxu0 0.0
  %4172 = vmatprep.subr.mxu0 0.0
  %4173 = vmatpush1.msra.mxu0 0.0
  %4174 = vmatprep.subr.mxu0 0.0
  %4175 = vmatpush1.msra.mxu0 0.0
  %4176 = vmatprep.subr.mxu0 0.0
  %4177 = vmatpush1.msra.mxu0 0.0
  %4178 = vmatprep.subr.mxu0 0.0
  %4179 = vmatpush1.msra.mxu0 0.0
  %4180 = vmatprep.subr.mxu0 0.0
  %4181 = vmatpush1.msra.mxu0 0.0
  %4182 = vmatprep.subr.mxu0 0.0
  %4183 = vmatpush1.msra.mxu0 0.0
  %4184 = vmatprep.subr.mxu0 0.0
  %4185 = vmatpush1.msra.mxu0 0.0
  %4186 = vmatprep.subr.mxu0 0.0
  %4187 = vmatpush1.msra.mxu0 0.0
  %4188 = vmatprep.subr.mxu0 0.0
  %4189 = vmatpush1.msra.mxu0 %v4151
  %4190 = vmatprep.subr.mxu0 0.0
  %4191 = vmatpush2.msra.mxu0 0.0
  %4192 = vmatprep.subr.mxu0 0.0
  %4193 = vmatpush2.msra.mxu0 0.0
  %4194 = vmatprep.subr.mxu0 0.0
  %4195 = vmatpush2.msra.mxu0 0.0
  %4196 = vmatprep.subr.mxu0 0.0
  %4197 = vmatpush2.msra.mxu0 0.0
  %4198 = vmatprep.subr.mxu0 0.0
  %4199 = vmatpush2.msra.mxu0 0.0
  %4200 = vmatprep.subr.mxu0 0.0
  %4201 = vmatpush2.msra.mxu0 0.0
  %4202 = vmatprep.subr.mxu0 0.0
  %4203 = vmatpush2.msra.mxu0 0.0
  %4204 = vmatprep.subr.mxu0 0.0
  %4205 = vmatpush2.msra.mxu0 0.0
  %4206 = vmatprep.subr.mxu0 0.0
  %4207 = vmatpush2.msra.mxu0 0.0
  %4208 = vmatprep.subr.mxu0 0.0
  %4209 = vmatpush2.msra.mxu0 0.0
  %4210 = vmatprep.subr.mxu0 0.0
  %4211 = vmatpush2.msra.mxu0 0.0
  %4212 = vmatprep.subr.mxu0 0.0
  %4213 = vmatpush2.msra.mxu0 0.0
  %4214 = vmatprep.subr.mxu0 0.0
  %4215 = vmatpush2.msra.mxu0 0.0
  %4216 = vmatprep.subr.mxu0 0.0
  %4217 = vmatpush2.msra.mxu0 0.0
  %4218 = vmatprep.subr.mxu0 0.0
  %4219 = vmatpush2.msra.mxu0 0.0
  %4220 = vmatprep.subr.mxu0 0.0
  %4221 = vmatpush2.msra.mxu0 0.0
  %4222 = vmatprep.mubr.f32.mxu0 0.0
  %4223 = vmatmul.mubr.f32.gmra.mxu0 %v4153
  %v4224 = vpop.f32.mrf.mxu0
  %v4225 = vadd.f32 0.0, %v4224
  %v4226 = vpop.f32.mrf.mxu0
  %4227 = vmatprep.mubr.f32.mxu0 0.0
  %4228 = vmatmul.mubr.f32.gmra.mxu0 %v4156
  %v4229 = vpop.f32.mrf.mxu0
  %v4230 = vadd.f32 0.0, %v4229
  %v4231 = vpop.f32.mrf.mxu0
  %4232 = vdwg.mxu0
  %v4233 = vadd.f32 %v3684, %v4225
  %v4234 = vadd.f32 %v3689, %v4230
  %s4235 = scalar_lea.vmem %s3, 480
  %v4236 = vld [vmem:[%s4235] sm:$0xff]
  %v4237 = vld [vmem:[%s4235 + $0x8] sm:$0xff]
  %v4238 = vld [vmem:[%s4235 + $0x10] sm:$0xff]
  %v4239 = vld [vmem:[%s4235 + $0x18] sm:$0xff]
  %s4240 = scalar_lea.vmem %s4, 15
  %v4241 = vld [vmem:[%s4240] sm:$0x1]
  %v4243 = vlaneseq
  %v4244 = vshrl.u32 %v4243, 7
  %v4245 = vsub.s32 0, %v4244
  %v4246 = vrot.slane %v4241, %v4245
  %4248 = vmatprep.subr.mxu0 0.0
  %4249 = vmatpush1.msra.mxu0 0.0
  %4250 = vmatprep.subr.mxu0 0.0
  %4251 = vmatpush1.msra.mxu0 0.0
  %4252 = vmatprep.subr.mxu0 0.0
  %4253 = vmatpush1.msra.mxu0 0.0
  %4254 = vmatprep.subr.mxu0 0.0
  %4255 = vmatpush1.msra.mxu0 0.0
  %4256 = vmatprep.subr.mxu0 0.0
  %4257 = vmatpush1.msra.mxu0 0.0
  %4258 = vmatprep.subr.mxu0 0.0
  %4259 = vmatpush1.msra.mxu0 0.0
  %4260 = vmatprep.subr.mxu0 0.0
  %4261 = vmatpush1.msra.mxu0 0.0
  %4262 = vmatprep.subr.mxu0 0.0
  %4263 = vmatpush1.msra.mxu0 0.0
  %4264 = vmatprep.subr.mxu0 0.0
  %4265 = vmatpush1.msra.mxu0 0.0
  %4266 = vmatprep.subr.mxu0 0.0
  %4267 = vmatpush1.msra.mxu0 0.0
  %4268 = vmatprep.subr.mxu0 0.0
  %4269 = vmatpush1.msra.mxu0 0.0
  %4270 = vmatprep.subr.mxu0 0.0
  %4271 = vmatpush1.msra.mxu0 0.0
  %4272 = vmatprep.subr.mxu0 0.0
  %4273 = vmatpush1.msra.mxu0 %v4239
  %4274 = vmatprep.subr.mxu0 0.0
  %4275 = vmatpush1.msra.mxu0 %v4238
  %4276 = vmatprep.subr.mxu0 0.0
  %4277 = vmatpush1.msra.mxu0 %v4237
  %4278 = vmatprep.subr.mxu0 0.0
  %4279 = vmatpush1.msra.mxu0 %v4236
  %4280 = vmatprep.subr.mxu0 0.0
  %4281 = vmatpush2.msra.mxu0 0.0
  %4282 = vmatprep.subr.mxu0 0.0
  %4283 = vmatpush2.msra.mxu0 0.0
  %4284 = vmatprep.subr.mxu0 0.0
  %4285 = vmatpush2.msra.mxu0 0.0
  %4286 = vmatprep.subr.mxu0 0.0
  %4287 = vmatpush2.msra.mxu0 0.0
  %4288 = vmatprep.subr.mxu0 0.0
  %4289 = vmatpush2.msra.mxu0 0.0
  %4290 = vmatprep.subr.mxu0 0.0
  %4291 = vmatpush2.msra.mxu0 0.0
  %4292 = vmatprep.subr.mxu0 0.0
  %4293 = vmatpush2.msra.mxu0 0.0
  %4294 = vmatprep.subr.mxu0 0.0
  %4295 = vmatpush2.msra.mxu0 0.0
  %4296 = vmatprep.subr.mxu0 0.0
  %4297 = vmatpush2.msra.mxu0 0.0
  %4298 = vmatprep.subr.mxu0 0.0
  %4299 = vmatpush2.msra.mxu0 0.0
  %4300 = vmatprep.subr.mxu0 0.0
  %4301 = vmatpush2.msra.mxu0 0.0
  %4302 = vmatprep.subr.mxu0 0.0
  %4303 = vmatpush2.msra.mxu0 0.0
  %4304 = vmatprep.subr.mxu0 0.0
  %4305 = vmatpush2.msra.mxu0 0.0
  %4306 = vmatprep.subr.mxu0 0.0
  %4307 = vmatpush2.msra.mxu0 0.0
  %4308 = vmatprep.subr.mxu0 0.0
  %4309 = vmatpush2.msra.mxu0 0.0
  %4310 = vmatprep.subr.mxu0 0.0
  %4311 = vmatpush2.msra.mxu0 0.0
  %4312 = vmatprep.mubr.f32.mxu0 0.0
  %4313 = vmatmul.mubr.f32.gmra.mxu0 %v2618
  %v4314 = vpop.f32.mrf.mxu0
  %v4315 = vadd.f32 %v4246, %v4314
  %v4316 = vpop.f32.mrf.mxu0
  %4317 = vmatprep.mubr.f32.mxu0 0.0
  %4318 = vmatmul.mubr.f32.gmra.mxu0 %v2621
  %v4319 = vpop.f32.mrf.mxu0
  %v4320 = vadd.f32 %v4246, %v4319
  %v4321 = vpop.f32.mrf.mxu0
  %4322 = vdwg.mxu0
  %s4323 = scalar_lea.vmem %s3, 608
  %v4324 = vld [vmem:[%s4323] sm:$0xff]
  %v4325 = vld [vmem:[%s4323 + $0x8] sm:$0xff]
  %v4326 = vld [vmem:[%s4323 + $0x10] sm:$0xff]
  %v4327 = vld [vmem:[%s4323 + $0x18] sm:$0xff]
  %s4328 = scalar_lea.vmem %s4, 19
  %v4329 = vld [vmem:[%s4328] sm:$0x1]
  %v4331 = vlaneseq
  %v4332 = vshrl.u32 %v4331, 7
  %v4333 = vsub.s32 0, %v4332
  %v4334 = vrot.slane %v4329, %v4333
  %4336 = vmatprep.subr.mxu0 0.0
  %4337 = vmatpush1.msra.mxu0 0.0
  %4338 = vmatprep.subr.mxu0 0.0
  %4339 = vmatpush1.msra.mxu0 0.0
  %4340 = vmatprep.subr.mxu0 0.0
  %4341 = vmatpush1.msra.mxu0 0.0
  %4342 = vmatprep.subr.mxu0 0.0
  %4343 = vmatpush1.msra.mxu0 0.0
  %4344 = vmatprep.subr.mxu0 0.0
  %4345 = vmatpush1.msra.mxu0 0.0
  %4346 = vmatprep.subr.mxu0 0.0
  %4347 = vmatpush1.msra.mxu0 0.0
  %4348 = vmatprep.subr.mxu0 0.0
  %4349 = vmatpush1.msra.mxu0 0.0
  %4350 = vmatprep.subr.mxu0 0.0
  %4351 = vmatpush1.msra.mxu0 0.0
  %4352 = vmatprep.subr.mxu0 0.0
  %4353 = vmatpush1.msra.mxu0 0.0
  %4354 = vmatprep.subr.mxu0 0.0
  %4355 = vmatpush1.msra.mxu0 0.0
  %4356 = vmatprep.subr.mxu0 0.0
  %4357 = vmatpush1.msra.mxu0 0.0
  %4358 = vmatprep.subr.mxu0 0.0
  %4359 = vmatpush1.msra.mxu0 0.0
  %4360 = vmatprep.subr.mxu0 0.0
  %4361 = vmatpush1.msra.mxu0 %v4327
  %4362 = vmatprep.subr.mxu0 0.0
  %4363 = vmatpush1.msra.mxu0 %v4326
  %4364 = vmatprep.subr.mxu0 0.0
  %4365 = vmatpush1.msra.mxu0 %v4325
  %4366 = vmatprep.subr.mxu0 0.0
  %4367 = vmatpush1.msra.mxu0 %v4324
  %4368 = vmatprep.subr.mxu0 0.0
  %4369 = vmatpush2.msra.mxu0 0.0
  %4370 = vmatprep.subr.mxu0 0.0
  %4371 = vmatpush2.msra.mxu0 0.0
  %4372 = vmatprep.subr.mxu0 0.0
  %4373 = vmatpush2.msra.mxu0 0.0
  %4374 = vmatprep.subr.mxu0 0.0
  %4375 = vmatpush2.msra.mxu0 0.0
  %4376 = vmatprep.subr.mxu0 0.0
  %4377 = vmatpush2.msra.mxu0 0.0
  %4378 = vmatprep.subr.mxu0 0.0
  %4379 = vmatpush2.msra.mxu0 0.0
  %4380 = vmatprep.subr.mxu0 0.0
  %4381 = vmatpush2.msra.mxu0 0.0
  %4382 = vmatprep.subr.mxu0 0.0
  %4383 = vmatpush2.msra.mxu0 0.0
  %4384 = vmatprep.subr.mxu0 0.0
  %4385 = vmatpush2.msra.mxu0 0.0
  %4386 = vmatprep.subr.mxu0 0.0
  %4387 = vmatpush2.msra.mxu0 0.0
  %4388 = vmatprep.subr.mxu0 0.0
  %4389 = vmatpush2.msra.mxu0 0.0
  %4390 = vmatprep.subr.mxu0 0.0
  %4391 = vmatpush2.msra.mxu0 0.0
  %4392 = vmatprep.subr.mxu0 0.0
  %4393 = vmatpush2.msra.mxu0 0.0
  %4394 = vmatprep.subr.mxu0 0.0
  %4395 = vmatpush2.msra.mxu0 0.0
  %4396 = vmatprep.subr.mxu0 0.0
  %4397 = vmatpush2.msra.mxu0 0.0
  %4398 = vmatprep.subr.mxu0 0.0
  %4399 = vmatpush2.msra.mxu0 0.0
  %4400 = vmatprep.mubr.f32.mxu0 0.0
  %4401 = vmatmul.mubr.f32.gmra.mxu0 %v2618
  %v4402 = vpop.f32.mrf.mxu0
  %v4403 = vadd.f32 %v4334, %v4402
  %v4404 = vpop.f32.mrf.mxu0
  %4405 = vmatprep.mubr.f32.mxu0 0.0
  %4406 = vmatmul.mubr.f32.gmra.mxu0 %v2621
  %v4407 = vpop.f32.mrf.mxu0
  %v4408 = vadd.f32 %v4334, %v4407
  %v4409 = vpop.f32.mrf.mxu0
  %4410 = vdwg.mxu0
  %s4411 = scalar_lea.vmem %s3, 736
  %v4412 = vld [vmem:[%s4411] sm:$0xff]
  %v4413 = vld [vmem:[%s4411 + $0x8] sm:$0xff]
  %v4414 = vld [vmem:[%s4411 + $0x10] sm:$0xff]
  %v4415 = vld [vmem:[%s4411 + $0x18] sm:$0xff]
  %s4416 = scalar_lea.vmem %s4, 23
  %v4417 = vld [vmem:[%s4416] sm:$0x1]
  %v4419 = vlaneseq
  %v4420 = vshrl.u32 %v4419, 7
  %v4421 = vsub.s32 0, %v4420
  %v4422 = vrot.slane %v4417, %v4421
  %4424 = vmatprep.subr.mxu0 0.0
  %4425 = vmatpush1.msra.mxu0 0.0
  %4426 = vmatprep.subr.mxu0 0.0
  %4427 = vmatpush1.msra.mxu0 0.0
  %4428 = vmatprep.subr.mxu0 0.0
  %4429 = vmatpush1.msra.mxu0 0.0
  %4430 = vmatprep.subr.mxu0 0.0
  %4431 = vmatpush1.msra.mxu0 0.0
  %4432 = vmatprep.subr.mxu0 0.0
  %4433 = vmatpush1.msra.mxu0 0.0
  %4434 = vmatprep.subr.mxu0 0.0
  %4435 = vmatpush1.msra.mxu0 0.0
  %4436 = vmatprep.subr.mxu0 0.0
  %4437 = vmatpush1.msra.mxu0 0.0
  %4438 = vmatprep.subr.mxu0 0.0
  %4439 = vmatpush1.msra.mxu0 0.0
  %4440 = vmatprep.subr.mxu0 0.0
  %4441 = vmatpush1.msra.mxu0 0.0
  %4442 = vmatprep.subr.mxu0 0.0
  %4443 = vmatpush1.msra.mxu0 0.0
  %4444 = vmatprep.subr.mxu0 0.0
  %4445 = vmatpush1.msra.mxu0 0.0
  %4446 = vmatprep.subr.mxu0 0.0
  %4447 = vmatpush1.msra.mxu0 0.0
  %4448 = vmatprep.subr.mxu0 0.0
  %4449 = vmatpush1.msra.mxu0 %v4415
  %4450 = vmatprep.subr.mxu0 0.0
  %4451 = vmatpush1.msra.mxu0 %v4414
  %4452 = vmatprep.subr.mxu0 0.0
  %4453 = vmatpush1.msra.mxu0 %v4413
  %4454 = vmatprep.subr.mxu0 0.0
  %4455 = vmatpush1.msra.mxu0 %v4412
  %4456 = vmatprep.subr.mxu0 0.0
  %4457 = vmatpush2.msra.mxu0 0.0
  %4458 = vmatprep.subr.mxu0 0.0
  %4459 = vmatpush2.msra.mxu0 0.0
  %4460 = vmatprep.subr.mxu0 0.0
  %4461 = vmatpush2.msra.mxu0 0.0
  %4462 = vmatprep.subr.mxu0 0.0
  %4463 = vmatpush2.msra.mxu0 0.0
  %4464 = vmatprep.subr.mxu0 0.0
  %4465 = vmatpush2.msra.mxu0 0.0
  %4466 = vmatprep.subr.mxu0 0.0
  %4467 = vmatpush2.msra.mxu0 0.0
  %4468 = vmatprep.subr.mxu0 0.0
  %4469 = vmatpush2.msra.mxu0 0.0
  %4470 = vmatprep.subr.mxu0 0.0
  %4471 = vmatpush2.msra.mxu0 0.0
  %4472 = vmatprep.subr.mxu0 0.0
  %4473 = vmatpush2.msra.mxu0 0.0
  %4474 = vmatprep.subr.mxu0 0.0
  %4475 = vmatpush2.msra.mxu0 0.0
  %4476 = vmatprep.subr.mxu0 0.0
  %4477 = vmatpush2.msra.mxu0 0.0
  %4478 = vmatprep.subr.mxu0 0.0
  %4479 = vmatpush2.msra.mxu0 0.0
  %4480 = vmatprep.subr.mxu0 0.0
  %4481 = vmatpush2.msra.mxu0 0.0
  %4482 = vmatprep.subr.mxu0 0.0
  %4483 = vmatpush2.msra.mxu0 0.0
  %4484 = vmatprep.subr.mxu0 0.0
  %4485 = vmatpush2.msra.mxu0 0.0
  %4486 = vmatprep.subr.mxu0 0.0
  %4487 = vmatpush2.msra.mxu0 0.0
  %4488 = vmatprep.mubr.f32.mxu0 0.0
  %4489 = vmatmul.mubr.f32.gmra.mxu0 %v2618
  %v4490 = vpop.f32.mrf.mxu0
  %v4491 = vadd.f32 %v4422, %v4490
  %v4492 = vpop.f32.mrf.mxu0
  %4493 = vmatprep.mubr.f32.mxu0 0.0
  %4494 = vmatmul.mubr.f32.gmra.mxu0 %v2621
  %v4495 = vpop.f32.mrf.mxu0
  %v4496 = vadd.f32 %v4422, %v4495
  %v4497 = vpop.f32.mrf.mxu0
  %4498 = vdwg.mxu0
  %v4500 = vsel %vm400, %v4315, 0
  %v4503 = vsel %vm400, %v4320, 0
  %v4506 = vsel %vm400, %v4403, 0
  %v4509 = vsel %vm400, %v4408, 0
  %4511 = vmatprep.subr.mxu0 0.0
  %4512 = vmatpush1.xpose.msra.mxu0 0.0
  %4513 = vmatprep.subr.mxu0 0.0
  %4514 = vmatpush1.xpose.msra.mxu0 0.0
  %4515 = vmatprep.subr.mxu0 0.0
  %4516 = vmatpush1.xpose.msra.mxu0 0.0
  %4517 = vmatprep.subr.mxu0 0.0
  %4518 = vmatpush1.xpose.msra.mxu0 0.0
  %4519 = vmatprep.subr.mxu0 0.0
  %4520 = vmatpush1.xpose.msra.mxu0 0.0
  %4521 = vmatprep.subr.mxu0 0.0
  %4522 = vmatpush1.xpose.msra.mxu0 0.0
  %4523 = vmatprep.subr.mxu0 0.0
  %4524 = vmatpush1.xpose.msra.mxu0 0.0
  %4525 = vmatprep.subr.mxu0 0.0
  %4526 = vmatpush1.xpose.msra.mxu0 0.0
  %4527 = vmatprep.subr.mxu0 0.0
  %4528 = vmatpush1.xpose.msra.mxu0 0.0
  %4529 = vmatprep.subr.mxu0 0.0
  %4530 = vmatpush1.xpose.msra.mxu0 0.0
  %4531 = vmatprep.subr.mxu0 0.0
  %4532 = vmatpush1.xpose.msra.mxu0 0.0
  %4533 = vmatprep.subr.mxu0 0.0
  %4534 = vmatpush1.xpose.msra.mxu0 0.0
  %4535 = vmatprep.subr.mxu0 0.0
  %4536 = vmatpush1.xpose.msra.mxu0 0.0
  %4537 = vmatprep.subr.mxu0 0.0
  %4538 = vmatpush1.xpose.msra.mxu0 0.0
  %4539 = vmatprep.subr.mxu0 0.0
  %4540 = vmatpush1.xpose.msra.mxu0 %v4509
  %4541 = vmatprep.subr.mxu0 0.0
  %4542 = vmatpush1.xpose.msra.mxu0 %v4506
  %4543 = vmatprep.subr.mxu0 0.0
  %4544 = vmatpush2.xpose.msra.mxu0 0.0
  %4545 = vmatprep.subr.mxu0 0.0
  %4546 = vmatpush2.xpose.msra.mxu0 0.0
  %4547 = vmatprep.subr.mxu0 0.0
  %4548 = vmatpush2.xpose.msra.mxu0 0.0
  %4549 = vmatprep.subr.mxu0 0.0
  %4550 = vmatpush2.xpose.msra.mxu0 0.0
  %4551 = vmatprep.subr.mxu0 0.0
  %4552 = vmatpush2.xpose.msra.mxu0 0.0
  %4553 = vmatprep.subr.mxu0 0.0
  %4554 = vmatpush2.xpose.msra.mxu0 0.0
  %4555 = vmatprep.subr.mxu0 0.0
  %4556 = vmatpush2.xpose.msra.mxu0 0.0
  %4557 = vmatprep.subr.mxu0 0.0
  %4558 = vmatpush2.xpose.msra.mxu0 0.0
  %4559 = vmatprep.subr.mxu0 0.0
  %4560 = vmatpush2.xpose.msra.mxu0 0.0
  %4561 = vmatprep.subr.mxu0 0.0
  %4562 = vmatpush2.xpose.msra.mxu0 0.0
  %4563 = vmatprep.subr.mxu0 0.0
  %4564 = vmatpush2.xpose.msra.mxu0 0.0
  %4565 = vmatprep.subr.mxu0 0.0
  %4566 = vmatpush2.xpose.msra.mxu0 0.0
  %4567 = vmatprep.subr.mxu0 0.0
  %4568 = vmatpush2.xpose.msra.mxu0 0.0
  %4569 = vmatprep.subr.mxu0 0.0
  %4570 = vmatpush2.xpose.msra.mxu0 0.0
  %4571 = vmatprep.subr.mxu0 0.0
  %4572 = vmatpush2.xpose.msra.mxu0 0.0
  %4573 = vmatprep.subr.mxu0 0.0
  %4574 = vmatpush2.xpose.msra.mxu0 0.0
  %4575 = vmatprep.mubr.f32.mxu0 0.0
  %4576 = vmatmul.mubr.f32.gmra.mxu0 %v4500
  %v4577 = vpop.f32.mrf.mxu0
  %v4578 = vadd.f32 0.0, %v4577
  %v4579 = vpop.f32.mrf.mxu0
  %4580 = vmatprep.mubr.f32.mxu0 0.0
  %4581 = vmatmul.mubr.f32.gmra.mxu0 %v4503
  %v4582 = vpop.f32.mrf.mxu0
  %v4583 = vadd.f32 0.0, %v4582
  %v4584 = vpop.f32.mrf.mxu0
  %4585 = vdwg.mxu0
  %v4586 = vmul.f32 %v4578, 0.35355338
  %v4587 = vmul.f32 %v4583, 0.35355338
  %v4588 = vadd.f32 %v4586, %v129
  %v4589 = vadd.f32 %v4587, %v130
  %v4590 = vsel %vm492, %v4588, -inf
  %4591 = vmax.xlane.f32.xlu0 %v4590
  %v4592 = vpop.xlane.xlu0 %4591
  %v4593 = vsel %vm492, %v4589, -inf
  %4594 = vmax.xlane.f32.xlu0 %v4593
  %v4595 = vpop.xlane.xlu0 %4594
  %v4596 = vsub.f32 %v4588, %v4592
  %v4597 = vsub.f32 %v4589, %v4595
  %v4598 = vmul.f32 %v4596, 1.442695
  %v4599 = vpow.pop %v4598
  %v4600 = vmul.f32 %v4597, 1.442695
  %v4601 = vpow.pop %v4600
  %v4602 = vsel %vm492, %v4599, 0.0
  %4603 = vadd.xlane.f32.xlu0 %v4602
  %v4604 = vpop.xlane.xlu0 %4603
  %v4605 = vsel %vm492, %v4601, 0.0
  %4606 = vadd.xlane.f32.xlu0 %v4605
  %v4607 = vpop.xlane.xlu0 %4606
  %v4608 = vrcp.pop %v4604
  %v4609 = vrcp.pop %v4607
  %v4610 = vmul.f32 %v4599, %v4608
  %v4611 = vmul.f32 %v4601, %v4609
  %v4613 = vsel %vm492, %v4610, 0
  %v4616 = vsel %vm492, %v4611, 0
  %4618 = vmatprep.subr.mxu0 0.0
  %4619 = vmatpush1.msra.mxu0 0.0
  %4620 = vmatprep.subr.mxu0 0.0
  %4621 = vmatpush1.msra.mxu0 0.0
  %4622 = vmatprep.subr.mxu0 0.0
  %4623 = vmatpush1.msra.mxu0 0.0
  %4624 = vmatprep.subr.mxu0 0.0
  %4625 = vmatpush1.msra.mxu0 0.0
  %4626 = vmatprep.subr.mxu0 0.0
  %4627 = vmatpush1.msra.mxu0 0.0
  %4628 = vmatprep.subr.mxu0 0.0
  %4629 = vmatpush1.msra.mxu0 0.0
  %4630 = vmatprep.subr.mxu0 0.0
  %4631 = vmatpush1.msra.mxu0 0.0
  %4632 = vmatprep.subr.mxu0 0.0
  %4633 = vmatpush1.msra.mxu0 0.0
  %4634 = vmatprep.subr.mxu0 0.0
  %4635 = vmatpush1.msra.mxu0 0.0
  %4636 = vmatprep.subr.mxu0 0.0
  %4637 = vmatpush1.msra.mxu0 0.0
  %4638 = vmatprep.subr.mxu0 0.0
  %4639 = vmatpush1.msra.mxu0 0.0
  %4640 = vmatprep.subr.mxu0 0.0
  %4641 = vmatpush1.msra.mxu0 0.0
  %4642 = vmatprep.subr.mxu0 0.0
  %4643 = vmatpush1.msra.mxu0 0.0
  %4644 = vmatprep.subr.mxu0 0.0
  %4645 = vmatpush1.msra.mxu0 0.0
  %4646 = vmatprep.subr.mxu0 0.0
  %4647 = vmatpush1.msra.mxu0 %v4496
  %4648 = vmatprep.subr.mxu0 0.0
  %4649 = vmatpush1.msra.mxu0 %v4491
  %4650 = vmatprep.subr.mxu0 0.0
  %4651 = vmatpush2.msra.mxu0 0.0
  %4652 = vmatprep.subr.mxu0 0.0
  %4653 = vmatpush2.msra.mxu0 0.0
  %4654 = vmatprep.subr.mxu0 0.0
  %4655 = vmatpush2.msra.mxu0 0.0
  %4656 = vmatprep.subr.mxu0 0.0
  %4657 = vmatpush2.msra.mxu0 0.0
  %4658 = vmatprep.subr.mxu0 0.0
  %4659 = vmatpush2.msra.mxu0 0.0
  %4660 = vmatprep.subr.mxu0 0.0
  %4661 = vmatpush2.msra.mxu0 0.0
  %4662 = vmatprep.subr.mxu0 0.0
  %4663 = vmatpush2.msra.mxu0 0.0
  %4664 = vmatprep.subr.mxu0 0.0
  %4665 = vmatpush2.msra.mxu0 0.0
  %4666 = vmatprep.subr.mxu0 0.0
  %4667 = vmatpush2.msra.mxu0 0.0
  %4668 = vmatprep.subr.mxu0 0.0
  %4669 = vmatpush2.msra.mxu0 0.0
  %4670 = vmatprep.subr.mxu0 0.0
  %4671 = vmatpush2.msra.mxu0 0.0
  %4672 = vmatprep.subr.mxu0 0.0
  %4673 = vmatpush2.msra.mxu0 0.0
  %4674 = vmatprep.subr.mxu0 0.0
  %4675 = vmatpush2.msra.mxu0 0.0
  %4676 = vmatprep.subr.mxu0 0.0
  %4677 = vmatpush2.msra.mxu0 0.0
  %4678 = vmatprep.subr.mxu0 0.0
  %4679 = vmatpush2.msra.mxu0 0.0
  %4680 = vmatprep.subr.mxu0 0.0
  %4681 = vmatpush2.msra.mxu0 0.0
  %4682 = vmatprep.mubr.f32.mxu0 0.0
  %4683 = vmatmul.mubr.f32.gmra.mxu0 %v4613
  %v4684 = vpop.f32.mrf.mxu0
  %v4685 = vadd.f32 0.0, %v4684
  %v4686 = vpop.f32.mrf.mxu0
  %4687 = vmatprep.mubr.f32.mxu0 0.0
  %4688 = vmatmul.mubr.f32.gmra.mxu0 %v4616
  %v4689 = vpop.f32.mrf.mxu0
  %v4690 = vadd.f32 0.0, %v4689
  %v4691 = vpop.f32.mrf.mxu0
  %4692 = vdwg.mxu0
  %s4693 = scalar_lea.vmem %s5, 56
  %v4694 = vld [vmem:[%s4693] sm:$0xff]
  %v4696 = vsel %vm400, %v4685, 0
  %v4699 = vsel %vm400, %v4690, 0
  %4701 = vmatprep.subr.mxu0 0.0
  %4702 = vmatpush1.msra.mxu0 0.0
  %4703 = vmatprep.subr.mxu0 0.0
  %4704 = vmatpush1.msra.mxu0 0.0
  %4705 = vmatprep.subr.mxu0 0.0
  %4706 = vmatpush1.msra.mxu0 0.0
  %4707 = vmatprep.subr.mxu0 0.0
  %4708 = vmatpush1.msra.mxu0 0.0
  %4709 = vmatprep.subr.mxu0 0.0
  %4710 = vmatpush1.msra.mxu0 0.0
  %4711 = vmatprep.subr.mxu0 0.0
  %4712 = vmatpush1.msra.mxu0 0.0
  %4713 = vmatprep.subr.mxu0 0.0
  %4714 = vmatpush1.msra.mxu0 0.0
  %4715 = vmatprep.subr.mxu0 0.0
  %4716 = vmatpush1.msra.mxu0 0.0
  %4717 = vmatprep.subr.mxu0 0.0
  %4718 = vmatpush1.msra.mxu0 0.0
  %4719 = vmatprep.subr.mxu0 0.0
  %4720 = vmatpush1.msra.mxu0 0.0
  %4721 = vmatprep.subr.mxu0 0.0
  %4722 = vmatpush1.msra.mxu0 0.0
  %4723 = vmatprep.subr.mxu0 0.0
  %4724 = vmatpush1.msra.mxu0 0.0
  %4725 = vmatprep.subr.mxu0 0.0
  %4726 = vmatpush1.msra.mxu0 0.0
  %4727 = vmatprep.subr.mxu0 0.0
  %4728 = vmatpush1.msra.mxu0 0.0
  %4729 = vmatprep.subr.mxu0 0.0
  %4730 = vmatpush1.msra.mxu0 0.0
  %4731 = vmatprep.subr.mxu0 0.0
  %4732 = vmatpush1.msra.mxu0 %v4694
  %4733 = vmatprep.subr.mxu0 0.0
  %4734 = vmatpush2.msra.mxu0 0.0
  %4735 = vmatprep.subr.mxu0 0.0
  %4736 = vmatpush2.msra.mxu0 0.0
  %4737 = vmatprep.subr.mxu0 0.0
  %4738 = vmatpush2.msra.mxu0 0.0
  %4739 = vmatprep.subr.mxu0 0.0
  %4740 = vmatpush2.msra.mxu0 0.0
  %4741 = vmatprep.subr.mxu0 0.0
  %4742 = vmatpush2.msra.mxu0 0.0
  %4743 = vmatprep.subr.mxu0 0.0
  %4744 = vmatpush2.msra.mxu0 0.0
  %4745 = vmatprep.subr.mxu0 0.0
  %4746 = vmatpush2.msra.mxu0 0.0
  %4747 = vmatprep.subr.mxu0 0.0
  %4748 = vmatpush2.msra.mxu0 0.0
  %4749 = vmatprep.subr.mxu0 0.0
  %4750 = vmatpush2.msra.mxu0 0.0
  %4751 = vmatprep.subr.mxu0 0.0
  %4752 = vmatpush2.msra.mxu0 0.0
  %4753 = vmatprep.subr.mxu0 0.0
  %4754 = vmatpush2.msra.mxu0 0.0
  %4755 = vmatprep.subr.mxu0 0.0
  %4756 = vmatpush2.msra.mxu0 0.0
  %4757 = vmatprep.subr.mxu0 0.0
  %4758 = vmatpush2.msra.mxu0 0.0
  %4759 = vmatprep.subr.mxu0 0.0
  %4760 = vmatpush2.msra.mxu0 0.0
  %4761 = vmatprep.subr.mxu0 0.0
  %4762 = vmatpush2.msra.mxu0 0.0
  %4763 = vmatprep.subr.mxu0 0.0
  %4764 = vmatpush2.msra.mxu0 0.0
  %4765 = vmatprep.mubr.f32.mxu0 0.0
  %4766 = vmatmul.mubr.f32.gmra.mxu0 %v4696
  %v4767 = vpop.f32.mrf.mxu0
  %v4768 = vadd.f32 0.0, %v4767
  %v4769 = vpop.f32.mrf.mxu0
  %4770 = vmatprep.mubr.f32.mxu0 0.0
  %4771 = vmatmul.mubr.f32.gmra.mxu0 %v4699
  %v4772 = vpop.f32.mrf.mxu0
  %v4773 = vadd.f32 0.0, %v4772
  %v4774 = vpop.f32.mrf.mxu0
  %4775 = vdwg.mxu0
  %v4776 = vadd.f32 %v4233, %v4768
  %v4777 = vadd.f32 %v4234, %v4773
  %s4778 = scalar_lea.vmem %s8, 7
  %v4779 = vld [vmem:[%s4778] sm:$0x1]
  %s4780 = scalar_lea.vmem %s8, 8
  %v4781 = vld [vmem:[%s4780] sm:$0x1]
  %s4782 = scalar_lea.vmem %s8, 9
  %v4783 = vld [vmem:[%s4782] sm:$0x1]
  %s4784 = scalar_lea.vmem %s8, 10
  %v4785 = vld [vmem:[%s4784] sm:$0x1]
  %s4786 = scalar_lea.vmem %s8, 11
  %v4787 = vld [vmem:[%s4786] sm:$0x1]
  %s4788 = scalar_lea.vmem %s8, 12
  %v4789 = vld [vmem:[%s4788] sm:$0x1]
  %s4790 = scalar_lea.vmem %s8, 13
  %v4791 = vld [vmem:[%s4790] sm:$0x1]
  %v4793 = vlaneseq
  %v4794 = vshrl.u32 %v4793, 7
  %v4795 = vsub.s32 0, %v4794
  %v4796 = vrot.slane %v4781, %v4795
  %v4798 = vadd.f32 %v4776, %v4796
  %v4799 = vadd.f32 %v4777, %v4796
  %v4800 = vadd.f32 %v2602, %v4798
  %v4801 = vadd.f32 %v2603, %v4799
  %v4802 = vsel %vm142, %v4800, 0.0
  %4803 = vadd.xlane.f32.xlu0 %v4802
  %v4804 = vpop.xlane.xlu0 %4803
  %v4805 = vsel %vm142, %v4801, 0.0
  %4806 = vadd.xlane.f32.xlu0 %v4805
  %v4807 = vpop.xlane.xlu0 %4806
  %v4808 = vmul.f32 %v4804, %v2334
  %v4809 = vmul.f32 %v4807, %v2334
  %v4810 = vsub.f32 %v4800, %v4808
  %v4811 = vsub.f32 %v4801, %v4809
  %v4812 = vmul.f32 %v4810, %v4810
  %v4813 = vmul.f32 %v4811, %v4811
  %v4814 = vsel %vm142, %v4812, 0.0
  %4815 = vadd.xlane.f32.xlu0 %v4814
  %v4816 = vpop.xlane.xlu0 %4815
  %v4817 = vsel %vm142, %v4813, 0.0
  %4818 = vadd.xlane.f32.xlu0 %v4817
  %v4819 = vpop.xlane.xlu0 %4818
  %v4820 = vmul.f32 %v4816, %v2334
  %v4821 = vmul.f32 %v4819, %v2334
  %v4822 = vadd.f32 %v4820, 1e-05
  %v4823 = vadd.f32 %v4821, 1e-05
  %v4824 = vrsqrt.pop %v4822
  %v4825 = vrsqrt.pop %v4823
  %v4826 = vmul.f32 %v4810, %v4824
  %v4827 = vmul.f32 %v4811, %v4825
  %v4829 = vlaneseq
  %v4830 = vshrl.u32 %v4829, 7
  %v4831 = vsub.s32 0, %v4830
  %v4832 = vrot.slane %v4785, %v4831
  %v4834 = vmul.f32 %v4826, %v4832
  %v4835 = vmul.f32 %v4827, %v4832
  %v4837 = vlaneseq
  %v4838 = vshrl.u32 %v4837, 7
  %v4839 = vsub.s32 0, %v4838
  %v4840 = vrot.slane %v4787, %v4839
  %v4842 = vadd.f32 %v4834, %v4840
  %v4843 = vadd.f32 %v4835, %v4840
  %s4844 = scalar_lea.vmem %s6, 32
  %v4845 = vld [vmem:[%s4844] sm:$0xff]
  %v4846 = vld [vmem:[%s4844 + $0x8] sm:$0xff]
  %v4847 = vld [vmem:[%s4844 + $0x10] sm:$0xff]
  %v4848 = vld [vmem:[%s4844 + $0x18] sm:$0xff]
  %v4850 = vlaneseq
  %v4851 = vshrl.u32 %v4850, 7
  %v4852 = vsub.s32 0, %v4851
  %v4853 = vrot.slane %v4779, %v4852
  %v4856 = vsel %vm142, %v4842, 0
  %v4859 = vsel %vm142, %v4843, 0
  %4861 = vmatprep.subr.mxu0 0.0
  %4862 = vmatpush1.msra.mxu0 0.0
  %4863 = vmatprep.subr.mxu0 0.0
  %4864 = vmatpush1.msra.mxu0 0.0
  %4865 = vmatprep.subr.mxu0 0.0
  %4866 = vmatpush1.msra.mxu0 0.0
  %4867 = vmatprep.subr.mxu0 0.0
  %4868 = vmatpush1.msra.mxu0 0.0
  %4869 = vmatprep.subr.mxu0 0.0
  %4870 = vmatpush1.msra.mxu0 0.0
  %4871 = vmatprep.subr.mxu0 0.0
  %4872 = vmatpush1.msra.mxu0 0.0
  %4873 = vmatprep.subr.mxu0 0.0
  %4874 = vmatpush1.msra.mxu0 0.0
  %4875 = vmatprep.subr.mxu0 0.0
  %4876 = vmatpush1.msra.mxu0 0.0
  %4877 = vmatprep.subr.mxu0 0.0
  %4878 = vmatpush1.msra.mxu0 0.0
  %4879 = vmatprep.subr.mxu0 0.0
  %4880 = vmatpush1.msra.mxu0 0.0
  %4881 = vmatprep.subr.mxu0 0.0
  %4882 = vmatpush1.msra.mxu0 0.0
  %4883 = vmatprep.subr.mxu0 0.0
  %4884 = vmatpush1.msra.mxu0 0.0
  %4885 = vmatprep.subr.mxu0 0.0
  %4886 = vmatpush1.msra.mxu0 %v4848
  %4887 = vmatprep.subr.mxu0 0.0
  %4888 = vmatpush1.msra.mxu0 %v4847
  %4889 = vmatprep.subr.mxu0 0.0
  %4890 = vmatpush1.msra.mxu0 %v4846
  %4891 = vmatprep.subr.mxu0 0.0
  %4892 = vmatpush1.msra.mxu0 %v4845
  %4893 = vmatprep.subr.mxu0 0.0
  %4894 = vmatpush2.msra.mxu0 0.0
  %4895 = vmatprep.subr.mxu0 0.0
  %4896 = vmatpush2.msra.mxu0 0.0
  %4897 = vmatprep.subr.mxu0 0.0
  %4898 = vmatpush2.msra.mxu0 0.0
  %4899 = vmatprep.subr.mxu0 0.0
  %4900 = vmatpush2.msra.mxu0 0.0
  %4901 = vmatprep.subr.mxu0 0.0
  %4902 = vmatpush2.msra.mxu0 0.0
  %4903 = vmatprep.subr.mxu0 0.0
  %4904 = vmatpush2.msra.mxu0 0.0
  %4905 = vmatprep.subr.mxu0 0.0
  %4906 = vmatpush2.msra.mxu0 0.0
  %4907 = vmatprep.subr.mxu0 0.0
  %4908 = vmatpush2.msra.mxu0 0.0
  %4909 = vmatprep.subr.mxu0 0.0
  %4910 = vmatpush2.msra.mxu0 0.0
  %4911 = vmatprep.subr.mxu0 0.0
  %4912 = vmatpush2.msra.mxu0 0.0
  %4913 = vmatprep.subr.mxu0 0.0
  %4914 = vmatpush2.msra.mxu0 0.0
  %4915 = vmatprep.subr.mxu0 0.0
  %4916 = vmatpush2.msra.mxu0 0.0
  %4917 = vmatprep.subr.mxu0 0.0
  %4918 = vmatpush2.msra.mxu0 0.0
  %4919 = vmatprep.subr.mxu0 0.0
  %4920 = vmatpush2.msra.mxu0 0.0
  %4921 = vmatprep.subr.mxu0 0.0
  %4922 = vmatpush2.msra.mxu0 0.0
  %4923 = vmatprep.subr.mxu0 0.0
  %4924 = vmatpush2.msra.mxu0 0.0
  %4925 = vmatprep.mubr.f32.mxu0 0.0
  %4926 = vmatmul.mubr.f32.gmra.mxu0 %v4856
  %v4927 = vpop.f32.mrf.mxu0
  %v4928 = vadd.f32 %v4853, %v4927
  %v4929 = vpop.f32.mrf.mxu0
  %4930 = vmatprep.mubr.f32.mxu0 0.0
  %4931 = vmatmul.mubr.f32.gmra.mxu0 %v4859
  %v4932 = vpop.f32.mrf.mxu0
  %v4933 = vadd.f32 %v4853, %v4932
  %v4934 = vpop.f32.mrf.mxu0
  %4935 = vdwg.mxu0
  %v4936 = vmax.f32 %v4928, 0.0
  %v4937 = vmax.f32 %v4933, 0.0
  %s4938 = scalar_lea.vmem %s7, 64
  %v4939 = vld [vmem:[%s4938] sm:$0xff]
  %v4940 = vld [vmem:[%s4938 + $0x8] sm:$0xff]
  %v4941 = vld [vmem:[%s4938 + $0x10] sm:$0xff]
  %v4942 = vld [vmem:[%s4938 + $0x18] sm:$0xff]
  %v4943 = vld [vmem:[%s4938 + $0x20] sm:$0xff]
  %v4944 = vld [vmem:[%s4938 + $0x28] sm:$0xff]
  %v4945 = vld [vmem:[%s4938 + $0x30] sm:$0xff]
  %v4946 = vld [vmem:[%s4938 + $0x38] sm:$0xff]
  %v4948 = vlaneseq
  %v4949 = vshrl.u32 %v4948, 7
  %v4950 = vsub.s32 0, %v4949
  %v4951 = vrot.slane %v4783, %v4950
  %v4954 = vsel %vm2478, %v4936, 0
  %v4957 = vsel %vm2478, %v4937, 0
  %4959 = vmatprep.subr.mxu0 0.0
  %4960 = vmatpush1.msra.mxu0 0.0
  %4961 = vmatprep.subr.mxu0 0.0
  %4962 = vmatpush1.msra.mxu0 0.0
  %4963 = vmatprep.subr.mxu0 0.0
  %4964 = vmatpush1.msra.mxu0 0.0
  %4965 = vmatprep.subr.mxu0 0.0
  %4966 = vmatpush1.msra.mxu0 0.0
  %4967 = vmatprep.subr.mxu0 0.0
  %4968 = vmatpush1.msra.mxu0 0.0
  %4969 = vmatprep.subr.mxu0 0.0
  %4970 = vmatpush1.msra.mxu0 0.0
  %4971 = vmatprep.subr.mxu0 0.0
  %4972 = vmatpush1.msra.mxu0 0.0
  %4973 = vmatprep.subr.mxu0 0.0
  %4974 = vmatpush1.msra.mxu0 0.0
  %4975 = vmatprep.subr.mxu0 0.0
  %4976 = vmatpush1.msra.mxu0 %v4946
  %4977 = vmatprep.subr.mxu0 0.0
  %4978 = vmatpush1.msra.mxu0 %v4945
  %4979 = vmatprep.subr.mxu0 0.0
  %4980 = vmatpush1.msra.mxu0 %v4944
  %4981 = vmatprep.subr.mxu0 0.0
  %4982 = vmatpush1.msra.mxu0 %v4943
  %4983 = vmatprep.subr.mxu0 0.0
  %4984 = vmatpush1.msra.mxu0 %v4942
  %4985 = vmatprep.subr.mxu0 0.0
  %4986 = vmatpush1.msra.mxu0 %v4941
  %4987 = vmatprep.subr.mxu0 0.0
  %4988 = vmatpush1.msra.mxu0 %v4940
  %4989 = vmatprep.subr.mxu0 0.0
  %4990 = vmatpush1.msra.mxu0 %v4939
  %4991 = vmatprep.subr.mxu0 0.0
  %4992 = vmatpush2.msra.mxu0 0.0
  %4993 = vmatprep.subr.mxu0 0.0
  %4994 = vmatpush2.msra.mxu0 0.0
  %4995 = vmatprep.subr.mxu0 0.0
  %4996 = vmatpush2.msra.mxu0 0.0
  %4997 = vmatprep.subr.mxu0 0.0
  %4998 = vmatpush2.msra.mxu0 0.0
  %4999 = vmatprep.subr.mxu0 0.0
  %5000 = vmatpush2.msra.mxu0 0.0
  %5001 = vmatprep.subr.mxu0 0.0
  %5002 = vmatpush2.msra.mxu0 0.0
  %5003 = vmatprep.subr.mxu0 0.0
  %5004 = vmatpush2.msra.mxu0 0.0
  %5005 = vmatprep.subr.mxu0 0.0
  %5006 = vmatpush2.msra.mxu0 0.0
  %5007 = vmatprep.subr.mxu0 0.0
  %5008 = vmatpush2.msra.mxu0 0.0
  %5009 = vmatprep.subr.mxu0 0.0
  %5010 = vmatpush2.msra.mxu0 0.0
  %5011 = vmatprep.subr.mxu0 0.0
  %5012 = vmatpush2.msra.mxu0 0.0
  %5013 = vmatprep.subr.mxu0 0.0
  %5014 = vmatpush2.msra.mxu0 0.0
  %5015 = vmatprep.subr.mxu0 0.0
  %5016 = vmatpush2.msra.mxu0 0.0
  %5017 = vmatprep.subr.mxu0 0.0
  %5018 = vmatpush2.msra.mxu0 0.0
  %5019 = vmatprep.subr.mxu0 0.0
  %5020 = vmatpush2.msra.mxu0 0.0
  %5021 = vmatprep.subr.mxu0 0.0
  %5022 = vmatpush2.msra.mxu0 0.0
  %5023 = vmatprep.mubr.f32.mxu0 0.0
  %5024 = vmatmul.mubr.f32.gmra.mxu0 %v4954
  %v5025 = vpop.f32.mrf.mxu0
  %v5026 = vadd.f32 %v4951, %v5025
  %v5027 = vpop.f32.mrf.mxu0
  %5028 = vmatprep.mubr.f32.mxu0 0.0
  %5029 = vmatmul.mubr.f32.gmra.mxu0 %v4957
  %v5030 = vpop.f32.mrf.mxu0
  %v5031 = vadd.f32 %v4951, %v5030
  %v5032 = vpop.f32.mrf.mxu0
  %5033 = vdwg.mxu0
  %v5034 = vadd.f32 %v4842, %v5026
  %v5035 = vadd.f32 %v4843, %v5031
  %v5036 = vsel %vm142, %v5034, 0.0
  %5037 = vadd.xlane.f32.xlu0 %v5036
  %v5038 = vpop.xlane.xlu0 %5037
  %v5039 = vsel %vm142, %v5035, 0.0
  %5040 = vadd.xlane.f32.xlu0 %v5039
  %v5041 = vpop.xlane.xlu0 %5040
  %v5042 = vmul.f32 %v5038, %v2334
  %v5043 = vmul.f32 %v5041, %v2334
  %v5044 = vsub.f32 %v5034, %v5042
  %v5045 = vsub.f32 %v5035, %v5043
  %v5046 = vmul.f32 %v5044, %v5044
  %v5047 = vmul.f32 %v5045, %v5045
  %v5048 = vsel %vm142, %v5046, 0.0
  %5049 = vadd.xlane.f32.xlu0 %v5048
  %v5050 = vpop.xlane.xlu0 %5049
  %v5051 = vsel %vm142, %v5047, 0.0
  %5052 = vadd.xlane.f32.xlu0 %v5051
  %v5053 = vpop.xlane.xlu0 %5052
  %v5054 = vmul.f32 %v5050, %v2334
  %v5055 = vmul.f32 %v5053, %v2334
  %v5056 = vadd.f32 %v5054, 1e-05
  %v5057 = vadd.f32 %v5055, 1e-05
  %v5058 = vrsqrt.pop %v5056
  %v5059 = vrsqrt.pop %v5057
  %v5060 = vmul.f32 %v5044, %v5058
  %v5061 = vmul.f32 %v5045, %v5059
  %v5063 = vlaneseq
  %v5064 = vshrl.u32 %v5063, 7
  %v5065 = vsub.s32 0, %v5064
  %v5066 = vrot.slane %v4789, %v5065
  %v5068 = vmul.f32 %v5060, %v5066
  %v5069 = vmul.f32 %v5061, %v5066
  %v5071 = vlaneseq
  %v5072 = vshrl.u32 %v5071, 7
  %v5073 = vsub.s32 0, %v5072
  %v5074 = vrot.slane %v4791, %v5073
  %v5076 = vadd.f32 %v5068, %v5074
  %v5077 = vadd.f32 %v5069, %v5074
  %v5078 = vld [vmem:[%s9] sm:$0xff]
  %v5079 = vld [vmem:[%s9 + $0x8] sm:$0xff]
  %v5080 = vld [vmem:[%s9 + $0x10] sm:$0xff]
  %v5081 = vld [vmem:[%s9 + $0x18] sm:$0xff]
  %v5082 = vld [vmem:[%s9 + $0x20] sm:$0x1]
  %v5083 = vlaneseq
  %v5084 = vshrl.u32 %v5083, 7
  %v5085 = vsub.s32 0, %v5084
  %v5086 = vrot.slane %v5082, %v5085
  %v5088 = vsel %vm142, %v5076, 0
  %v5091 = vsel %vm142, %v5077, 0
  %5093 = vmatprep.subr.mxu0 0.0
  %5094 = vmatpush1.msra.mxu0 0.0
  %5095 = vmatprep.subr.mxu0 0.0
  %5096 = vmatpush1.msra.mxu0 0.0
  %5097 = vmatprep.subr.mxu0 0.0
  %5098 = vmatpush1.msra.mxu0 0.0
  %5099 = vmatprep.subr.mxu0 0.0
  %5100 = vmatpush1.msra.mxu0 0.0
  %5101 = vmatprep.subr.mxu0 0.0
  %5102 = vmatpush1.msra.mxu0 0.0
  %5103 = vmatprep.subr.mxu0 0.0
  %5104 = vmatpush1.msra.mxu0 0.0
  %5105 = vmatprep.subr.mxu0 0.0
  %5106 = vmatpush1.msra.mxu0 0.0
  %5107 = vmatprep.subr.mxu0 0.0
  %5108 = vmatpush1.msra.mxu0 0.0
  %5109 = vmatprep.subr.mxu0 0.0
  %5110 = vmatpush1.msra.mxu0 0.0
  %5111 = vmatprep.subr.mxu0 0.0
  %5112 = vmatpush1.msra.mxu0 0.0
  %5113 = vmatprep.subr.mxu0 0.0
  %5114 = vmatpush1.msra.mxu0 0.0
  %5115 = vmatprep.subr.mxu0 0.0
  %5116 = vmatpush1.msra.mxu0 0.0
  %5117 = vmatprep.subr.mxu0 0.0
  %5118 = vmatpush1.msra.mxu0 %v5081
  %5119 = vmatprep.subr.mxu0 0.0
  %5120 = vmatpush1.msra.mxu0 %v5080
  %5121 = vmatprep.subr.mxu0 0.0
  %5122 = vmatpush1.msra.mxu0 %v5079
  %5123 = vmatprep.subr.mxu0 0.0
  %5124 = vmatpush1.msra.mxu0 %v5078
  %5125 = vmatprep.subr.mxu0 0.0
  %5126 = vmatpush2.msra.mxu0 0.0
  %5127 = vmatprep.subr.mxu0 0.0
  %5128 = vmatpush2.msra.mxu0 0.0
  %5129 = vmatprep.subr.mxu0 0.0
  %5130 = vmatpush2.msra.mxu0 0.0
  %5131 = vmatprep.subr.mxu0 0.0
  %5132 = vmatpush2.msra.mxu0 0.0
  %5133 = vmatprep.subr.mxu0 0.0
  %5134 = vmatpush2.msra.mxu0 0.0
  %5135 = vmatprep.subr.mxu0 0.0
  %5136 = vmatpush2.msra.mxu0 0.0
  %5137 = vmatprep.subr.mxu0 0.0
  %5138 = vmatpush2.msra.mxu0 0.0
  %5139 = vmatprep.subr.mxu0 0.0
  %5140 = vmatpush2.msra.mxu0 0.0
  %5141 = vmatprep.subr.mxu0 0.0
  %5142 = vmatpush2.msra.mxu0 0.0
  %5143 = vmatprep.subr.mxu0 0.0
  %5144 = vmatpush2.msra.mxu0 0.0
  %5145 = vmatprep.subr.mxu0 0.0
  %5146 = vmatpush2.msra.mxu0 0.0
  %5147 = vmatprep.subr.mxu0 0.0
  %5148 = vmatpush2.msra.mxu0 0.0
  %5149 = vmatprep.subr.mxu0 0.0
  %5150 = vmatpush2.msra.mxu0 0.0
  %5151 = vmatprep.subr.mxu0 0.0
  %5152 = vmatpush2.msra.mxu0 0.0
  %5153 = vmatprep.subr.mxu0 0.0
  %5154 = vmatpush2.msra.mxu0 0.0
  %5155 = vmatprep.subr.mxu0 0.0
  %5156 = vmatpush2.msra.mxu0 0.0
  %5157 = vmatprep.mubr.f32.mxu0 0.0
  %5158 = vmatmul.mubr.f32.gmra.mxu0 %v5088
  %v5159 = vpop.f32.mrf.mxu0
  %v5160 = vadd.f32 %v5086, %v5159
  %v5161 = vpop.f32.mrf.mxu0
  %5162 = vmatprep.mubr.f32.mxu0 0.0
  %5163 = vmatmul.mubr.f32.gmra.mxu0 %v5091
  %v5164 = vpop.f32.mrf.mxu0
  %v5165 = vadd.f32 %v5086, %v5164
  %v5166 = vpop.f32.mrf.mxu0
  %5167 = vdwg.mxu0
  %5168 = vst [vmem:[%s10] sm:$0xff] %v5160
  %5169 = vst [vmem:[%s10 + $0x8] sm:$0xff] %v5165
  // Predicated region
  $region42: #{model_forward.1} parent=0 // pred_check
    _
  $region43: #{model_forward.1} parent=0 // pred_check_branch
    %5171 = sbr.rel (0) target = $region45
  $region44: #{model_forward.1} parent=0 // pred_region
    _
  $region45: #{model_forward.1} parent=0 // pred_fallthru
    _
  // Predicated region
  $region46: #{model_forward.1} parent=0 // pred_check
    _
  $region47: #{model_forward.1} parent=0 // pred_check_branch
    %5173 = sbr.rel (0) target = $region49
  $region48: #{model_forward.1} parent=0 // pred_region
    _
  $region49: #{model_forward.1} parent=0 // pred_fallthru
    _

</llo_original>
